<compile_context>
chip_gen: v7x
topology: tpu7x:2x2x1
jax: 0.10.0
libtpu: 0.0.40
codegen_flags: <defaults>
</compile_context>

<pallas_src>
import functools

import jax
import jax.numpy as jnp
from jax.experimental import pallas as pl
from jax.experimental.pallas import tpu as pltpu


def _make_nxblock_kernel(k, W, inner, Cin, Cout):
    """Builds the kernel with the static geometry baked in (python closure)."""
    pad = (k - 1) // 2
    KKC = k * k * Cin
    IC = inner + Cin
    center = pad * k + pad

    def kernel(tap_ref, pk_ref, slab_ref, out_ref):
        # tap_ref : (M, KKC)        im2col rows, M = NB*H*W (row order n,h,w)
        # pk_ref  : (PR, PW)        packed small weights/biases (see wrapper)
        # slab_ref: (k*k, M, inner) per-tap depthwise weight*BNscale*edge-mask
        # out_ref : (M, Cout)

        # ---- unpack the packed small operands (static slices, no reshapes) --
        w_s1 = pk_ref[0:KKC, 0:IC]                            # (KKC, IC)
        b_s1 = pk_ref[KKC:KKC + 1, 0:IC]                      # (1, IC)
        b_dw = pk_ref[KKC + 1:KKC + 2, 0:inner]               # (1, inner)
        w_fin = pk_ref[KKC + 2:KKC + 2 + IC, 0:Cout]          # (IC, Cout)
        b_fin = pk_ref[KKC + 2 + IC:KKC + 3 + IC, 0:Cout]     # (1, Cout)

        # ---- fused stage 1: opa 1x1 conv (center-tap rows of w_s1) and
        #      opb kxk conv, one MXU matmul + one bias/ReLU pass -------------
        s = jnp.dot(tap_ref[...], w_s1, preferred_element_type=jnp.float32)
        s = jnp.maximum(s + b_s1, 0.0)                        # (M, IC)
        y1 = s[:, 0:inner]                                    # opa branch
        yb = s[:, inner:IC]                                   # opb branch

        # ---- opa stage 2: depthwise kxk conv as 9 row-shifted MACs ---------
        # shifted tap value at row m is y1[m + di*W + dj]; slab[t] is zero
        # wherever that tap would cross the spatial pad or an image boundary,
        # so the circular wrap of jnp.roll never contributes.
        acc = y1 * slab_ref[center]
        for t in range(k * k):
            if t == center:
                continue
            d = (t // k - pad) * W + (t % k - pad)
            acc = acc + jnp.roll(y1, -d, axis=0) * slab_ref[t]
        y2 = jnp.maximum(acc + b_dw, 0.0)                     # (M, inner)

        # ---- fused trailing 1x1 convs + residual add:
        #      a + b = [y2 | yb] @ [w3' ; wb2'] + (b3 + bb2) ------------------
        feat = jnp.concatenate([y2, yb], axis=-1)             # (M, IC)
        o = jnp.dot(feat, w_fin, preferred_element_type=jnp.float32) + b_fin
        # No final ReLU: pre_relu=True, use_final_relu=False.
        out_ref[...] = o                                      # (M, Cout)

    return kernel


def _default_batch_block(N):
    """Images per grid step: 1 on dual-TC v7x (megacore), N on single-TC chips."""
    try:
        kind = jax.devices()[0].device_kind.lower()
    except Exception:
        kind = ""
    if "v7" in kind or "7x" in kind:
        return 1          # grid=(N,): one image per TensorCore via megacore
    return N              # v5e/v6e: fold the batch into the matmul M dimension


def nxblock_forward(x_nhwc, params, kernel_size, stride=1, batch_block=None):
    assert stride == 1  # TODO(synk): strided variant not implemented
    N, H, W, Cin = x_nhwc.shape
    k = kernel_size
    pad = (k - 1) // 2
    inner = params['w1'].shape[1]
    Cout = params['w3'].shape[1]
    KKC = k * k * Cin
    IC = inner + Cin
    center = pad * k + pad

    NB = _default_batch_block(N) if batch_block is None else batch_block
    assert N % NB == 0
    G = N // NB
    M_blk = NB * H * W
    assert M_blk % 8 == 0

    # ---- im2col in the wrapper (layout plumbing only) ------------------------
    x_pad = jnp.pad(x_nhwc, ((0, 0), (pad, pad), (pad, pad), (0, 0)))
    taps = [x_pad[:, ki:ki + H, kj:kj + W, :]
            for ki in range(k) for kj in range(k)]
    tapmat = jnp.concatenate(taps, axis=-1).reshape(N * H * W, KKC)
    tapmat = tapmat.astype(jnp.float32)

    # ---- fold eval-mode BN scales into the conv weights; pack small operands -
    w_a = jnp.zeros((KKC, inner), jnp.float32)
    w_a = w_a.at[center * Cin:(center + 1) * Cin, :].set(
        params['w1'] * params['s1'])                           # opa 1x1 @ center tap
    w_b = (params['wb1'] * params['sb1'].reshape(1, 1, 1, Cin)).reshape(KKC, Cin)
    w_s1 = jnp.concatenate([w_a, w_b], axis=1)                 # (KKC, IC)
    b_s1 = jnp.concatenate([params['b1'], params['bb1']], axis=1)   # (1, IC)
    w_fin = jnp.concatenate([params['w3'] * params['s3'],
                             params['wb2'] * params['sb2']], axis=0)  # (IC, Cout)
    b_fin = params['b3'] + params['bb2']                       # (1, Cout)

    PW = max(IC, inner, Cout)
    PR = KKC + 3 + IC
    packed = jnp.zeros((PR, PW), jnp.float32)
    packed = packed.at[0:KKC, 0:IC].set(w_s1)
    packed = packed.at[KKC:KKC + 1, 0:IC].set(b_s1)
    packed = packed.at[KKC + 1:KKC + 2, 0:inner].set(params['b2'])
    packed = packed.at[KKC + 2:KKC + 2 + IC, 0:Cout].set(w_fin)
    packed = packed.at[KKC + 2 + IC:PR, 0:Cout].set(b_fin)

    # ---- per-tap depthwise weight * BN scale * pad/edge-mask slabs ------------
    h_idx = jnp.arange(H).reshape(H, 1, 1)
    w_idx = jnp.arange(W).reshape(1, W, 1)
    wdwf = params['wdw'] * params['s2'].reshape(1, 1, inner)   # (k, k, inner)
    slabs = []
    for ki in range(k):
        for kj in range(k):
            di, dj = ki - pad, kj - pad
            valid = ((h_idx + di >= 0) & (h_idx + di < H) &
                     (w_idx + dj >= 0) & (w_idx + dj < W))
            slab = jnp.where(valid, 1.0, 0.0) * wdwf[ki, kj].reshape(1, 1, inner)
            slabs.append(slab.reshape(H * W, inner))
    slab_img = jnp.stack(slabs, axis=0)                        # (k*k, H*W, inner)
    slab_blk = jnp.tile(slab_img, (1, NB, 1)).astype(jnp.float32)  # (k*k, M_blk, inner)

    kernel = _make_nxblock_kernel(k, W, inner, Cin, Cout)

    out = pl.pallas_call(
        kernel,
        out_shape=jax.ShapeDtypeStruct((N * H * W, Cout), jnp.float32),
        grid=(G,),
        in_specs=[
            pl.BlockSpec((M_blk, KKC), lambda g: (g, 0)),
            pl.BlockSpec((PR, PW), lambda g: (0, 0)),
            pl.BlockSpec((k * k, M_blk, inner), lambda g: (0, 0, 0)),
        ],
        out_specs=pl.BlockSpec((M_blk, Cout), lambda g: (g, 0)),
        compiler_params=pltpu.CompilerParams(
            dimension_semantics=("parallel",)),
    )(tapmat, packed, slab_blk)

    return out.reshape(N, H, W, Cout)


def ref_forward(x_nhwc, p, k, stride=1):
    """Pure-JAX reference (lax conv) for verification, using unfolded params."""
    pad = (k - 1) // 2
    dn = ('NHWC', 'HWIO', 'NHWC')
    relu = lambda t: jnp.maximum(t, 0.0)

    def conv(x, w, pads, groups=1):
        return jax.lax.conv_general_dilated(
            x, w, (stride, stride), pads, dimension_numbers=dn,
            feature_group_count=groups)

    inner = p['w1'].shape[1]
    # opa
    h = conv(x_nhwc, p['w1'].reshape(1, 1, *p['w1'].shape), 'VALID')
    h = relu(h * p['s1'][0] + p['b1'][0])
    h = conv(h, p['wdw'].reshape(k, k, 1, inner),
             [(pad, pad), (pad, pad)], groups=inner)
    h = relu(h * p['s2'][0] + p['b2'][0])
    a = conv(h, p['w3'].reshape(1, 1, *p['w3'].shape), 'VALID')
    a = a * p['s3'][0] + p['b3'][0]
    # opb
    hb = conv(x_nhwc, p['wb1'], [(pad, pad), (pad, pad)])
    hb = relu(hb * p['sb1'][0] + p['bb1'][0])
    b = conv(hb, p['wb2'].reshape(1, 1, *p['wb2'].shape), 'VALID')
    b = b * p['sb2'][0] + p['bb2'][0]
    return a + b


def _get_divisible_by(num, divisible_by, min_val=None):
    if min_val is None:
        min_val = divisible_by
    ret = int(num)
    if divisible_by is not None and divisible_by > 0 and (num % divisible_by != 0):
        ret = int((round(num / divisible_by) or min_val) * divisible_by)
    return ret


def make_params(key, C_in, C_out, inner, k):
    """Deterministic parameter init; BN folded (eval mode) into scale/bias."""
    ks = list(jax.random.split(key, 32))
    it = iter(ks)

    def bn(C):
        gamma = 1.0 + 0.1 * jax.random.normal(next(it), (C,))
        beta = 0.1 * jax.random.normal(next(it), (C,))
        mean = 0.1 * jax.random.normal(next(it), (C,))
        var = jax.random.uniform(next(it), (C,), minval=0.5, maxval=1.5)
        scale = gamma / jnp.sqrt(var + 1e-5)
        bias = beta - mean * scale
        return (scale.reshape(1, C).astype(jnp.float32),
                bias.reshape(1, C).astype(jnp.float32))

    def w(shape, fan_in):
        return (jax.random.normal(next(it), shape) / jnp.sqrt(fan_in)
                ).astype(jnp.float32)

    p = {}
    p['w1'] = w((C_in, inner), C_in)                 # 1x1 conv  (Cin -> inner)
    p['s1'], p['b1'] = bn(inner)
    p['wdw'] = w((k, k, inner), k * k)               # depthwise kxk (per-channel)
    p['s2'], p['b2'] = bn(inner)
    p['w3'] = w((inner, C_out), inner)               # 1x1 conv  (inner -> Cout)
    p['s3'], p['b3'] = bn(C_out)
    p['wb1'] = w((k, k, C_in, C_in), k * k * C_in)   # full kxk conv (Cin -> Cin)
    p['sb1'], p['bb1'] = bn(C_in)
    p['wb2'] = w((C_in, C_out), C_in)                # 1x1 conv  (Cin -> Cout)
    p['sb2'], p['bb2'] = bn(C_out)
    return p


if __name__ == "__main__":
    # Small NxBlock config: C_in=8, C_out=8, kernel_size=3, stride=1, expansion=2
    N, C_in, H, W = 2, 8, 16, 16
    C_out, k, stride, expansion, depth_div = 8, 3, 1, 2, 8
    inner = _get_divisible_by(int(C_in * expansion), depth_div, depth_div)  # 16

    key = jax.random.PRNGKey(0)
    k_x, k_p = jax.random.split(key)
    x_nchw = jax.random.normal(k_x, (N, C_in, H, W), dtype=jnp.float32)
    x_nhwc = jnp.transpose(x_nchw, (0, 2, 3, 1))  # layout: NCHW -> NHWC

    params = make_params(k_p, C_in, C_out, inner, k)

    fwd = jax.jit(functools.partial(nxblock_forward, kernel_size=k, stride=stride))
    out = jax.block_until_ready(fwd(x_nhwc, params))

    ref = jax.block_until_ready(ref_forward(x_nhwc, params, k, stride))
    assert out.shape == (N, H, W, C_out)
    assert jnp.allclose(out, ref, atol=2e-3, rtol=2e-3), \
        f"max err {jnp.max(jnp.abs(out - ref))}"

    print("KERNEL_OK")
</pallas_src>

<mosaic_0001>
module attributes {stable_mosaic.version = 11 : i64} {
  func.func @kernel(%arg0: i32, %arg1: memref<512x72xf32, #tpu.memory_space<vmem>>, %arg2: memref<99x24xf32, #tpu.memory_space<vmem>>, %arg3: memref<9x512x16xf32, #tpu.memory_space<vmem>>, %arg4: memref<512x8xf32, #tpu.memory_space<vmem>>) attributes {dimension_semantics = [#tpu.dimension_semantics<parallel>], iteration_bounds = array<i64: 1>, scalar_prefetch = 0 : i64, scratch_operands = 0 : i64, tpu.core_type = #tpu.core_type<tc>, window_params = [{transform_indices = @transform_0, window_bounds = array<i64: 512, 72>}, {pipeline_mode = #tpu.pipeline_mode<synchronous>, transform_indices = @transform_1, window_bounds = array<i64: 99, 24>}, {pipeline_mode = #tpu.pipeline_mode<synchronous>, transform_indices = @transform_2, window_bounds = array<i64: 9, 512, 16>}, {transform_indices = @transform_3, window_bounds = array<i64: 512, 8>}]} {
    %c0 = arith.constant 0 : index
    %c0_0 = arith.constant 0 : index
    %0 = vector.load %arg2[%c0, %c0_0] : memref<99x24xf32, #tpu.memory_space<vmem>>, vector<72x24xf32>
    %c72 = arith.constant 72 : index
    %c0_1 = arith.constant 0 : index
    %1 = vector.load %arg2[%c72, %c0_1] : memref<99x24xf32, #tpu.memory_space<vmem>>, vector<1x24xf32>
    %c73 = arith.constant 73 : index
    %c0_2 = arith.constant 0 : index
    %2 = vector.load %arg2[%c73, %c0_2] : memref<99x24xf32, #tpu.memory_space<vmem>>, vector<1x16xf32>
    %c74 = arith.constant 74 : index
    %c0_3 = arith.constant 0 : index
    %3 = vector.load %arg2[%c74, %c0_3] : memref<99x24xf32, #tpu.memory_space<vmem>>, vector<24x8xf32>
    %c98 = arith.constant 98 : index
    %c0_4 = arith.constant 0 : index
    %4 = vector.load %arg2[%c98, %c0_4] : memref<99x24xf32, #tpu.memory_space<vmem>>, vector<1x8xf32>
    %c0_5 = arith.constant 0 : index
    %c0_6 = arith.constant 0 : index
    %5 = vector.load %arg1[%c0_5, %c0_6] : memref<512x72xf32, #tpu.memory_space<vmem>>, vector<512x72xf32>
    %cst = arith.constant dense<0.000000e+00> : vector<512x24xf32>
    %6 = tpu.matmul %5, %0, %cst {dimension_numbers = #tpu.dot_dimension_numbers<[1], [0], [0], [1], [0, 0, 1, 1], [], []>} : vector<512x72xf32>, vector<72x24xf32>, vector<512x24xf32> -> vector<512x24xf32>
    %7 = vector.broadcast %1 : vector<1x24xf32> to vector<512x24xf32>
    %8 = arith.addf %6, %7 : vector<512x24xf32>
    %cst_7 = arith.constant 0.000000e+00 : f32
    %9 = vector.broadcast %cst_7 : f32 to vector<512x24xf32>
    %10 = arith.maximumf %8, %9 : vector<512x24xf32>
    %11 = vector.extract_strided_slice %10 {offsets = [0, 0], sizes = [512, 16], strides = [1, 1]} : vector<512x24xf32> to vector<512x16xf32>
    %12 = vector.extract_strided_slice %10 {offsets = [0, 16], sizes = [512, 8], strides = [1, 1]} : vector<512x24xf32> to vector<512x8xf32>
    %c4 = arith.constant 4 : index
    %c0_8 = arith.constant 0 : index
    %c0_9 = arith.constant 0 : index
    %13 = vector.load %arg3[%c4, %c0_8, %c0_9] : memref<9x512x16xf32, #tpu.memory_space<vmem>>, vector<1x512x16xf32>
    %14 = vector.shape_cast %13 : vector<1x512x16xf32> to vector<512x16xf32>
    %15 = arith.mulf %11, %14 : vector<512x16xf32>
    %16 = vector.extract_strided_slice %11 {offsets = [495, 0], sizes = [17, 16], strides = [1, 1]} : vector<512x16xf32> to vector<17x16xf32>
    %17 = vector.extract_strided_slice %11 {offsets = [0, 0], sizes = [495, 16], strides = [1, 1]} : vector<512x16xf32> to vector<495x16xf32>
    %18 = tpu.concatenate %16, %17 in 0 : vector<17x16xf32>, vector<495x16xf32> -> vector<512x16xf32>
    %c0_10 = arith.constant 0 : index
    %c0_11 = arith.constant 0 : index
    %c0_12 = arith.constant 0 : index
    %19 = vector.load %arg3[%c0_10, %c0_11, %c0_12] : memref<9x512x16xf32, #tpu.memory_space<vmem>>, vector<1x512x16xf32>
    %20 = vector.shape_cast %19 : vector<1x512x16xf32> to vector<512x16xf32>
    %21 = arith.mulf %18, %20 : vector<512x16xf32>
    %22 = arith.addf %15, %21 : vector<512x16xf32>
    %23 = vector.extract_strided_slice %11 {offsets = [496, 0], sizes = [16, 16], strides = [1, 1]} : vector<512x16xf32> to vector<16x16xf32>
    %24 = vector.extract_strided_slice %11 {offsets = [0, 0], sizes = [496, 16], strides = [1, 1]} : vector<512x16xf32> to vector<496x16xf32>
    %25 = tpu.concatenate %23, %24 in 0 : vector<16x16xf32>, vector<496x16xf32> -> vector<512x16xf32>
    %c1 = arith.constant 1 : index
    %c0_13 = arith.constant 0 : index
    %c0_14 = arith.constant 0 : index
    %26 = vector.load %arg3[%c1, %c0_13, %c0_14] : memref<9x512x16xf32, #tpu.memory_space<vmem>>, vector<1x512x16xf32>
    %27 = vector.shape_cast %26 : vector<1x512x16xf32> to vector<512x16xf32>
    %28 = arith.mulf %25, %27 : vector<512x16xf32>
    %29 = arith.addf %22, %28 : vector<512x16xf32>
    %30 = vector.extract_strided_slice %11 {offsets = [497, 0], sizes = [15, 16], strides = [1, 1]} : vector<512x16xf32> to vector<15x16xf32>
    %31 = vector.extract_strided_slice %11 {offsets = [0, 0], sizes = [497, 16], strides = [1, 1]} : vector<512x16xf32> to vector<497x16xf32>
    %32 = tpu.concatenate %30, %31 in 0 : vector<15x16xf32>, vector<497x16xf32> -> vector<512x16xf32>
    %c2 = arith.constant 2 : index
    %c0_15 = arith.constant 0 : index
    %c0_16 = arith.constant 0 : index
    %33 = vector.load %arg3[%c2, %c0_15, %c0_16] : memref<9x512x16xf32, #tpu.memory_space<vmem>>, vector<1x512x16xf32>
    %34 = vector.shape_cast %33 : vector<1x512x16xf32> to vector<512x16xf32>
    %35 = arith.mulf %32, %34 : vector<512x16xf32>
    %36 = arith.addf %29, %35 : vector<512x16xf32>
    %37 = vector.extract_strided_slice %11 {offsets = [511, 0], sizes = [1, 16], strides = [1, 1]} : vector<512x16xf32> to vector<1x16xf32>
    %38 = vector.extract_strided_slice %11 {offsets = [0, 0], sizes = [511, 16], strides = [1, 1]} : vector<512x16xf32> to vector<511x16xf32>
    %39 = tpu.concatenate %37, %38 in 0 : vector<1x16xf32>, vector<511x16xf32> -> vector<512x16xf32>
    %c3 = arith.constant 3 : index
    %c0_17 = arith.constant 0 : index
    %c0_18 = arith.constant 0 : index
    %40 = vector.load %arg3[%c3, %c0_17, %c0_18] : memref<9x512x16xf32, #tpu.memory_space<vmem>>, vector<1x512x16xf32>
    %41 = vector.shape_cast %40 : vector<1x512x16xf32> to vector<512x16xf32>
    %42 = arith.mulf %39, %41 : vector<512x16xf32>
    %43 = arith.addf %36, %42 : vector<512x16xf32>
    %44 = vector.extract_strided_slice %11 {offsets = [1, 0], sizes = [511, 16], strides = [1, 1]} : vector<512x16xf32> to vector<511x16xf32>
    %45 = vector.extract_strided_slice %11 {offsets = [0, 0], sizes = [1, 16], strides = [1, 1]} : vector<512x16xf32> to vector<1x16xf32>
    %46 = tpu.concatenate %44, %45 in 0 : vector<511x16xf32>, vector<1x16xf32> -> vector<512x16xf32>
    %c5 = arith.constant 5 : index
    %c0_19 = arith.constant 0 : index
    %c0_20 = arith.constant 0 : index
    %47 = vector.load %arg3[%c5, %c0_19, %c0_20] : memref<9x512x16xf32, #tpu.memory_space<vmem>>, vector<1x512x16xf32>
    %48 = vector.shape_cast %47 : vector<1x512x16xf32> to vector<512x16xf32>
    %49 = arith.mulf %46, %48 : vector<512x16xf32>
    %50 = arith.addf %43, %49 : vector<512x16xf32>
    %51 = vector.extract_strided_slice %11 {offsets = [15, 0], sizes = [497, 16], strides = [1, 1]} : vector<512x16xf32> to vector<497x16xf32>
    %52 = vector.extract_strided_slice %11 {offsets = [0, 0], sizes = [15, 16], strides = [1, 1]} : vector<512x16xf32> to vector<15x16xf32>
    %53 = tpu.concatenate %51, %52 in 0 : vector<497x16xf32>, vector<15x16xf32> -> vector<512x16xf32>
    %c6 = arith.constant 6 : index
    %c0_21 = arith.constant 0 : index
    %c0_22 = arith.constant 0 : index
    %54 = vector.load %arg3[%c6, %c0_21, %c0_22] : memref<9x512x16xf32, #tpu.memory_space<vmem>>, vector<1x512x16xf32>
    %55 = vector.shape_cast %54 : vector<1x512x16xf32> to vector<512x16xf32>
    %56 = arith.mulf %53, %55 : vector<512x16xf32>
    %57 = arith.addf %50, %56 : vector<512x16xf32>
    %58 = vector.extract_strided_slice %11 {offsets = [16, 0], sizes = [496, 16], strides = [1, 1]} : vector<512x16xf32> to vector<496x16xf32>
    %59 = vector.extract_strided_slice %11 {offsets = [0, 0], sizes = [16, 16], strides = [1, 1]} : vector<512x16xf32> to vector<16x16xf32>
    %60 = tpu.concatenate %58, %59 in 0 : vector<496x16xf32>, vector<16x16xf32> -> vector<512x16xf32>
    %c7 = arith.constant 7 : index
    %c0_23 = arith.constant 0 : index
    %c0_24 = arith.constant 0 : index
    %61 = vector.load %arg3[%c7, %c0_23, %c0_24] : memref<9x512x16xf32, #tpu.memory_space<vmem>>, vector<1x512x16xf32>
    %62 = vector.shape_cast %61 : vector<1x512x16xf32> to vector<512x16xf32>
    %63 = arith.mulf %60, %62 : vector<512x16xf32>
    %64 = arith.addf %57, %63 : vector<512x16xf32>
    %65 = vector.extract_strided_slice %11 {offsets = [17, 0], sizes = [495, 16], strides = [1, 1]} : vector<512x16xf32> to vector<495x16xf32>
    %66 = vector.extract_strided_slice %11 {offsets = [0, 0], sizes = [17, 16], strides = [1, 1]} : vector<512x16xf32> to vector<17x16xf32>
    %67 = tpu.concatenate %65, %66 in 0 : vector<495x16xf32>, vector<17x16xf32> -> vector<512x16xf32>
    %c8 = arith.constant 8 : index
    %c0_25 = arith.constant 0 : index
    %c0_26 = arith.constant 0 : index
    %68 = vector.load %arg3[%c8, %c0_25, %c0_26] : memref<9x512x16xf32, #tpu.memory_space<vmem>>, vector<1x512x16xf32>
    %69 = vector.shape_cast %68 : vector<1x512x16xf32> to vector<512x16xf32>
    %70 = arith.mulf %67, %69 : vector<512x16xf32>
    %71 = arith.addf %64, %70 : vector<512x16xf32>
    %72 = vector.broadcast %2 : vector<1x16xf32> to vector<512x16xf32>
    %73 = arith.addf %71, %72 : vector<512x16xf32>
    %cst_27 = arith.constant 0.000000e+00 : f32
    %74 = vector.broadcast %cst_27 : f32 to vector<512x16xf32>
    %75 = arith.maximumf %73, %74 : vector<512x16xf32>
    %76 = tpu.concatenate %75, %12 in 1 : vector<512x16xf32>, vector<512x8xf32> -> vector<512x24xf32>
    %cst_28 = arith.constant dense<0.000000e+00> : vector<512x8xf32>
    %77 = tpu.matmul %76, %3, %cst_28 {dimension_numbers = #tpu.dot_dimension_numbers<[1], [0], [0], [1], [0, 0, 1, 1], [], []>} : vector<512x24xf32>, vector<24x8xf32>, vector<512x8xf32> -> vector<512x8xf32>
    %78 = vector.broadcast %4 : vector<1x8xf32> to vector<512x8xf32>
    %79 = arith.addf %77, %78 : vector<512x8xf32>
    %c0_29 = arith.constant 0 : index
    %c0_30 = arith.constant 0 : index
    %80 = vector.load %arg4[%c0_29, %c0_30] : memref<512x8xf32, #tpu.memory_space<vmem>>, vector<512x8xf32>
    tpu.vector_store %arg4[%c0_29, %c0_30], %79 {strides = array<i32>} : memref<512x8xf32, #tpu.memory_space<vmem>>, vector<512x8xf32>,
    return
  }
  func.func @transform_0(%arg0: i32) -> (i32, i32) {
    %c0_i32 = arith.constant 0 : i32
    %c0_i32_0 = arith.constant 0 : i32
    return %arg0, %c0_i32 : i32, i32
  }
  func.func @transform_1(%arg0: i32) -> (i32, i32) {
    %c0_i32 = arith.constant 0 : i32
    %c0_i32_0 = arith.constant 0 : i32
    %c0_i32_1 = arith.constant 0 : i32
    return %c0_i32, %c0_i32_0 : i32, i32
  }
  func.func @transform_2(%arg0: i32) -> (i32, i32, i32) {
    %c0_i32 = arith.constant 0 : i32
    %c0_i32_0 = arith.constant 0 : i32
    %c0_i32_1 = arith.constant 0 : i32
    %c0_i32_2 = arith.constant 0 : i32
    return %c0_i32, %c0_i32_0, %c0_i32_1 : i32, i32, i32
  }
  func.func @transform_3(%arg0: i32) -> (i32, i32) {
    %c0_i32 = arith.constant 0 : i32
    %c0_i32_0 = arith.constant 0 : i32
    return %arg0, %c0_i32 : i32, i32
  }
}

</mosaic_0001>

<llo_original>
// kernel: nxblock_forward.1
$region0: #{nxblock_forward.1}
  #allocation0 [shape = 'u32[]', space=smem, size = 0x4, offset = 0x4, fixed_abs, tag = 'smem constant byte address 0x4 - core index']
  #allocation1 [shape = 'u32[144,128]{1,0:T(1,128)}', space=vmem, size = 0x12000, scoped, tag = 'internal scratch']
  %s0 = inlined_call_operand.vmem [shape: f32[512,72], index: 0, kind: input, shape index: {}]
  %s1 = inlined_call_operand.vmem [shape: f32[99,24], index: 1, kind: input, shape index: {}]
  %s2 = inlined_call_operand.vmem [shape: f32[9,512,16], index: 2, kind: input, shape index: {}]
  %s3 = inlined_call_operand.vmem [shape: f32[512,8], index: 3, kind: output, shape index: {}]
  %s4 = sld [smem:[#allocation0]]
  $region22: #{nxblock_forward.1} parent=0
    _
  %s6 = ssub.s32 1, %s4
  %s7 = scalar_select 0, %s6, %s4
  // Predicated region
  $region2: #{nxblock_forward.1} parent=0 // pred_check
    _
  $region3: #{nxblock_forward.1} parent=0 // pred_check_branch
    %9 = sbr.rel (0) target = $region5
  $region4: #{nxblock_forward.1} parent=0 // pred_region
    _
  $region5: #{nxblock_forward.1} parent=0 // pred_fallthru
    _
  // Predicated region
  $region6: #{nxblock_forward.1} parent=0 // pred_check
    _
  $region7: #{nxblock_forward.1} parent=0 // pred_check_branch
    %11 = sbr.rel (0) target = $region9
  $region8: #{nxblock_forward.1} parent=0 // pred_region
    _
  $region9: #{nxblock_forward.1} parent=0 // pred_fallthru
    _
  // Predicated region
  $region10: #{nxblock_forward.1} parent=0 // pred_check
    _
  $region11: #{nxblock_forward.1} parent=0 // pred_check_branch
    %13 = sbr.rel (0) target = $region13
  $region12: #{nxblock_forward.1} parent=0 // pred_region
    _
  $region13: #{nxblock_forward.1} parent=0 // pred_fallthru
    _
  %v14 = vld [vmem:[%s1] sm:$0xff]
  %v15 = vld [vmem:[%s1 + $0x8] sm:$0xff]
  %v16 = vld [vmem:[%s1 + $0x10] sm:$0xff]
  %v17 = vld [vmem:[%s1 + $0x18] sm:$0xff]
  %v18 = vld [vmem:[%s1 + $0x20] sm:$0xff]
  %v19 = vld [vmem:[%s1 + $0x28] sm:$0xff]
  %v20 = vld [vmem:[%s1 + $0x30] sm:$0xff]
  %v21 = vld [vmem:[%s1 + $0x38] sm:$0xff]
  %v22 = vld [vmem:[%s1 + $0x40] sm:$0xff]
  %v23 = vld [vmem:[%s1 + $0x48] sm:$0x1]
  %v24 = vld [vmem:[%s1 + $0x49] sm:$0x1]
  %v25 = vld [vmem:[%s1 + $0x4a] sm:$0xff]
  %v26 = vld [vmem:[%s1 + $0x52] sm:$0xff]
  %v27 = vld [vmem:[%s1 + $0x5a] sm:$0xff]
  %v28 = vld [vmem:[%s1 + $0x62] sm:$0x1]
  %v29 = vld [vmem:[%s0] sm:$0xff]
  %v30 = vld [vmem:[%s0 + $0x8] sm:$0xff]
  %v31 = vld [vmem:[%s0 + $0x10] sm:$0xff]
  %v32 = vld [vmem:[%s0 + $0x18] sm:$0xff]
  %v33 = vld [vmem:[%s0 + $0x20] sm:$0xff]
  %v34 = vld [vmem:[%s0 + $0x28] sm:$0xff]
  %v35 = vld [vmem:[%s0 + $0x30] sm:$0xff]
  %v36 = vld [vmem:[%s0 + $0x38] sm:$0xff]
  %v37 = vld [vmem:[%s0 + $0x40] sm:$0xff]
  %v38 = vld [vmem:[%s0 + $0x48] sm:$0xff]
  %v39 = vld [vmem:[%s0 + $0x50] sm:$0xff]
  %v40 = vld [vmem:[%s0 + $0x58] sm:$0xff]
  %v41 = vld [vmem:[%s0 + $0x60] sm:$0xff]
  %v42 = vld [vmem:[%s0 + $0x68] sm:$0xff]
  %v43 = vld [vmem:[%s0 + $0x70] sm:$0xff]
  %v44 = vld [vmem:[%s0 + $0x78] sm:$0xff]
  %v45 = vld [vmem:[%s0 + $0x80] sm:$0xff]
  %v46 = vld [vmem:[%s0 + $0x88] sm:$0xff]
  %v47 = vld [vmem:[%s0 + $0x90] sm:$0xff]
  %v48 = vld [vmem:[%s0 + $0x98] sm:$0xff]
  %v49 = vld [vmem:[%s0 + $0xa0] sm:$0xff]
  %v50 = vld [vmem:[%s0 + $0xa8] sm:$0xff]
  %v51 = vld [vmem:[%s0 + $0xb0] sm:$0xff]
  %v52 = vld [vmem:[%s0 + $0xb8] sm:$0xff]
  %v53 = vld [vmem:[%s0 + $0xc0] sm:$0xff]
  %v54 = vld [vmem:[%s0 + $0xc8] sm:$0xff]
  %v55 = vld [vmem:[%s0 + $0xd0] sm:$0xff]
  %v56 = vld [vmem:[%s0 + $0xd8] sm:$0xff]
  %v57 = vld [vmem:[%s0 + $0xe0] sm:$0xff]
  %v58 = vld [vmem:[%s0 + $0xe8] sm:$0xff]
  %v59 = vld [vmem:[%s0 + $0xf0] sm:$0xff]
  %v60 = vld [vmem:[%s0 + $0xf8] sm:$0xff]
  %v61 = vld [vmem:[%s0 + $0x100] sm:$0xff]
  %v62 = vld [vmem:[%s0 + $0x108] sm:$0xff]
  %v63 = vld [vmem:[%s0 + $0x110] sm:$0xff]
  %v64 = vld [vmem:[%s0 + $0x118] sm:$0xff]
  %v65 = vld [vmem:[%s0 + $0x120] sm:$0xff]
  %v66 = vld [vmem:[%s0 + $0x128] sm:$0xff]
  %v67 = vld [vmem:[%s0 + $0x130] sm:$0xff]
  %v68 = vld [vmem:[%s0 + $0x138] sm:$0xff]
  %v69 = vld [vmem:[%s0 + $0x140] sm:$0xff]
  %v70 = vld [vmem:[%s0 + $0x148] sm:$0xff]
  %v71 = vld [vmem:[%s0 + $0x150] sm:$0xff]
  %v72 = vld [vmem:[%s0 + $0x158] sm:$0xff]
  %v73 = vld [vmem:[%s0 + $0x160] sm:$0xff]
  %v74 = vld [vmem:[%s0 + $0x168] sm:$0xff]
  %v75 = vld [vmem:[%s0 + $0x170] sm:$0xff]
  %v76 = vld [vmem:[%s0 + $0x178] sm:$0xff]
  %v77 = vld [vmem:[%s0 + $0x180] sm:$0xff]
  %v78 = vld [vmem:[%s0 + $0x188] sm:$0xff]
  %v79 = vld [vmem:[%s0 + $0x190] sm:$0xff]
  %v80 = vld [vmem:[%s0 + $0x198] sm:$0xff]
  %v81 = vld [vmem:[%s0 + $0x1a0] sm:$0xff]
  %v82 = vld [vmem:[%s0 + $0x1a8] sm:$0xff]
  %v83 = vld [vmem:[%s0 + $0x1b0] sm:$0xff]
  %v84 = vld [vmem:[%s0 + $0x1b8] sm:$0xff]
  %v85 = vld [vmem:[%s0 + $0x1c0] sm:$0xff]
  %v86 = vld [vmem:[%s0 + $0x1c8] sm:$0xff]
  %v87 = vld [vmem:[%s0 + $0x1d0] sm:$0xff]
  %v88 = vld [vmem:[%s0 + $0x1d8] sm:$0xff]
  %v89 = vld [vmem:[%s0 + $0x1e0] sm:$0xff]
  %v90 = vld [vmem:[%s0 + $0x1e8] sm:$0xff]
  %v91 = vld [vmem:[%s0 + $0x1f0] sm:$0xff]
  %v92 = vld [vmem:[%s0 + $0x1f8] sm:$0xff]
  %v93 = vlaneseq
  %v94 = vshrl.u32 %v93, 7
  %v95 = vsub.s32 0, %v94
  %v96 = vrot.slane %v23, %v95
  %vm97 = vcmask 588800
  %v99 = vsel %vm97, %v29, 0
  %v102 = vsel %vm97, %v30, 0
  %v105 = vsel %vm97, %v31, 0
  %v108 = vsel %vm97, %v32, 0
  %v111 = vsel %vm97, %v33, 0
  %v114 = vsel %vm97, %v34, 0
  %v117 = vsel %vm97, %v35, 0
  %v120 = vsel %vm97, %v36, 0
  %v123 = vsel %vm97, %v37, 0
  %v126 = vsel %vm97, %v38, 0
  %v129 = vsel %vm97, %v39, 0
  %v132 = vsel %vm97, %v40, 0
  %v135 = vsel %vm97, %v41, 0
  %v138 = vsel %vm97, %v42, 0
  %v141 = vsel %vm97, %v43, 0
  %v144 = vsel %vm97, %v44, 0
  %v147 = vsel %vm97, %v45, 0
  %v150 = vsel %vm97, %v46, 0
  %v153 = vsel %vm97, %v47, 0
  %v156 = vsel %vm97, %v48, 0
  %v159 = vsel %vm97, %v49, 0
  %v162 = vsel %vm97, %v50, 0
  %v165 = vsel %vm97, %v51, 0
  %v168 = vsel %vm97, %v52, 0
  %v171 = vsel %vm97, %v53, 0
  %v174 = vsel %vm97, %v54, 0
  %v177 = vsel %vm97, %v55, 0
  %v180 = vsel %vm97, %v56, 0
  %v183 = vsel %vm97, %v57, 0
  %v186 = vsel %vm97, %v58, 0
  %v189 = vsel %vm97, %v59, 0
  %v192 = vsel %vm97, %v60, 0
  %v195 = vsel %vm97, %v61, 0
  %v198 = vsel %vm97, %v62, 0
  %v201 = vsel %vm97, %v63, 0
  %v204 = vsel %vm97, %v64, 0
  %v207 = vsel %vm97, %v65, 0
  %v210 = vsel %vm97, %v66, 0
  %v213 = vsel %vm97, %v67, 0
  %v216 = vsel %vm97, %v68, 0
  %v219 = vsel %vm97, %v69, 0
  %v222 = vsel %vm97, %v70, 0
  %v225 = vsel %vm97, %v71, 0
  %v228 = vsel %vm97, %v72, 0
  %v231 = vsel %vm97, %v73, 0
  %v234 = vsel %vm97, %v74, 0
  %v237 = vsel %vm97, %v75, 0
  %v240 = vsel %vm97, %v76, 0
  %v243 = vsel %vm97, %v77, 0
  %v246 = vsel %vm97, %v78, 0
  %v249 = vsel %vm97, %v79, 0
  %v252 = vsel %vm97, %v80, 0
  %v255 = vsel %vm97, %v81, 0
  %v258 = vsel %vm97, %v82, 0
  %v261 = vsel %vm97, %v83, 0
  %v264 = vsel %vm97, %v84, 0
  %v267 = vsel %vm97, %v85, 0
  %v270 = vsel %vm97, %v86, 0
  %v273 = vsel %vm97, %v87, 0
  %v276 = vsel %vm97, %v88, 0
  %v279 = vsel %vm97, %v89, 0
  %v282 = vsel %vm97, %v90, 0
  %v285 = vsel %vm97, %v91, 0
  %v288 = vsel %vm97, %v92, 0
  %290 = vmatprep.subr.mxu0 0.0
  %291 = vmatpush1.msra.mxu0 %v14
  %292 = vmatprep.subr.mxu0 0.0
  %293 = vmatpush1.msra.mxu0 %v15
  %294 = vmatprep.subr.mxu0 0.0
  %295 = vmatpush1.msra.mxu0 %v16
  %296 = vmatprep.subr.mxu0 0.0
  %297 = vmatpush1.msra.mxu0 %v17
  %298 = vmatprep.subr.mxu0 0.0
  %299 = vmatpush1.msra.mxu0 %v18
  %300 = vmatprep.subr.mxu0 0.0
  %301 = vmatpush1.msra.mxu0 %v19
  %302 = vmatprep.subr.mxu0 0.0
  %303 = vmatpush1.msra.mxu0 %v20
  %304 = vmatprep.subr.mxu0 0.0
  %305 = vmatpush1.msra.mxu0 %v21
  %306 = vmatprep.subr.mxu0 0.0
  %307 = vmatpush1.msra.mxu0 %v22
  %308 = vmatprep.subr.mxu0 0.0
  %309 = vmatpush1.msra.mxu0 0.0
  %310 = vmatprep.subr.mxu0 0.0
  %311 = vmatpush1.msra.mxu0 0.0
  %312 = vmatprep.subr.mxu0 0.0
  %313 = vmatpush1.msra.mxu0 0.0
  %314 = vmatprep.subr.mxu0 0.0
  %315 = vmatpush1.msra.mxu0 0.0
  %316 = vmatprep.subr.mxu0 0.0
  %317 = vmatpush1.msra.mxu0 0.0
  %318 = vmatprep.subr.mxu0 0.0
  %319 = vmatpush1.msra.mxu0 0.0
  %320 = vmatprep.subr.mxu0 0.0
  %321 = vmatpush1.msra.mxu0 0.0
  %322 = vmatprep.subr.mxu0 0.0
  %323 = vmatpush1.msra.mxu0 0.0
  %324 = vmatprep.subr.mxu0 0.0
  %325 = vmatpush1.msra.mxu0 0.0
  %326 = vmatprep.subr.mxu0 0.0
  %327 = vmatpush1.msra.mxu0 0.0
  %328 = vmatprep.subr.mxu0 0.0
  %329 = vmatpush1.msra.mxu0 0.0
  %330 = vmatprep.subr.mxu0 0.0
  %331 = vmatpush1.msra.mxu0 0.0
  %332 = vmatprep.subr.mxu0 0.0
  %333 = vmatpush1.msra.mxu0 0.0
  %334 = vmatprep.subr.mxu0 0.0
  %335 = vmatpush1.msra.mxu0 0.0
  %336 = vmatprep.subr.mxu0 0.0
  %337 = vmatpush1.msra.mxu0 0.0
  %338 = vmatprep.subr.mxu0 0.0
  %339 = vmatpush1.msra.mxu0 0.0
  %340 = vmatprep.subr.mxu0 0.0
  %341 = vmatpush1.msra.mxu0 0.0
  %342 = vmatprep.subr.mxu0 0.0
  %343 = vmatpush1.msra.mxu0 0.0
  %344 = vmatprep.subr.mxu0 0.0
  %345 = vmatpush1.msra.mxu0 0.0
  %346 = vmatprep.subr.mxu0 0.0
  %347 = vmatpush1.msra.mxu0 0.0
  %348 = vmatprep.subr.mxu0 0.0
  %349 = vmatpush1.msra.mxu0 0.0
  %350 = vmatprep.subr.mxu0 0.0
  %351 = vmatpush1.msra.mxu0 0.0
  %352 = vmatprep.subr.mxu0 0.0
  %353 = vmatpush1.msra.mxu0 0.0
  %354 = vmatprep.mubr.f32.mxu0 0.0
  %355 = vmatmul.mubr.f32.gmra.mrb[0].mxu0 %v99
  %v356 = vpop.f32.mrb[0].mxu0
  %v357 = vadd.f32 %v96, %v356
  %v358 = vpop.f32.mrb[0].mxu0
  %359 = vmatprep.mubr.f32.mxu0 0.0
  %360 = vmatmul.mubr.f32.gmra.mrb[0].mxu0 %v102
  %v361 = vpop.f32.mrb[0].mxu0
  %v362 = vadd.f32 %v96, %v361
  %v363 = vpop.f32.mrb[0].mxu0
  %364 = vmatprep.mubr.f32.mxu0 0.0
  %365 = vmatmul.mubr.f32.gmra.mrb[0].mxu0 %v105
  %v366 = vpop.f32.mrb[0].mxu0
  %v367 = vadd.f32 %v96, %v366
  %v368 = vpop.f32.mrb[0].mxu0
  %369 = vmatprep.mubr.f32.mxu0 0.0
  %370 = vmatmul.mubr.f32.gmra.mrb[0].mxu0 %v108
  %v371 = vpop.f32.mrb[0].mxu0
  %v372 = vadd.f32 %v96, %v371
  %v373 = vpop.f32.mrb[0].mxu0
  %374 = vmatprep.mubr.f32.mxu0 0.0
  %375 = vmatmul.mubr.f32.gmra.mrb[0].mxu0 %v111
  %v376 = vpop.f32.mrb[0].mxu0
  %v377 = vadd.f32 %v96, %v376
  %v378 = vpop.f32.mrb[0].mxu0
  %379 = vmatprep.mubr.f32.mxu0 0.0
  %380 = vmatmul.mubr.f32.gmra.mrb[0].mxu0 %v114
  %v381 = vpop.f32.mrb[0].mxu0
  %v382 = vadd.f32 %v96, %v381
  %v383 = vpop.f32.mrb[0].mxu0
  %384 = vmatprep.mubr.f32.mxu0 0.0
  %385 = vmatmul.mubr.f32.gmra.mrb[0].mxu0 %v117
  %v386 = vpop.f32.mrb[0].mxu0
  %v387 = vadd.f32 %v96, %v386
  %v388 = vpop.f32.mrb[0].mxu0
  %389 = vmatprep.mubr.f32.mxu0 0.0
  %390 = vmatmul.mubr.f32.gmra.mrb[0].mxu0 %v120
  %v391 = vpop.f32.mrb[0].mxu0
  %v392 = vadd.f32 %v96, %v391
  %v393 = vpop.f32.mrb[0].mxu0
  %394 = vmatprep.mubr.f32.mxu0 0.0
  %395 = vmatmul.mubr.f32.gmra.mrb[0].mxu0 %v123
  %v396 = vpop.f32.mrb[0].mxu0
  %v397 = vadd.f32 %v96, %v396
  %v398 = vpop.f32.mrb[0].mxu0
  %399 = vmatprep.mubr.f32.mxu0 0.0
  %400 = vmatmul.mubr.f32.gmra.mrb[0].mxu0 %v126
  %v401 = vpop.f32.mrb[0].mxu0
  %v402 = vadd.f32 %v96, %v401
  %v403 = vpop.f32.mrb[0].mxu0
  %404 = vmatprep.mubr.f32.mxu0 0.0
  %405 = vmatmul.mubr.f32.gmra.mrb[0].mxu0 %v129
  %v406 = vpop.f32.mrb[0].mxu0
  %v407 = vadd.f32 %v96, %v406
  %v408 = vpop.f32.mrb[0].mxu0
  %409 = vmatprep.mubr.f32.mxu0 0.0
  %410 = vmatmul.mubr.f32.gmra.mrb[0].mxu0 %v132
  %v411 = vpop.f32.mrb[0].mxu0
  %v412 = vadd.f32 %v96, %v411
  %v413 = vpop.f32.mrb[0].mxu0
  %414 = vmatprep.mubr.f32.mxu0 0.0
  %415 = vmatmul.mubr.f32.gmra.mrb[0].mxu0 %v135
  %v416 = vpop.f32.mrb[0].mxu0
  %v417 = vadd.f32 %v96, %v416
  %v418 = vpop.f32.mrb[0].mxu0
  %419 = vmatprep.mubr.f32.mxu0 0.0
  %420 = vmatmul.mubr.f32.gmra.mrb[0].mxu0 %v138
  %v421 = vpop.f32.mrb[0].mxu0
  %v422 = vadd.f32 %v96, %v421
  %v423 = vpop.f32.mrb[0].mxu0
  %424 = vmatprep.mubr.f32.mxu0 0.0
  %425 = vmatmul.mubr.f32.gmra.mrb[0].mxu0 %v141
  %v426 = vpop.f32.mrb[0].mxu0
  %v427 = vadd.f32 %v96, %v426
  %v428 = vpop.f32.mrb[0].mxu0
  %429 = vmatprep.mubr.f32.mxu0 0.0
  %430 = vmatmul.mubr.f32.gmra.mrb[0].mxu0 %v144
  %v431 = vpop.f32.mrb[0].mxu0
  %v432 = vadd.f32 %v96, %v431
  %v433 = vpop.f32.mrb[0].mxu0
  %434 = vmatprep.mubr.f32.mxu0 0.0
  %435 = vmatmul.mubr.f32.gmra.mrb[0].mxu0 %v147
  %v436 = vpop.f32.mrb[0].mxu0
  %v437 = vadd.f32 %v96, %v436
  %v438 = vpop.f32.mrb[0].mxu0
  %439 = vmatprep.mubr.f32.mxu0 0.0
  %440 = vmatmul.mubr.f32.gmra.mrb[0].mxu0 %v150
  %v441 = vpop.f32.mrb[0].mxu0
  %v442 = vadd.f32 %v96, %v441
  %v443 = vpop.f32.mrb[0].mxu0
  %444 = vmatprep.mubr.f32.mxu0 0.0
  %445 = vmatmul.mubr.f32.gmra.mrb[0].mxu0 %v153
  %v446 = vpop.f32.mrb[0].mxu0
  %v447 = vadd.f32 %v96, %v446
  %v448 = vpop.f32.mrb[0].mxu0
  %449 = vmatprep.mubr.f32.mxu0 0.0
  %450 = vmatmul.mubr.f32.gmra.mrb[0].mxu0 %v156
  %v451 = vpop.f32.mrb[0].mxu0
  %v452 = vadd.f32 %v96, %v451
  %v453 = vpop.f32.mrb[0].mxu0
  %454 = vmatprep.mubr.f32.mxu0 0.0
  %455 = vmatmul.mubr.f32.gmra.mrb[0].mxu0 %v159
  %v456 = vpop.f32.mrb[0].mxu0
  %v457 = vadd.f32 %v96, %v456
  %v458 = vpop.f32.mrb[0].mxu0
  %459 = vmatprep.mubr.f32.mxu0 0.0
  %460 = vmatmul.mubr.f32.gmra.mrb[0].mxu0 %v162
  %v461 = vpop.f32.mrb[0].mxu0
  %v462 = vadd.f32 %v96, %v461
  %v463 = vpop.f32.mrb[0].mxu0
  %464 = vmatprep.mubr.f32.mxu0 0.0
  %465 = vmatmul.mubr.f32.gmra.mrb[0].mxu0 %v165
  %v466 = vpop.f32.mrb[0].mxu0
  %v467 = vadd.f32 %v96, %v466
  %v468 = vpop.f32.mrb[0].mxu0
  %469 = vmatprep.mubr.f32.mxu0 0.0
  %470 = vmatmul.mubr.f32.gmra.mrb[0].mxu0 %v168
  %v471 = vpop.f32.mrb[0].mxu0
  %v472 = vadd.f32 %v96, %v471
  %v473 = vpop.f32.mrb[0].mxu0
  %474 = vmatprep.mubr.f32.mxu0 0.0
  %475 = vmatmul.mubr.f32.gmra.mrb[0].mxu0 %v171
  %v476 = vpop.f32.mrb[0].mxu0
  %v477 = vadd.f32 %v96, %v476
  %v478 = vpop.f32.mrb[0].mxu0
  %479 = vmatprep.mubr.f32.mxu0 0.0
  %480 = vmatmul.mubr.f32.gmra.mrb[0].mxu0 %v174
  %v481 = vpop.f32.mrb[0].mxu0
  %v482 = vadd.f32 %v96, %v481
  %v483 = vpop.f32.mrb[0].mxu0
  %484 = vmatprep.mubr.f32.mxu0 0.0
  %485 = vmatmul.mubr.f32.gmra.mrb[0].mxu0 %v177
  %v486 = vpop.f32.mrb[0].mxu0
  %v487 = vadd.f32 %v96, %v486
  %v488 = vpop.f32.mrb[0].mxu0
  %489 = vmatprep.mubr.f32.mxu0 0.0
  %490 = vmatmul.mubr.f32.gmra.mrb[0].mxu0 %v180
  %v491 = vpop.f32.mrb[0].mxu0
  %v492 = vadd.f32 %v96, %v491
  %v493 = vpop.f32.mrb[0].mxu0
  %494 = vmatprep.mubr.f32.mxu0 0.0
  %495 = vmatmul.mubr.f32.gmra.mrb[0].mxu0 %v183
  %v496 = vpop.f32.mrb[0].mxu0
  %v497 = vadd.f32 %v96, %v496
  %v498 = vpop.f32.mrb[0].mxu0
  %499 = vmatprep.mubr.f32.mxu0 0.0
  %500 = vmatmul.mubr.f32.gmra.mrb[0].mxu0 %v186
  %v501 = vpop.f32.mrb[0].mxu0
  %v502 = vadd.f32 %v96, %v501
  %v503 = vpop.f32.mrb[0].mxu0
  %504 = vmatprep.mubr.f32.mxu0 0.0
  %505 = vmatmul.mubr.f32.gmra.mrb[0].mxu0 %v189
  %v506 = vpop.f32.mrb[0].mxu0
  %v507 = vadd.f32 %v96, %v506
  %v508 = vpop.f32.mrb[0].mxu0
  %509 = vmatprep.mubr.f32.mxu0 0.0
  %510 = vmatmul.mubr.f32.gmra.mrb[0].mxu0 %v192
  %v511 = vpop.f32.mrb[0].mxu0
  %v512 = vadd.f32 %v96, %v511
  %v513 = vpop.f32.mrb[0].mxu0
  %514 = vmatprep.mubr.f32.mxu0 0.0
  %515 = vmatmul.mubr.f32.gmra.mrb[0].mxu0 %v195
  %v516 = vpop.f32.mrb[0].mxu0
  %v517 = vadd.f32 %v96, %v516
  %v518 = vpop.f32.mrb[0].mxu0
  %519 = vmatprep.mubr.f32.mxu0 0.0
  %520 = vmatmul.mubr.f32.gmra.mrb[0].mxu0 %v198
  %v521 = vpop.f32.mrb[0].mxu0
  %v522 = vadd.f32 %v96, %v521
  %v523 = vpop.f32.mrb[0].mxu0
  %524 = vmatprep.mubr.f32.mxu0 0.0
  %525 = vmatmul.mubr.f32.gmra.mrb[0].mxu0 %v201
  %v526 = vpop.f32.mrb[0].mxu0
  %v527 = vadd.f32 %v96, %v526
  %v528 = vpop.f32.mrb[0].mxu0
  %529 = vmatprep.mubr.f32.mxu0 0.0
  %530 = vmatmul.mubr.f32.gmra.mrb[0].mxu0 %v204
  %v531 = vpop.f32.mrb[0].mxu0
  %v532 = vadd.f32 %v96, %v531
  %v533 = vpop.f32.mrb[0].mxu0
  %534 = vmatprep.mubr.f32.mxu0 0.0
  %535 = vmatmul.mubr.f32.gmra.mrb[0].mxu0 %v207
  %v536 = vpop.f32.mrb[0].mxu0
  %v537 = vadd.f32 %v96, %v536
  %v538 = vpop.f32.mrb[0].mxu0
  %539 = vmatprep.mubr.f32.mxu0 0.0
  %540 = vmatmul.mubr.f32.gmra.mrb[0].mxu0 %v210
  %v541 = vpop.f32.mrb[0].mxu0
  %v542 = vadd.f32 %v96, %v541
  %v543 = vpop.f32.mrb[0].mxu0
  %544 = vmatprep.mubr.f32.mxu0 0.0
  %545 = vmatmul.mubr.f32.gmra.mrb[0].mxu0 %v213
  %v546 = vpop.f32.mrb[0].mxu0
  %v547 = vadd.f32 %v96, %v546
  %v548 = vpop.f32.mrb[0].mxu0
  %549 = vmatprep.mubr.f32.mxu0 0.0
  %550 = vmatmul.mubr.f32.gmra.mrb[0].mxu0 %v216
  %v551 = vpop.f32.mrb[0].mxu0
  %v552 = vadd.f32 %v96, %v551
  %v553 = vpop.f32.mrb[0].mxu0
  %554 = vmatprep.mubr.f32.mxu0 0.0
  %555 = vmatmul.mubr.f32.gmra.mrb[0].mxu0 %v219
  %v556 = vpop.f32.mrb[0].mxu0
  %v557 = vadd.f32 %v96, %v556
  %v558 = vpop.f32.mrb[0].mxu0
  %559 = vmatprep.mubr.f32.mxu0 0.0
  %560 = vmatmul.mubr.f32.gmra.mrb[0].mxu0 %v222
  %v561 = vpop.f32.mrb[0].mxu0
  %v562 = vadd.f32 %v96, %v561
  %v563 = vpop.f32.mrb[0].mxu0
  %564 = vmatprep.mubr.f32.mxu0 0.0
  %565 = vmatmul.mubr.f32.gmra.mrb[0].mxu0 %v225
  %v566 = vpop.f32.mrb[0].mxu0
  %v567 = vadd.f32 %v96, %v566
  %v568 = vpop.f32.mrb[0].mxu0
  %569 = vmatprep.mubr.f32.mxu0 0.0
  %570 = vmatmul.mubr.f32.gmra.mrb[0].mxu0 %v228
  %v571 = vpop.f32.mrb[0].mxu0
  %v572 = vadd.f32 %v96, %v571
  %v573 = vpop.f32.mrb[0].mxu0
  %574 = vmatprep.mubr.f32.mxu0 0.0
  %575 = vmatmul.mubr.f32.gmra.mrb[0].mxu0 %v231
  %v576 = vpop.f32.mrb[0].mxu0
  %v577 = vadd.f32 %v96, %v576
  %v578 = vpop.f32.mrb[0].mxu0
  %579 = vmatprep.mubr.f32.mxu0 0.0
  %580 = vmatmul.mubr.f32.gmra.mrb[0].mxu0 %v234
  %v581 = vpop.f32.mrb[0].mxu0
  %v582 = vadd.f32 %v96, %v581
  %v583 = vpop.f32.mrb[0].mxu0
  %584 = vmatprep.mubr.f32.mxu0 0.0
  %585 = vmatmul.mubr.f32.gmra.mrb[0].mxu0 %v237
  %v586 = vpop.f32.mrb[0].mxu0
  %v587 = vadd.f32 %v96, %v586
  %v588 = vpop.f32.mrb[0].mxu0
  %589 = vmatprep.mubr.f32.mxu0 0.0
  %590 = vmatmul.mubr.f32.gmra.mrb[0].mxu0 %v240
  %v591 = vpop.f32.mrb[0].mxu0
  %v592 = vadd.f32 %v96, %v591
  %v593 = vpop.f32.mrb[0].mxu0
  %594 = vmatprep.mubr.f32.mxu0 0.0
  %595 = vmatmul.mubr.f32.gmra.mrb[0].mxu0 %v243
  %v596 = vpop.f32.mrb[0].mxu0
  %v597 = vadd.f32 %v96, %v596
  %v598 = vpop.f32.mrb[0].mxu0
  %599 = vmatprep.mubr.f32.mxu0 0.0
  %600 = vmatmul.mubr.f32.gmra.mrb[0].mxu0 %v246
  %v601 = vpop.f32.mrb[0].mxu0
  %v602 = vadd.f32 %v96, %v601
  %v603 = vpop.f32.mrb[0].mxu0
  %604 = vmatprep.mubr.f32.mxu0 0.0
  %605 = vmatmul.mubr.f32.gmra.mrb[0].mxu0 %v249
  %v606 = vpop.f32.mrb[0].mxu0
  %v607 = vadd.f32 %v96, %v606
  %v608 = vpop.f32.mrb[0].mxu0
  %609 = vmatprep.mubr.f32.mxu0 0.0
  %610 = vmatmul.mubr.f32.gmra.mrb[0].mxu0 %v252
  %v611 = vpop.f32.mrb[0].mxu0
  %v612 = vadd.f32 %v96, %v611
  %v613 = vpop.f32.mrb[0].mxu0
  %614 = vmatprep.mubr.f32.mxu0 0.0
  %615 = vmatmul.mubr.f32.gmra.mrb[0].mxu0 %v255
  %v616 = vpop.f32.mrb[0].mxu0
  %v617 = vadd.f32 %v96, %v616
  %v618 = vpop.f32.mrb[0].mxu0
  %619 = vmatprep.mubr.f32.mxu0 0.0
  %620 = vmatmul.mubr.f32.gmra.mrb[0].mxu0 %v258
  %v621 = vpop.f32.mrb[0].mxu0
  %v622 = vadd.f32 %v96, %v621
  %v623 = vpop.f32.mrb[0].mxu0
  %624 = vmatprep.mubr.f32.mxu0 0.0
  %625 = vmatmul.mubr.f32.gmra.mrb[0].mxu0 %v261
  %v626 = vpop.f32.mrb[0].mxu0
  %v627 = vadd.f32 %v96, %v626
  %v628 = vpop.f32.mrb[0].mxu0
  %629 = vmatprep.mubr.f32.mxu0 0.0
  %630 = vmatmul.mubr.f32.gmra.mrb[0].mxu0 %v264
  %v631 = vpop.f32.mrb[0].mxu0
  %v632 = vadd.f32 %v96, %v631
  %v633 = vpop.f32.mrb[0].mxu0
  %634 = vmatprep.mubr.f32.mxu0 0.0
  %635 = vmatmul.mubr.f32.gmra.mrb[0].mxu0 %v267
  %v636 = vpop.f32.mrb[0].mxu0
  %v637 = vadd.f32 %v96, %v636
  %v638 = vpop.f32.mrb[0].mxu0
  %639 = vmatprep.mubr.f32.mxu0 0.0
  %640 = vmatmul.mubr.f32.gmra.mrb[0].mxu0 %v270
  %v641 = vpop.f32.mrb[0].mxu0
  %v642 = vadd.f32 %v96, %v641
  %v643 = vpop.f32.mrb[0].mxu0
  %644 = vmatprep.mubr.f32.mxu0 0.0
  %645 = vmatmul.mubr.f32.gmra.mrb[0].mxu0 %v273
  %v646 = vpop.f32.mrb[0].mxu0
  %v647 = vadd.f32 %v96, %v646
  %v648 = vpop.f32.mrb[0].mxu0
  %649 = vmatprep.mubr.f32.mxu0 0.0
  %650 = vmatmul.mubr.f32.gmra.mrb[0].mxu0 %v276
  %v651 = vpop.f32.mrb[0].mxu0
  %v652 = vadd.f32 %v96, %v651
  %v653 = vpop.f32.mrb[0].mxu0
  %654 = vmatprep.mubr.f32.mxu0 0.0
  %655 = vmatmul.mubr.f32.gmra.mrb[0].mxu0 %v279
  %v656 = vpop.f32.mrb[0].mxu0
  %v657 = vadd.f32 %v96, %v656
  %v658 = vpop.f32.mrb[0].mxu0
  %659 = vmatprep.mubr.f32.mxu0 0.0
  %660 = vmatmul.mubr.f32.gmra.mrb[0].mxu0 %v282
  %v661 = vpop.f32.mrb[0].mxu0
  %v662 = vadd.f32 %v96, %v661
  %v663 = vpop.f32.mrb[0].mxu0
  %664 = vmatprep.mubr.f32.mxu0 0.0
  %665 = vmatmul.mubr.f32.gmra.mrb[0].mxu0 %v285
  %v666 = vpop.f32.mrb[0].mxu0
  %v667 = vadd.f32 %v96, %v666
  %v668 = vpop.f32.mrb[0].mxu0
  %669 = vmatprep.mubr.f32.mxu0 0.0
  %670 = vmatmul.mubr.f32.gmra.mrb[0].mxu0 %v288
  %v671 = vpop.f32.mrb[0].mxu0
  %v672 = vadd.f32 %v96, %v671
  %v673 = vpop.f32.mrb[0].mxu0
  %674 = vdwg.mxu0
  %v675 = vmax.f32 %v357, 0.0
  %v676 = vmax.f32 %v362, 0.0
  %v677 = vmax.f32 %v367, 0.0
  %v678 = vmax.f32 %v372, 0.0
  %v679 = vmax.f32 %v377, 0.0
  %v680 = vmax.f32 %v382, 0.0
  %v681 = vmax.f32 %v387, 0.0
  %v682 = vmax.f32 %v392, 0.0
  %v683 = vmax.f32 %v397, 0.0
  %v684 = vmax.f32 %v402, 0.0
  %v685 = vmax.f32 %v407, 0.0
  %v686 = vmax.f32 %v412, 0.0
  %v687 = vmax.f32 %v417, 0.0
  %v688 = vmax.f32 %v422, 0.0
  %v689 = vmax.f32 %v427, 0.0
  %v690 = vmax.f32 %v432, 0.0
  %v691 = vmax.f32 %v437, 0.0
  %v692 = vmax.f32 %v442, 0.0
  %v693 = vmax.f32 %v447, 0.0
  %v694 = vmax.f32 %v452, 0.0
  %v695 = vmax.f32 %v457, 0.0
  %v696 = vmax.f32 %v462, 0.0
  %v697 = vmax.f32 %v467, 0.0
  %v698 = vmax.f32 %v472, 0.0
  %v699 = vmax.f32 %v477, 0.0
  %v700 = vmax.f32 %v482, 0.0
  %v701 = vmax.f32 %v487, 0.0
  %v702 = vmax.f32 %v492, 0.0
  %v703 = vmax.f32 %v497, 0.0
  %v704 = vmax.f32 %v502, 0.0
  %v705 = vmax.f32 %v507, 0.0
  %v706 = vmax.f32 %v512, 0.0
  %v707 = vmax.f32 %v517, 0.0
  %v708 = vmax.f32 %v522, 0.0
  %v709 = vmax.f32 %v527, 0.0
  %v710 = vmax.f32 %v532, 0.0
  %v711 = vmax.f32 %v537, 0.0
  %v712 = vmax.f32 %v542, 0.0
  %v713 = vmax.f32 %v547, 0.0
  %v714 = vmax.f32 %v552, 0.0
  %v715 = vmax.f32 %v557, 0.0
  %v716 = vmax.f32 %v562, 0.0
  %v717 = vmax.f32 %v567, 0.0
  %v718 = vmax.f32 %v572, 0.0
  %v719 = vmax.f32 %v577, 0.0
  %v720 = vmax.f32 %v582, 0.0
  %v721 = vmax.f32 %v587, 0.0
  %v722 = vmax.f32 %v592, 0.0
  %v723 = vmax.f32 %v597, 0.0
  %v724 = vmax.f32 %v602, 0.0
  %v725 = vmax.f32 %v607, 0.0
  %v726 = vmax.f32 %v612, 0.0
  %v727 = vmax.f32 %v617, 0.0
  %v728 = vmax.f32 %v622, 0.0
  %v729 = vmax.f32 %v627, 0.0
  %v730 = vmax.f32 %v632, 0.0
  %v731 = vmax.f32 %v637, 0.0
  %v732 = vmax.f32 %v642, 0.0
  %v733 = vmax.f32 %v647, 0.0
  %v734 = vmax.f32 %v652, 0.0
  %v735 = vmax.f32 %v657, 0.0
  %v736 = vmax.f32 %v662, 0.0
  %v737 = vmax.f32 %v667, 0.0
  %v738 = vmax.f32 %v672, 0.0
  %s739 = scalar_lea.vmem %s2, 2048
  %v740 = vld [vmem:[%s739] sm:$0xff]
  %v741 = vld [vmem:[%s739 + $0x8] sm:$0xff]
  %v742 = vld [vmem:[%s739 + $0x10] sm:$0xff]
  %v743 = vld [vmem:[%s739 + $0x18] sm:$0xff]
  %v744 = vld [vmem:[%s739 + $0x20] sm:$0xff]
  %v745 = vld [vmem:[%s739 + $0x28] sm:$0xff]
  %v746 = vld [vmem:[%s739 + $0x30] sm:$0xff]
  %v747 = vld [vmem:[%s739 + $0x38] sm:$0xff]
  %v748 = vld [vmem:[%s739 + $0x40] sm:$0xff]
  %v749 = vld [vmem:[%s739 + $0x48] sm:$0xff]
  %v750 = vld [vmem:[%s739 + $0x50] sm:$0xff]
  %v751 = vld [vmem:[%s739 + $0x58] sm:$0xff]
  %v752 = vld [vmem:[%s739 + $0x60] sm:$0xff]
  %v753 = vld [vmem:[%s739 + $0x68] sm:$0xff]
  %v754 = vld [vmem:[%s739 + $0x70] sm:$0xff]
  %v755 = vld [vmem:[%s739 + $0x78] sm:$0xff]
  %v756 = vld [vmem:[%s739 + $0x80] sm:$0xff]
  %v757 = vld [vmem:[%s739 + $0x88] sm:$0xff]
  %v758 = vld [vmem:[%s739 + $0x90] sm:$0xff]
  %v759 = vld [vmem:[%s739 + $0x98] sm:$0xff]
  %v760 = vld [vmem:[%s739 + $0xa0] sm:$0xff]
  %v761 = vld [vmem:[%s739 + $0xa8] sm:$0xff]
  %v762 = vld [vmem:[%s739 + $0xb0] sm:$0xff]
  %v763 = vld [vmem:[%s739 + $0xb8] sm:$0xff]
  %v764 = vld [vmem:[%s739 + $0xc0] sm:$0xff]
  %v765 = vld [vmem:[%s739 + $0xc8] sm:$0xff]
  %v766 = vld [vmem:[%s739 + $0xd0] sm:$0xff]
  %v767 = vld [vmem:[%s739 + $0xd8] sm:$0xff]
  %v768 = vld [vmem:[%s739 + $0xe0] sm:$0xff]
  %v769 = vld [vmem:[%s739 + $0xe8] sm:$0xff]
  %v770 = vld [vmem:[%s739 + $0xf0] sm:$0xff]
  %v771 = vld [vmem:[%s739 + $0xf8] sm:$0xff]
  %v772 = vld [vmem:[%s739 + $0x100] sm:$0xff]
  %v773 = vld [vmem:[%s739 + $0x108] sm:$0xff]
  %v774 = vld [vmem:[%s739 + $0x110] sm:$0xff]
  %v775 = vld [vmem:[%s739 + $0x118] sm:$0xff]
  %v776 = vld [vmem:[%s739 + $0x120] sm:$0xff]
  %v777 = vld [vmem:[%s739 + $0x128] sm:$0xff]
  %v778 = vld [vmem:[%s739 + $0x130] sm:$0xff]
  %v779 = vld [vmem:[%s739 + $0x138] sm:$0xff]
  %v780 = vld [vmem:[%s739 + $0x140] sm:$0xff]
  %v781 = vld [vmem:[%s739 + $0x148] sm:$0xff]
  %v782 = vld [vmem:[%s739 + $0x150] sm:$0xff]
  %v783 = vld [vmem:[%s739 + $0x158] sm:$0xff]
  %v784 = vld [vmem:[%s739 + $0x160] sm:$0xff]
  %v785 = vld [vmem:[%s739 + $0x168] sm:$0xff]
  %v786 = vld [vmem:[%s739 + $0x170] sm:$0xff]
  %v787 = vld [vmem:[%s739 + $0x178] sm:$0xff]
  %v788 = vld [vmem:[%s739 + $0x180] sm:$0xff]
  %v789 = vld [vmem:[%s739 + $0x188] sm:$0xff]
  %v790 = vld [vmem:[%s739 + $0x190] sm:$0xff]
  %v791 = vld [vmem:[%s739 + $0x198] sm:$0xff]
  %v792 = vld [vmem:[%s739 + $0x1a0] sm:$0xff]
  %v793 = vld [vmem:[%s739 + $0x1a8] sm:$0xff]
  %v794 = vld [vmem:[%s739 + $0x1b0] sm:$0xff]
  %v795 = vld [vmem:[%s739 + $0x1b8] sm:$0xff]
  %v796 = vld [vmem:[%s739 + $0x1c0] sm:$0xff]
  %v797 = vld [vmem:[%s739 + $0x1c8] sm:$0xff]
  %v798 = vld [vmem:[%s739 + $0x1d0] sm:$0xff]
  %v799 = vld [vmem:[%s739 + $0x1d8] sm:$0xff]
  %v800 = vld [vmem:[%s739 + $0x1e0] sm:$0xff]
  %v801 = vld [vmem:[%s739 + $0x1e8] sm:$0xff]
  %v802 = vld [vmem:[%s739 + $0x1f0] sm:$0xff]
  %v803 = vld [vmem:[%s739 + $0x1f8] sm:$0xff]
  %v804 = vmul.f32 %v675, %v740
  %v805 = vmul.f32 %v676, %v741
  %v806 = vmul.f32 %v677, %v742
  %v807 = vmul.f32 %v678, %v743
  %v808 = vmul.f32 %v679, %v744
  %v809 = vmul.f32 %v680, %v745
  %v810 = vmul.f32 %v681, %v746
  %v811 = vmul.f32 %v682, %v747
  %v812 = vmul.f32 %v683, %v748
  %v813 = vmul.f32 %v684, %v749
  %v814 = vmul.f32 %v685, %v750
  %v815 = vmul.f32 %v686, %v751
  %v816 = vmul.f32 %v687, %v752
  %v817 = vmul.f32 %v688, %v753
  %v818 = vmul.f32 %v689, %v754
  %v819 = vmul.f32 %v690, %v755
  %v820 = vmul.f32 %v691, %v756
  %v821 = vmul.f32 %v692, %v757
  %v822 = vmul.f32 %v693, %v758
  %v823 = vmul.f32 %v694, %v759
  %v824 = vmul.f32 %v695, %v760
  %v825 = vmul.f32 %v696, %v761
  %v826 = vmul.f32 %v697, %v762
  %v827 = vmul.f32 %v698, %v763
  %v828 = vmul.f32 %v699, %v764
  %v829 = vmul.f32 %v700, %v765
  %v830 = vmul.f32 %v701, %v766
  %v831 = vmul.f32 %v702, %v767
  %v832 = vmul.f32 %v703, %v768
  %v833 = vmul.f32 %v704, %v769
  %v834 = vmul.f32 %v705, %v770
  %v835 = vmul.f32 %v706, %v771
  %v836 = vmul.f32 %v707, %v772
  %v837 = vmul.f32 %v708, %v773
  %v838 = vmul.f32 %v709, %v774
  %v839 = vmul.f32 %v710, %v775
  %v840 = vmul.f32 %v711, %v776
  %v841 = vmul.f32 %v712, %v777
  %v842 = vmul.f32 %v713, %v778
  %v843 = vmul.f32 %v714, %v779
  %v844 = vmul.f32 %v715, %v780
  %v845 = vmul.f32 %v716, %v781
  %v846 = vmul.f32 %v717, %v782
  %v847 = vmul.f32 %v718, %v783
  %v848 = vmul.f32 %v719, %v784
  %v849 = vmul.f32 %v720, %v785
  %v850 = vmul.f32 %v721, %v786
  %v851 = vmul.f32 %v722, %v787
  %v852 = vmul.f32 %v723, %v788
  %v853 = vmul.f32 %v724, %v789
  %v854 = vmul.f32 %v725, %v790
  %v855 = vmul.f32 %v726, %v791
  %v856 = vmul.f32 %v727, %v792
  %v857 = vmul.f32 %v728, %v793
  %v858 = vmul.f32 %v729, %v794
  %v859 = vmul.f32 %v730, %v795
  %v860 = vmul.f32 %v731, %v796
  %v861 = vmul.f32 %v732, %v797
  %v862 = vmul.f32 %v733, %v798
  %v863 = vmul.f32 %v734, %v799
  %v864 = vmul.f32 %v735, %v800
  %v865 = vmul.f32 %v736, %v801
  %v866 = vmul.f32 %v737, %v802
  %v867 = vmul.f32 %v738, %v803
  %vm871 = vcmask 1040384
  %v872 = vrot.slane %v736, 7
  %v873 = vrot.slane %v737, 7
  %v874 = vsel %vm871, %v872, %v873
  %v875 = vrot.slane %v738, 7
  %v876 = vsel %vm871, %v873, %v875
  %v941 = vrot.slane %v675, 7
  %v942 = vrot.slane %v676, 7
  %v943 = vsel %vm871, %v941, %v942
  %v944 = vrot.slane %v677, 7
  %v945 = vsel %vm871, %v942, %v944
  %v946 = vrot.slane %v678, 7
  %v947 = vsel %vm871, %v944, %v946
  %v948 = vrot.slane %v679, 7
  %v949 = vsel %vm871, %v946, %v948
  %v950 = vrot.slane %v680, 7
  %v951 = vsel %vm871, %v948, %v950
  %v952 = vrot.slane %v681, 7
  %v953 = vsel %vm871, %v950, %v952
  %v954 = vrot.slane %v682, 7
  %v955 = vsel %vm871, %v952, %v954
  %v956 = vrot.slane %v683, 7
  %v957 = vsel %vm871, %v954, %v956
  %v958 = vrot.slane %v684, 7
  %v959 = vsel %vm871, %v956, %v958
  %v960 = vrot.slane %v685, 7
  %v961 = vsel %vm871, %v958, %v960
  %v962 = vrot.slane %v686, 7
  %v963 = vsel %vm871, %v960, %v962
  %v964 = vrot.slane %v687, 7
  %v965 = vsel %vm871, %v962, %v964
  %v966 = vrot.slane %v688, 7
  %v967 = vsel %vm871, %v964, %v966
  %v968 = vrot.slane %v689, 7
  %v969 = vsel %vm871, %v966, %v968
  %v970 = vrot.slane %v690, 7
  %v971 = vsel %vm871, %v968, %v970
  %v972 = vrot.slane %v691, 7
  %v973 = vsel %vm871, %v970, %v972
  %v974 = vrot.slane %v692, 7
  %v975 = vsel %vm871, %v972, %v974
  %v976 = vrot.slane %v693, 7
  %v977 = vsel %vm871, %v974, %v976
  %v978 = vrot.slane %v694, 7
  %v979 = vsel %vm871, %v976, %v978
  %v980 = vrot.slane %v695, 7
  %v981 = vsel %vm871, %v978, %v980
  %v982 = vrot.slane %v696, 7
  %v983 = vsel %vm871, %v980, %v982
  %v984 = vrot.slane %v697, 7
  %v985 = vsel %vm871, %v982, %v984
  %v986 = vrot.slane %v698, 7
  %v987 = vsel %vm871, %v984, %v986
  %v988 = vrot.slane %v699, 7
  %v989 = vsel %vm871, %v986, %v988
  %v990 = vrot.slane %v700, 7
  %v991 = vsel %vm871, %v988, %v990
  %v992 = vrot.slane %v701, 7
  %v993 = vsel %vm871, %v990, %v992
  %v994 = vrot.slane %v702, 7
  %v995 = vsel %vm871, %v992, %v994
  %v996 = vrot.slane %v703, 7
  %v997 = vsel %vm871, %v994, %v996
  %v998 = vrot.slane %v704, 7
  %v999 = vsel %vm871, %v996, %v998
  %v1000 = vrot.slane %v705, 7
  %v1001 = vsel %vm871, %v998, %v1000
  %v1002 = vrot.slane %v706, 7
  %v1003 = vsel %vm871, %v1000, %v1002
  %v1004 = vrot.slane %v707, 7
  %v1005 = vsel %vm871, %v1002, %v1004
  %v1006 = vrot.slane %v708, 7
  %v1007 = vsel %vm871, %v1004, %v1006
  %v1008 = vrot.slane %v709, 7
  %v1009 = vsel %vm871, %v1006, %v1008
  %v1010 = vrot.slane %v710, 7
  %v1011 = vsel %vm871, %v1008, %v1010
  %v1012 = vrot.slane %v711, 7
  %v1013 = vsel %vm871, %v1010, %v1012
  %v1014 = vrot.slane %v712, 7
  %v1015 = vsel %vm871, %v1012, %v1014
  %v1016 = vrot.slane %v713, 7
  %v1017 = vsel %vm871, %v1014, %v1016
  %v1018 = vrot.slane %v714, 7
  %v1019 = vsel %vm871, %v1016, %v1018
  %v1020 = vrot.slane %v715, 7
  %v1021 = vsel %vm871, %v1018, %v1020
  %v1022 = vrot.slane %v716, 7
  %v1023 = vsel %vm871, %v1020, %v1022
  %v1024 = vrot.slane %v717, 7
  %v1025 = vsel %vm871, %v1022, %v1024
  %v1026 = vrot.slane %v718, 7
  %v1027 = vsel %vm871, %v1024, %v1026
  %v1028 = vrot.slane %v719, 7
  %v1029 = vsel %vm871, %v1026, %v1028
  %v1030 = vrot.slane %v720, 7
  %v1031 = vsel %vm871, %v1028, %v1030
  %v1032 = vrot.slane %v721, 7
  %v1033 = vsel %vm871, %v1030, %v1032
  %v1034 = vrot.slane %v722, 7
  %v1035 = vsel %vm871, %v1032, %v1034
  %v1036 = vrot.slane %v723, 7
  %v1037 = vsel %vm871, %v1034, %v1036
  %v1038 = vrot.slane %v724, 7
  %v1039 = vsel %vm871, %v1036, %v1038
  %v1040 = vrot.slane %v725, 7
  %v1041 = vsel %vm871, %v1038, %v1040
  %v1042 = vrot.slane %v726, 7
  %v1043 = vsel %vm871, %v1040, %v1042
  %v1044 = vrot.slane %v727, 7
  %v1045 = vsel %vm871, %v1042, %v1044
  %v1046 = vrot.slane %v728, 7
  %v1047 = vsel %vm871, %v1044, %v1046
  %v1048 = vrot.slane %v729, 7
  %v1049 = vsel %vm871, %v1046, %v1048
  %v1050 = vrot.slane %v730, 7
  %v1051 = vsel %vm871, %v1048, %v1050
  %v1052 = vrot.slane %v731, 7
  %v1053 = vsel %vm871, %v1050, %v1052
  %v1054 = vrot.slane %v732, 7
  %v1055 = vsel %vm871, %v1052, %v1054
  %v1056 = vrot.slane %v733, 7
  %v1057 = vsel %vm871, %v1054, %v1056
  %v1058 = vrot.slane %v734, 7
  %v1059 = vsel %vm871, %v1056, %v1058
  %v1060 = vrot.slane %v735, 7
  %v1061 = vsel %vm871, %v1058, %v1060
  %v1062 = vsel %vm871, %v1060, %v872
  %v1125 = vsel %vm871, %v875, %v941
  %v1126 = vld [vmem:[%s2] sm:$0xff]
  %v1127 = vld [vmem:[%s2 + $0x8] sm:$0xff]
  %v1128 = vld [vmem:[%s2 + $0x10] sm:$0xff]
  %v1129 = vld [vmem:[%s2 + $0x18] sm:$0xff]
  %v1130 = vld [vmem:[%s2 + $0x20] sm:$0xff]
  %v1131 = vld [vmem:[%s2 + $0x28] sm:$0xff]
  %v1132 = vld [vmem:[%s2 + $0x30] sm:$0xff]
  %v1133 = vld [vmem:[%s2 + $0x38] sm:$0xff]
  %v1134 = vld [vmem:[%s2 + $0x40] sm:$0xff]
  %v1135 = vld [vmem:[%s2 + $0x48] sm:$0xff]
  %v1136 = vld [vmem:[%s2 + $0x50] sm:$0xff]
  %v1137 = vld [vmem:[%s2 + $0x58] sm:$0xff]
  %v1138 = vld [vmem:[%s2 + $0x60] sm:$0xff]
  %v1139 = vld [vmem:[%s2 + $0x68] sm:$0xff]
  %v1140 = vld [vmem:[%s2 + $0x70] sm:$0xff]
  %v1141 = vld [vmem:[%s2 + $0x78] sm:$0xff]
  %v1142 = vld [vmem:[%s2 + $0x80] sm:$0xff]
  %v1143 = vld [vmem:[%s2 + $0x88] sm:$0xff]
  %v1144 = vld [vmem:[%s2 + $0x90] sm:$0xff]
  %v1145 = vld [vmem:[%s2 + $0x98] sm:$0xff]
  %v1146 = vld [vmem:[%s2 + $0xa0] sm:$0xff]
  %v1147 = vld [vmem:[%s2 + $0xa8] sm:$0xff]
  %v1148 = vld [vmem:[%s2 + $0xb0] sm:$0xff]
  %v1149 = vld [vmem:[%s2 + $0xb8] sm:$0xff]
  %v1150 = vld [vmem:[%s2 + $0xc0] sm:$0xff]
  %v1151 = vld [vmem:[%s2 + $0xc8] sm:$0xff]
  %v1152 = vld [vmem:[%s2 + $0xd0] sm:$0xff]
  %v1153 = vld [vmem:[%s2 + $0xd8] sm:$0xff]
  %v1154 = vld [vmem:[%s2 + $0xe0] sm:$0xff]
  %v1155 = vld [vmem:[%s2 + $0xe8] sm:$0xff]
  %v1156 = vld [vmem:[%s2 + $0xf0] sm:$0xff]
  %v1157 = vld [vmem:[%s2 + $0xf8] sm:$0xff]
  %v1158 = vld [vmem:[%s2 + $0x100] sm:$0xff]
  %v1159 = vld [vmem:[%s2 + $0x108] sm:$0xff]
  %v1160 = vld [vmem:[%s2 + $0x110] sm:$0xff]
  %v1161 = vld [vmem:[%s2 + $0x118] sm:$0xff]
  %v1162 = vld [vmem:[%s2 + $0x120] sm:$0xff]
  %v1163 = vld [vmem:[%s2 + $0x128] sm:$0xff]
  %v1164 = vld [vmem:[%s2 + $0x130] sm:$0xff]
  %v1165 = vld [vmem:[%s2 + $0x138] sm:$0xff]
  %v1166 = vld [vmem:[%s2 + $0x140] sm:$0xff]
  %v1167 = vld [vmem:[%s2 + $0x148] sm:$0xff]
  %v1168 = vld [vmem:[%s2 + $0x150] sm:$0xff]
  %v1169 = vld [vmem:[%s2 + $0x158] sm:$0xff]
  %v1170 = vld [vmem:[%s2 + $0x160] sm:$0xff]
  %v1171 = vld [vmem:[%s2 + $0x168] sm:$0xff]
  %v1172 = vld [vmem:[%s2 + $0x170] sm:$0xff]
  %v1173 = vld [vmem:[%s2 + $0x178] sm:$0xff]
  %v1174 = vld [vmem:[%s2 + $0x180] sm:$0xff]
  %v1175 = vld [vmem:[%s2 + $0x188] sm:$0xff]
  %v1176 = vld [vmem:[%s2 + $0x190] sm:$0xff]
  %v1177 = vld [vmem:[%s2 + $0x198] sm:$0xff]
  %v1178 = vld [vmem:[%s2 + $0x1a0] sm:$0xff]
  %v1179 = vld [vmem:[%s2 + $0x1a8] sm:$0xff]
  %v1180 = vld [vmem:[%s2 + $0x1b0] sm:$0xff]
  %v1181 = vld [vmem:[%s2 + $0x1b8] sm:$0xff]
  %v1182 = vld [vmem:[%s2 + $0x1c0] sm:$0xff]
  %v1183 = vld [vmem:[%s2 + $0x1c8] sm:$0xff]
  %v1184 = vld [vmem:[%s2 + $0x1d0] sm:$0xff]
  %v1185 = vld [vmem:[%s2 + $0x1d8] sm:$0xff]
  %v1186 = vld [vmem:[%s2 + $0x1e0] sm:$0xff]
  %v1187 = vld [vmem:[%s2 + $0x1e8] sm:$0xff]
  %v1188 = vld [vmem:[%s2 + $0x1f0] sm:$0xff]
  %v1189 = vld [vmem:[%s2 + $0x1f8] sm:$0xff]
  %v1190 = vmul.f32 %v874, %v1126
  %v1191 = vmul.f32 %v876, %v1127
  %v1192 = vmul.f32 %v1125, %v1128
  %v1193 = vmul.f32 %v943, %v1129
  %v1194 = vmul.f32 %v945, %v1130
  %v1195 = vmul.f32 %v947, %v1131
  %v1196 = vmul.f32 %v949, %v1132
  %v1197 = vmul.f32 %v951, %v1133
  %v1198 = vmul.f32 %v953, %v1134
  %v1199 = vmul.f32 %v955, %v1135
  %v1200 = vmul.f32 %v957, %v1136
  %v1201 = vmul.f32 %v959, %v1137
  %v1202 = vmul.f32 %v961, %v1138
  %v1203 = vmul.f32 %v963, %v1139
  %v1204 = vmul.f32 %v965, %v1140
  %v1205 = vmul.f32 %v967, %v1141
  %v1206 = vmul.f32 %v969, %v1142
  %v1207 = vmul.f32 %v971, %v1143
  %v1208 = vmul.f32 %v973, %v1144
  %v1209 = vmul.f32 %v975, %v1145
  %v1210 = vmul.f32 %v977, %v1146
  %v1211 = vmul.f32 %v979, %v1147
  %v1212 = vmul.f32 %v981, %v1148
  %v1213 = vmul.f32 %v983, %v1149
  %v1214 = vmul.f32 %v985, %v1150
  %v1215 = vmul.f32 %v987, %v1151
  %v1216 = vmul.f32 %v989, %v1152
  %v1217 = vmul.f32 %v991, %v1153
  %v1218 = vmul.f32 %v993, %v1154
  %v1219 = vmul.f32 %v995, %v1155
  %v1220 = vmul.f32 %v997, %v1156
  %v1221 = vmul.f32 %v999, %v1157
  %v1222 = vmul.f32 %v1001, %v1158
  %v1223 = vmul.f32 %v1003, %v1159
  %v1224 = vmul.f32 %v1005, %v1160
  %v1225 = vmul.f32 %v1007, %v1161
  %v1226 = vmul.f32 %v1009, %v1162
  %v1227 = vmul.f32 %v1011, %v1163
  %v1228 = vmul.f32 %v1013, %v1164
  %v1229 = vmul.f32 %v1015, %v1165
  %v1230 = vmul.f32 %v1017, %v1166
  %v1231 = vmul.f32 %v1019, %v1167
  %v1232 = vmul.f32 %v1021, %v1168
  %v1233 = vmul.f32 %v1023, %v1169
  %v1234 = vmul.f32 %v1025, %v1170
  %v1235 = vmul.f32 %v1027, %v1171
  %v1236 = vmul.f32 %v1029, %v1172
  %v1237 = vmul.f32 %v1031, %v1173
  %v1238 = vmul.f32 %v1033, %v1174
  %v1239 = vmul.f32 %v1035, %v1175
  %v1240 = vmul.f32 %v1037, %v1176
  %v1241 = vmul.f32 %v1039, %v1177
  %v1242 = vmul.f32 %v1041, %v1178
  %v1243 = vmul.f32 %v1043, %v1179
  %v1244 = vmul.f32 %v1045, %v1180
  %v1245 = vmul.f32 %v1047, %v1181
  %v1246 = vmul.f32 %v1049, %v1182
  %v1247 = vmul.f32 %v1051, %v1183
  %v1248 = vmul.f32 %v1053, %v1184
  %v1249 = vmul.f32 %v1055, %v1185
  %v1250 = vmul.f32 %v1057, %v1186
  %v1251 = vmul.f32 %v1059, %v1187
  %v1252 = vmul.f32 %v1061, %v1188
  %v1253 = vmul.f32 %v1062, %v1189
  %v1254 = vadd.f32 %v804, %v1190
  %v1255 = vadd.f32 %v805, %v1191
  %v1256 = vadd.f32 %v806, %v1192
  %v1257 = vadd.f32 %v807, %v1193
  %v1258 = vadd.f32 %v808, %v1194
  %v1259 = vadd.f32 %v809, %v1195
  %v1260 = vadd.f32 %v810, %v1196
  %v1261 = vadd.f32 %v811, %v1197
  %v1262 = vadd.f32 %v812, %v1198
  %v1263 = vadd.f32 %v813, %v1199
  %v1264 = vadd.f32 %v814, %v1200
  %v1265 = vadd.f32 %v815, %v1201
  %v1266 = vadd.f32 %v816, %v1202
  %v1267 = vadd.f32 %v817, %v1203
  %v1268 = vadd.f32 %v818, %v1204
  %v1269 = vadd.f32 %v819, %v1205
  %v1270 = vadd.f32 %v820, %v1206
  %v1271 = vadd.f32 %v821, %v1207
  %v1272 = vadd.f32 %v822, %v1208
  %v1273 = vadd.f32 %v823, %v1209
  %v1274 = vadd.f32 %v824, %v1210
  %v1275 = vadd.f32 %v825, %v1211
  %v1276 = vadd.f32 %v826, %v1212
  %v1277 = vadd.f32 %v827, %v1213
  %v1278 = vadd.f32 %v828, %v1214
  %v1279 = vadd.f32 %v829, %v1215
  %v1280 = vadd.f32 %v830, %v1216
  %v1281 = vadd.f32 %v831, %v1217
  %v1282 = vadd.f32 %v832, %v1218
  %v1283 = vadd.f32 %v833, %v1219
  %v1284 = vadd.f32 %v834, %v1220
  %v1285 = vadd.f32 %v835, %v1221
  %v1286 = vadd.f32 %v836, %v1222
  %v1287 = vadd.f32 %v837, %v1223
  %v1288 = vadd.f32 %v838, %v1224
  %v1289 = vadd.f32 %v839, %v1225
  %v1290 = vadd.f32 %v840, %v1226
  %v1291 = vadd.f32 %v841, %v1227
  %v1292 = vadd.f32 %v842, %v1228
  %v1293 = vadd.f32 %v843, %v1229
  %v1294 = vadd.f32 %v844, %v1230
  %v1295 = vadd.f32 %v845, %v1231
  %v1296 = vadd.f32 %v846, %v1232
  %v1297 = vadd.f32 %v847, %v1233
  %v1298 = vadd.f32 %v848, %v1234
  %v1299 = vadd.f32 %v849, %v1235
  %v1300 = vadd.f32 %v850, %v1236
  %v1301 = vadd.f32 %v851, %v1237
  %v1302 = vadd.f32 %v852, %v1238
  %v1303 = vadd.f32 %v853, %v1239
  %v1304 = vadd.f32 %v854, %v1240
  %v1305 = vadd.f32 %v855, %v1241
  %v1306 = vadd.f32 %v856, %v1242
  %v1307 = vadd.f32 %v857, %v1243
  %v1308 = vadd.f32 %v858, %v1244
  %v1309 = vadd.f32 %v859, %v1245
  %v1310 = vadd.f32 %v860, %v1246
  %v1311 = vadd.f32 %v861, %v1247
  %v1312 = vadd.f32 %v862, %v1248
  %v1313 = vadd.f32 %v863, %v1249
  %v1314 = vadd.f32 %v864, %v1250
  %v1315 = vadd.f32 %v865, %v1251
  %v1316 = vadd.f32 %v866, %v1252
  %v1317 = vadd.f32 %v867, %v1253
  %s1318 = scalar_lea.vmem %s2, 512
  %v1319 = vld [vmem:[%s1318] sm:$0xff]
  %v1320 = vld [vmem:[%s1318 + $0x8] sm:$0xff]
  %v1321 = vld [vmem:[%s1318 + $0x10] sm:$0xff]
  %v1322 = vld [vmem:[%s1318 + $0x18] sm:$0xff]
  %v1323 = vld [vmem:[%s1318 + $0x20] sm:$0xff]
  %v1324 = vld [vmem:[%s1318 + $0x28] sm:$0xff]
  %v1325 = vld [vmem:[%s1318 + $0x30] sm:$0xff]
  %v1326 = vld [vmem:[%s1318 + $0x38] sm:$0xff]
  %v1327 = vld [vmem:[%s1318 + $0x40] sm:$0xff]
  %v1328 = vld [vmem:[%s1318 + $0x48] sm:$0xff]
  %v1329 = vld [vmem:[%s1318 + $0x50] sm:$0xff]
  %v1330 = vld [vmem:[%s1318 + $0x58] sm:$0xff]
  %v1331 = vld [vmem:[%s1318 + $0x60] sm:$0xff]
  %v1332 = vld [vmem:[%s1318 + $0x68] sm:$0xff]
  %v1333 = vld [vmem:[%s1318 + $0x70] sm:$0xff]
  %v1334 = vld [vmem:[%s1318 + $0x78] sm:$0xff]
  %v1335 = vld [vmem:[%s1318 + $0x80] sm:$0xff]
  %v1336 = vld [vmem:[%s1318 + $0x88] sm:$0xff]
  %v1337 = vld [vmem:[%s1318 + $0x90] sm:$0xff]
  %v1338 = vld [vmem:[%s1318 + $0x98] sm:$0xff]
  %v1339 = vld [vmem:[%s1318 + $0xa0] sm:$0xff]
  %v1340 = vld [vmem:[%s1318 + $0xa8] sm:$0xff]
  %v1341 = vld [vmem:[%s1318 + $0xb0] sm:$0xff]
  %v1342 = vld [vmem:[%s1318 + $0xb8] sm:$0xff]
  %v1343 = vld [vmem:[%s1318 + $0xc0] sm:$0xff]
  %v1344 = vld [vmem:[%s1318 + $0xc8] sm:$0xff]
  %v1345 = vld [vmem:[%s1318 + $0xd0] sm:$0xff]
  %v1346 = vld [vmem:[%s1318 + $0xd8] sm:$0xff]
  %v1347 = vld [vmem:[%s1318 + $0xe0] sm:$0xff]
  %v1348 = vld [vmem:[%s1318 + $0xe8] sm:$0xff]
  %v1349 = vld [vmem:[%s1318 + $0xf0] sm:$0xff]
  %v1350 = vld [vmem:[%s1318 + $0xf8] sm:$0xff]
  %v1351 = vld [vmem:[%s1318 + $0x100] sm:$0xff]
  %v1352 = vld [vmem:[%s1318 + $0x108] sm:$0xff]
  %v1353 = vld [vmem:[%s1318 + $0x110] sm:$0xff]
  %v1354 = vld [vmem:[%s1318 + $0x118] sm:$0xff]
  %v1355 = vld [vmem:[%s1318 + $0x120] sm:$0xff]
  %v1356 = vld [vmem:[%s1318 + $0x128] sm:$0xff]
  %v1357 = vld [vmem:[%s1318 + $0x130] sm:$0xff]
  %v1358 = vld [vmem:[%s1318 + $0x138] sm:$0xff]
  %v1359 = vld [vmem:[%s1318 + $0x140] sm:$0xff]
  %v1360 = vld [vmem:[%s1318 + $0x148] sm:$0xff]
  %v1361 = vld [vmem:[%s1318 + $0x150] sm:$0xff]
  %v1362 = vld [vmem:[%s1318 + $0x158] sm:$0xff]
  %v1363 = vld [vmem:[%s1318 + $0x160] sm:$0xff]
  %v1364 = vld [vmem:[%s1318 + $0x168] sm:$0xff]
  %v1365 = vld [vmem:[%s1318 + $0x170] sm:$0xff]
  %v1366 = vld [vmem:[%s1318 + $0x178] sm:$0xff]
  %v1367 = vld [vmem:[%s1318 + $0x180] sm:$0xff]
  %v1368 = vld [vmem:[%s1318 + $0x188] sm:$0xff]
  %v1369 = vld [vmem:[%s1318 + $0x190] sm:$0xff]
  %v1370 = vld [vmem:[%s1318 + $0x198] sm:$0xff]
  %v1371 = vld [vmem:[%s1318 + $0x1a0] sm:$0xff]
  %v1372 = vld [vmem:[%s1318 + $0x1a8] sm:$0xff]
  %v1373 = vld [vmem:[%s1318 + $0x1b0] sm:$0xff]
  %v1374 = vld [vmem:[%s1318 + $0x1b8] sm:$0xff]
  %v1375 = vld [vmem:[%s1318 + $0x1c0] sm:$0xff]
  %v1376 = vld [vmem:[%s1318 + $0x1c8] sm:$0xff]
  %v1377 = vld [vmem:[%s1318 + $0x1d0] sm:$0xff]
  %v1378 = vld [vmem:[%s1318 + $0x1d8] sm:$0xff]
  %v1379 = vld [vmem:[%s1318 + $0x1e0] sm:$0xff]
  %v1380 = vld [vmem:[%s1318 + $0x1e8] sm:$0xff]
  %v1381 = vld [vmem:[%s1318 + $0x1f0] sm:$0xff]
  %v1382 = vld [vmem:[%s1318 + $0x1f8] sm:$0xff]
  %v1383 = vmul.f32 %v737, %v1319
  %v1384 = vmul.f32 %v738, %v1320
  %v1385 = vmul.f32 %v675, %v1321
  %v1386 = vmul.f32 %v676, %v1322
  %v1387 = vmul.f32 %v677, %v1323
  %v1388 = vmul.f32 %v678, %v1324
  %v1389 = vmul.f32 %v679, %v1325
  %v1390 = vmul.f32 %v680, %v1326
  %v1391 = vmul.f32 %v681, %v1327
  %v1392 = vmul.f32 %v682, %v1328
  %v1393 = vmul.f32 %v683, %v1329
  %v1394 = vmul.f32 %v684, %v1330
  %v1395 = vmul.f32 %v685, %v1331
  %v1396 = vmul.f32 %v686, %v1332
  %v1397 = vmul.f32 %v687, %v1333
  %v1398 = vmul.f32 %v688, %v1334
  %v1399 = vmul.f32 %v689, %v1335
  %v1400 = vmul.f32 %v690, %v1336
  %v1401 = vmul.f32 %v691, %v1337
  %v1402 = vmul.f32 %v692, %v1338
  %v1403 = vmul.f32 %v693, %v1339
  %v1404 = vmul.f32 %v694, %v1340
  %v1405 = vmul.f32 %v695, %v1341
  %v1406 = vmul.f32 %v696, %v1342
  %v1407 = vmul.f32 %v697, %v1343
  %v1408 = vmul.f32 %v698, %v1344
  %v1409 = vmul.f32 %v699, %v1345
  %v1410 = vmul.f32 %v700, %v1346
  %v1411 = vmul.f32 %v701, %v1347
  %v1412 = vmul.f32 %v702, %v1348
  %v1413 = vmul.f32 %v703, %v1349
  %v1414 = vmul.f32 %v704, %v1350
  %v1415 = vmul.f32 %v705, %v1351
  %v1416 = vmul.f32 %v706, %v1352
  %v1417 = vmul.f32 %v707, %v1353
  %v1418 = vmul.f32 %v708, %v1354
  %v1419 = vmul.f32 %v709, %v1355
  %v1420 = vmul.f32 %v710, %v1356
  %v1421 = vmul.f32 %v711, %v1357
  %v1422 = vmul.f32 %v712, %v1358
  %v1423 = vmul.f32 %v713, %v1359
  %v1424 = vmul.f32 %v714, %v1360
  %v1425 = vmul.f32 %v715, %v1361
  %v1426 = vmul.f32 %v716, %v1362
  %v1427 = vmul.f32 %v717, %v1363
  %v1428 = vmul.f32 %v718, %v1364
  %v1429 = vmul.f32 %v719, %v1365
  %v1430 = vmul.f32 %v720, %v1366
  %v1431 = vmul.f32 %v721, %v1367
  %v1432 = vmul.f32 %v722, %v1368
  %v1433 = vmul.f32 %v723, %v1369
  %v1434 = vmul.f32 %v724, %v1370
  %v1435 = vmul.f32 %v725, %v1371
  %v1436 = vmul.f32 %v726, %v1372
  %v1437 = vmul.f32 %v727, %v1373
  %v1438 = vmul.f32 %v728, %v1374
  %v1439 = vmul.f32 %v729, %v1375
  %v1440 = vmul.f32 %v730, %v1376
  %v1441 = vmul.f32 %v731, %v1377
  %v1442 = vmul.f32 %v732, %v1378
  %v1443 = vmul.f32 %v733, %v1379
  %v1444 = vmul.f32 %v734, %v1380
  %v1445 = vmul.f32 %v735, %v1381
  %v1446 = vmul.f32 %v736, %v1382
  %v1447 = vadd.f32 %v1254, %v1383
  %v1448 = vadd.f32 %v1255, %v1384
  %v1449 = vadd.f32 %v1256, %v1385
  %v1450 = vadd.f32 %v1257, %v1386
  %v1451 = vadd.f32 %v1258, %v1387
  %v1452 = vadd.f32 %v1259, %v1388
  %v1453 = vadd.f32 %v1260, %v1389
  %v1454 = vadd.f32 %v1261, %v1390
  %v1455 = vadd.f32 %v1262, %v1391
  %v1456 = vadd.f32 %v1263, %v1392
  %v1457 = vadd.f32 %v1264, %v1393
  %v1458 = vadd.f32 %v1265, %v1394
  %v1459 = vadd.f32 %v1266, %v1395
  %v1460 = vadd.f32 %v1267, %v1396
  %v1461 = vadd.f32 %v1268, %v1397
  %v1462 = vadd.f32 %v1269, %v1398
  %v1463 = vadd.f32 %v1270, %v1399
  %v1464 = vadd.f32 %v1271, %v1400
  %v1465 = vadd.f32 %v1272, %v1401
  %v1466 = vadd.f32 %v1273, %v1402
  %v1467 = vadd.f32 %v1274, %v1403
  %v1468 = vadd.f32 %v1275, %v1404
  %v1469 = vadd.f32 %v1276, %v1405
  %v1470 = vadd.f32 %v1277, %v1406
  %v1471 = vadd.f32 %v1278, %v1407
  %v1472 = vadd.f32 %v1279, %v1408
  %v1473 = vadd.f32 %v1280, %v1409
  %v1474 = vadd.f32 %v1281, %v1410
  %v1475 = vadd.f32 %v1282, %v1411
  %v1476 = vadd.f32 %v1283, %v1412
  %v1477 = vadd.f32 %v1284, %v1413
  %v1478 = vadd.f32 %v1285, %v1414
  %v1479 = vadd.f32 %v1286, %v1415
  %v1480 = vadd.f32 %v1287, %v1416
  %v1481 = vadd.f32 %v1288, %v1417
  %v1482 = vadd.f32 %v1289, %v1418
  %v1483 = vadd.f32 %v1290, %v1419
  %v1484 = vadd.f32 %v1291, %v1420
  %v1485 = vadd.f32 %v1292, %v1421
  %v1486 = vadd.f32 %v1293, %v1422
  %v1487 = vadd.f32 %v1294, %v1423
  %v1488 = vadd.f32 %v1295, %v1424
  %v1489 = vadd.f32 %v1296, %v1425
  %v1490 = vadd.f32 %v1297, %v1426
  %v1491 = vadd.f32 %v1298, %v1427
  %v1492 = vadd.f32 %v1299, %v1428
  %v1493 = vadd.f32 %v1300, %v1429
  %v1494 = vadd.f32 %v1301, %v1430
  %v1495 = vadd.f32 %v1302, %v1431
  %v1496 = vadd.f32 %v1303, %v1432
  %v1497 = vadd.f32 %v1304, %v1433
  %v1498 = vadd.f32 %v1305, %v1434
  %v1499 = vadd.f32 %v1306, %v1435
  %v1500 = vadd.f32 %v1307, %v1436
  %v1501 = vadd.f32 %v1308, %v1437
  %v1502 = vadd.f32 %v1309, %v1438
  %v1503 = vadd.f32 %v1310, %v1439
  %v1504 = vadd.f32 %v1311, %v1440
  %v1505 = vadd.f32 %v1312, %v1441
  %v1506 = vadd.f32 %v1313, %v1442
  %v1507 = vadd.f32 %v1314, %v1443
  %v1508 = vadd.f32 %v1315, %v1444
  %v1509 = vadd.f32 %v1316, %v1445
  %v1510 = vadd.f32 %v1317, %v1446
  %vm1511 = vcmask 1046528
  %v1512 = vrot.slane %v737, 1
  %v1513 = vrot.slane %v738, 1
  %v1514 = vsel %vm1511, %v1512, %v1513
  %v1517 = vrot.slane %v675, 1
  %v1518 = vrot.slane %v676, 1
  %v1519 = vsel %vm1511, %v1517, %v1518
  %v1520 = vrot.slane %v677, 1
  %v1521 = vsel %vm1511, %v1518, %v1520
  %v1522 = vrot.slane %v678, 1
  %v1523 = vsel %vm1511, %v1520, %v1522
  %v1524 = vrot.slane %v679, 1
  %v1525 = vsel %vm1511, %v1522, %v1524
  %v1526 = vrot.slane %v680, 1
  %v1527 = vsel %vm1511, %v1524, %v1526
  %v1528 = vrot.slane %v681, 1
  %v1529 = vsel %vm1511, %v1526, %v1528
  %v1530 = vrot.slane %v682, 1
  %v1531 = vsel %vm1511, %v1528, %v1530
  %v1532 = vrot.slane %v683, 1
  %v1533 = vsel %vm1511, %v1530, %v1532
  %v1534 = vrot.slane %v684, 1
  %v1535 = vsel %vm1511, %v1532, %v1534
  %v1536 = vrot.slane %v685, 1
  %v1537 = vsel %vm1511, %v1534, %v1536
  %v1538 = vrot.slane %v686, 1
  %v1539 = vsel %vm1511, %v1536, %v1538
  %v1540 = vrot.slane %v687, 1
  %v1541 = vsel %vm1511, %v1538, %v1540
  %v1542 = vrot.slane %v688, 1
  %v1543 = vsel %vm1511, %v1540, %v1542
  %v1544 = vrot.slane %v689, 1
  %v1545 = vsel %vm1511, %v1542, %v1544
  %v1546 = vrot.slane %v690, 1
  %v1547 = vsel %vm1511, %v1544, %v1546
  %v1548 = vrot.slane %v691, 1
  %v1549 = vsel %vm1511, %v1546, %v1548
  %v1550 = vrot.slane %v692, 1
  %v1551 = vsel %vm1511, %v1548, %v1550
  %v1552 = vrot.slane %v693, 1
  %v1553 = vsel %vm1511, %v1550, %v1552
  %v1554 = vrot.slane %v694, 1
  %v1555 = vsel %vm1511, %v1552, %v1554
  %v1556 = vrot.slane %v695, 1
  %v1557 = vsel %vm1511, %v1554, %v1556
  %v1558 = vrot.slane %v696, 1
  %v1559 = vsel %vm1511, %v1556, %v1558
  %v1560 = vrot.slane %v697, 1
  %v1561 = vsel %vm1511, %v1558, %v1560
  %v1562 = vrot.slane %v698, 1
  %v1563 = vsel %vm1511, %v1560, %v1562
  %v1564 = vrot.slane %v699, 1
  %v1565 = vsel %vm1511, %v1562, %v1564
  %v1566 = vrot.slane %v700, 1
  %v1567 = vsel %vm1511, %v1564, %v1566
  %v1568 = vrot.slane %v701, 1
  %v1569 = vsel %vm1511, %v1566, %v1568
  %v1570 = vrot.slane %v702, 1
  %v1571 = vsel %vm1511, %v1568, %v1570
  %v1572 = vrot.slane %v703, 1
  %v1573 = vsel %vm1511, %v1570, %v1572
  %v1574 = vrot.slane %v704, 1
  %v1575 = vsel %vm1511, %v1572, %v1574
  %v1576 = vrot.slane %v705, 1
  %v1577 = vsel %vm1511, %v1574, %v1576
  %v1578 = vrot.slane %v706, 1
  %v1579 = vsel %vm1511, %v1576, %v1578
  %v1580 = vrot.slane %v707, 1
  %v1581 = vsel %vm1511, %v1578, %v1580
  %v1582 = vrot.slane %v708, 1
  %v1583 = vsel %vm1511, %v1580, %v1582
  %v1584 = vrot.slane %v709, 1
  %v1585 = vsel %vm1511, %v1582, %v1584
  %v1586 = vrot.slane %v710, 1
  %v1587 = vsel %vm1511, %v1584, %v1586
  %v1588 = vrot.slane %v711, 1
  %v1589 = vsel %vm1511, %v1586, %v1588
  %v1590 = vrot.slane %v712, 1
  %v1591 = vsel %vm1511, %v1588, %v1590
  %v1592 = vrot.slane %v713, 1
  %v1593 = vsel %vm1511, %v1590, %v1592
  %v1594 = vrot.slane %v714, 1
  %v1595 = vsel %vm1511, %v1592, %v1594
  %v1596 = vrot.slane %v715, 1
  %v1597 = vsel %vm1511, %v1594, %v1596
  %v1598 = vrot.slane %v716, 1
  %v1599 = vsel %vm1511, %v1596, %v1598
  %v1600 = vrot.slane %v717, 1
  %v1601 = vsel %vm1511, %v1598, %v1600
  %v1602 = vrot.slane %v718, 1
  %v1603 = vsel %vm1511, %v1600, %v1602
  %v1604 = vrot.slane %v719, 1
  %v1605 = vsel %vm1511, %v1602, %v1604
  %v1606 = vrot.slane %v720, 1
  %v1607 = vsel %vm1511, %v1604, %v1606
  %v1608 = vrot.slane %v721, 1
  %v1609 = vsel %vm1511, %v1606, %v1608
  %v1610 = vrot.slane %v722, 1
  %v1611 = vsel %vm1511, %v1608, %v1610
  %v1612 = vrot.slane %v723, 1
  %v1613 = vsel %vm1511, %v1610, %v1612
  %v1614 = vrot.slane %v724, 1
  %v1615 = vsel %vm1511, %v1612, %v1614
  %v1616 = vrot.slane %v725, 1
  %v1617 = vsel %vm1511, %v1614, %v1616
  %v1618 = vrot.slane %v726, 1
  %v1619 = vsel %vm1511, %v1616, %v1618
  %v1620 = vrot.slane %v727, 1
  %v1621 = vsel %vm1511, %v1618, %v1620
  %v1622 = vrot.slane %v728, 1
  %v1623 = vsel %vm1511, %v1620, %v1622
  %v1624 = vrot.slane %v729, 1
  %v1625 = vsel %vm1511, %v1622, %v1624
  %v1626 = vrot.slane %v730, 1
  %v1627 = vsel %vm1511, %v1624, %v1626
  %v1628 = vrot.slane %v731, 1
  %v1629 = vsel %vm1511, %v1626, %v1628
  %v1630 = vrot.slane %v732, 1
  %v1631 = vsel %vm1511, %v1628, %v1630
  %v1632 = vrot.slane %v733, 1
  %v1633 = vsel %vm1511, %v1630, %v1632
  %v1634 = vrot.slane %v734, 1
  %v1635 = vsel %vm1511, %v1632, %v1634
  %v1636 = vrot.slane %v735, 1
  %v1637 = vsel %vm1511, %v1634, %v1636
  %v1638 = vrot.slane %v736, 1
  %v1639 = vsel %vm1511, %v1636, %v1638
  %v1640 = vsel %vm1511, %v1638, %v1512
  %v1704 = vsel %vm1511, %v1513, %v1517
  %s1705 = scalar_lea.vmem %s2, 1024
  %v1706 = vld [vmem:[%s1705] sm:$0xff]
  %v1707 = vld [vmem:[%s1705 + $0x8] sm:$0xff]
  %v1708 = vld [vmem:[%s1705 + $0x10] sm:$0xff]
  %v1709 = vld [vmem:[%s1705 + $0x18] sm:$0xff]
  %v1710 = vld [vmem:[%s1705 + $0x20] sm:$0xff]
  %v1711 = vld [vmem:[%s1705 + $0x28] sm:$0xff]
  %v1712 = vld [vmem:[%s1705 + $0x30] sm:$0xff]
  %v1713 = vld [vmem:[%s1705 + $0x38] sm:$0xff]
  %v1714 = vld [vmem:[%s1705 + $0x40] sm:$0xff]
  %v1715 = vld [vmem:[%s1705 + $0x48] sm:$0xff]
  %v1716 = vld [vmem:[%s1705 + $0x50] sm:$0xff]
  %v1717 = vld [vmem:[%s1705 + $0x58] sm:$0xff]
  %v1718 = vld [vmem:[%s1705 + $0x60] sm:$0xff]
  %v1719 = vld [vmem:[%s1705 + $0x68] sm:$0xff]
  %v1720 = vld [vmem:[%s1705 + $0x70] sm:$0xff]
  %v1721 = vld [vmem:[%s1705 + $0x78] sm:$0xff]
  %v1722 = vld [vmem:[%s1705 + $0x80] sm:$0xff]
  %v1723 = vld [vmem:[%s1705 + $0x88] sm:$0xff]
  %v1724 = vld [vmem:[%s1705 + $0x90] sm:$0xff]
  %v1725 = vld [vmem:[%s1705 + $0x98] sm:$0xff]
  %v1726 = vld [vmem:[%s1705 + $0xa0] sm:$0xff]
  %v1727 = vld [vmem:[%s1705 + $0xa8] sm:$0xff]
  %v1728 = vld [vmem:[%s1705 + $0xb0] sm:$0xff]
  %v1729 = vld [vmem:[%s1705 + $0xb8] sm:$0xff]
  %v1730 = vld [vmem:[%s1705 + $0xc0] sm:$0xff]
  %v1731 = vld [vmem:[%s1705 + $0xc8] sm:$0xff]
  %v1732 = vld [vmem:[%s1705 + $0xd0] sm:$0xff]
  %v1733 = vld [vmem:[%s1705 + $0xd8] sm:$0xff]
  %v1734 = vld [vmem:[%s1705 + $0xe0] sm:$0xff]
  %v1735 = vld [vmem:[%s1705 + $0xe8] sm:$0xff]
  %v1736 = vld [vmem:[%s1705 + $0xf0] sm:$0xff]
  %v1737 = vld [vmem:[%s1705 + $0xf8] sm:$0xff]
  %v1738 = vld [vmem:[%s1705 + $0x100] sm:$0xff]
  %v1739 = vld [vmem:[%s1705 + $0x108] sm:$0xff]
  %v1740 = vld [vmem:[%s1705 + $0x110] sm:$0xff]
  %v1741 = vld [vmem:[%s1705 + $0x118] sm:$0xff]
  %v1742 = vld [vmem:[%s1705 + $0x120] sm:$0xff]
  %v1743 = vld [vmem:[%s1705 + $0x128] sm:$0xff]
  %v1744 = vld [vmem:[%s1705 + $0x130] sm:$0xff]
  %v1745 = vld [vmem:[%s1705 + $0x138] sm:$0xff]
  %v1746 = vld [vmem:[%s1705 + $0x140] sm:$0xff]
  %v1747 = vld [vmem:[%s1705 + $0x148] sm:$0xff]
  %v1748 = vld [vmem:[%s1705 + $0x150] sm:$0xff]
  %v1749 = vld [vmem:[%s1705 + $0x158] sm:$0xff]
  %v1750 = vld [vmem:[%s1705 + $0x160] sm:$0xff]
  %v1751 = vld [vmem:[%s1705 + $0x168] sm:$0xff]
  %v1752 = vld [vmem:[%s1705 + $0x170] sm:$0xff]
  %v1753 = vld [vmem:[%s1705 + $0x178] sm:$0xff]
  %v1754 = vld [vmem:[%s1705 + $0x180] sm:$0xff]
  %v1755 = vld [vmem:[%s1705 + $0x188] sm:$0xff]
  %v1756 = vld [vmem:[%s1705 + $0x190] sm:$0xff]
  %v1757 = vld [vmem:[%s1705 + $0x198] sm:$0xff]
  %v1758 = vld [vmem:[%s1705 + $0x1a0] sm:$0xff]
  %v1759 = vld [vmem:[%s1705 + $0x1a8] sm:$0xff]
  %v1760 = vld [vmem:[%s1705 + $0x1b0] sm:$0xff]
  %v1761 = vld [vmem:[%s1705 + $0x1b8] sm:$0xff]
  %v1762 = vld [vmem:[%s1705 + $0x1c0] sm:$0xff]
  %v1763 = vld [vmem:[%s1705 + $0x1c8] sm:$0xff]
  %v1764 = vld [vmem:[%s1705 + $0x1d0] sm:$0xff]
  %v1765 = vld [vmem:[%s1705 + $0x1d8] sm:$0xff]
  %v1766 = vld [vmem:[%s1705 + $0x1e0] sm:$0xff]
  %v1767 = vld [vmem:[%s1705 + $0x1e8] sm:$0xff]
  %v1768 = vld [vmem:[%s1705 + $0x1f0] sm:$0xff]
  %v1769 = vld [vmem:[%s1705 + $0x1f8] sm:$0xff]
  %v1770 = vmul.f32 %v1514, %v1706
  %v1771 = vmul.f32 %v1704, %v1707
  %v1772 = vmul.f32 %v1519, %v1708
  %v1773 = vmul.f32 %v1521, %v1709
  %v1774 = vmul.f32 %v1523, %v1710
  %v1775 = vmul.f32 %v1525, %v1711
  %v1776 = vmul.f32 %v1527, %v1712
  %v1777 = vmul.f32 %v1529, %v1713
  %v1778 = vmul.f32 %v1531, %v1714
  %v1779 = vmul.f32 %v1533, %v1715
  %v1780 = vmul.f32 %v1535, %v1716
  %v1781 = vmul.f32 %v1537, %v1717
  %v1782 = vmul.f32 %v1539, %v1718
  %v1783 = vmul.f32 %v1541, %v1719
  %v1784 = vmul.f32 %v1543, %v1720
  %v1785 = vmul.f32 %v1545, %v1721
  %v1786 = vmul.f32 %v1547, %v1722
  %v1787 = vmul.f32 %v1549, %v1723
  %v1788 = vmul.f32 %v1551, %v1724
  %v1789 = vmul.f32 %v1553, %v1725
  %v1790 = vmul.f32 %v1555, %v1726
  %v1791 = vmul.f32 %v1557, %v1727
  %v1792 = vmul.f32 %v1559, %v1728
  %v1793 = vmul.f32 %v1561, %v1729
  %v1794 = vmul.f32 %v1563, %v1730
  %v1795 = vmul.f32 %v1565, %v1731
  %v1796 = vmul.f32 %v1567, %v1732
  %v1797 = vmul.f32 %v1569, %v1733
  %v1798 = vmul.f32 %v1571, %v1734
  %v1799 = vmul.f32 %v1573, %v1735
  %v1800 = vmul.f32 %v1575, %v1736
  %v1801 = vmul.f32 %v1577, %v1737
  %v1802 = vmul.f32 %v1579, %v1738
  %v1803 = vmul.f32 %v1581, %v1739
  %v1804 = vmul.f32 %v1583, %v1740
  %v1805 = vmul.f32 %v1585, %v1741
  %v1806 = vmul.f32 %v1587, %v1742
  %v1807 = vmul.f32 %v1589, %v1743
  %v1808 = vmul.f32 %v1591, %v1744
  %v1809 = vmul.f32 %v1593, %v1745
  %v1810 = vmul.f32 %v1595, %v1746
  %v1811 = vmul.f32 %v1597, %v1747
  %v1812 = vmul.f32 %v1599, %v1748
  %v1813 = vmul.f32 %v1601, %v1749
  %v1814 = vmul.f32 %v1603, %v1750
  %v1815 = vmul.f32 %v1605, %v1751
  %v1816 = vmul.f32 %v1607, %v1752
  %v1817 = vmul.f32 %v1609, %v1753
  %v1818 = vmul.f32 %v1611, %v1754
  %v1819 = vmul.f32 %v1613, %v1755
  %v1820 = vmul.f32 %v1615, %v1756
  %v1821 = vmul.f32 %v1617, %v1757
  %v1822 = vmul.f32 %v1619, %v1758
  %v1823 = vmul.f32 %v1621, %v1759
  %v1824 = vmul.f32 %v1623, %v1760
  %v1825 = vmul.f32 %v1625, %v1761
  %v1826 = vmul.f32 %v1627, %v1762
  %v1827 = vmul.f32 %v1629, %v1763
  %v1828 = vmul.f32 %v1631, %v1764
  %v1829 = vmul.f32 %v1633, %v1765
  %v1830 = vmul.f32 %v1635, %v1766
  %v1831 = vmul.f32 %v1637, %v1767
  %v1832 = vmul.f32 %v1639, %v1768
  %v1833 = vmul.f32 %v1640, %v1769
  %v1834 = vadd.f32 %v1447, %v1770
  %v1835 = vadd.f32 %v1448, %v1771
  %v1836 = vadd.f32 %v1449, %v1772
  %v1837 = vadd.f32 %v1450, %v1773
  %v1838 = vadd.f32 %v1451, %v1774
  %v1839 = vadd.f32 %v1452, %v1775
  %v1840 = vadd.f32 %v1453, %v1776
  %v1841 = vadd.f32 %v1454, %v1777
  %v1842 = vadd.f32 %v1455, %v1778
  %v1843 = vadd.f32 %v1456, %v1779
  %v1844 = vadd.f32 %v1457, %v1780
  %v1845 = vadd.f32 %v1458, %v1781
  %v1846 = vadd.f32 %v1459, %v1782
  %v1847 = vadd.f32 %v1460, %v1783
  %v1848 = vadd.f32 %v1461, %v1784
  %v1849 = vadd.f32 %v1462, %v1785
  %v1850 = vadd.f32 %v1463, %v1786
  %v1851 = vadd.f32 %v1464, %v1787
  %v1852 = vadd.f32 %v1465, %v1788
  %v1853 = vadd.f32 %v1466, %v1789
  %v1854 = vadd.f32 %v1467, %v1790
  %v1855 = vadd.f32 %v1468, %v1791
  %v1856 = vadd.f32 %v1469, %v1792
  %v1857 = vadd.f32 %v1470, %v1793
  %v1858 = vadd.f32 %v1471, %v1794
  %v1859 = vadd.f32 %v1472, %v1795
  %v1860 = vadd.f32 %v1473, %v1796
  %v1861 = vadd.f32 %v1474, %v1797
  %v1862 = vadd.f32 %v1475, %v1798
  %v1863 = vadd.f32 %v1476, %v1799
  %v1864 = vadd.f32 %v1477, %v1800
  %v1865 = vadd.f32 %v1478, %v1801
  %v1866 = vadd.f32 %v1479, %v1802
  %v1867 = vadd.f32 %v1480, %v1803
  %v1868 = vadd.f32 %v1481, %v1804
  %v1869 = vadd.f32 %v1482, %v1805
  %v1870 = vadd.f32 %v1483, %v1806
  %v1871 = vadd.f32 %v1484, %v1807
  %v1872 = vadd.f32 %v1485, %v1808
  %v1873 = vadd.f32 %v1486, %v1809
  %v1874 = vadd.f32 %v1487, %v1810
  %v1875 = vadd.f32 %v1488, %v1811
  %v1876 = vadd.f32 %v1489, %v1812
  %v1877 = vadd.f32 %v1490, %v1813
  %v1878 = vadd.f32 %v1491, %v1814
  %v1879 = vadd.f32 %v1492, %v1815
  %v1880 = vadd.f32 %v1493, %v1816
  %v1881 = vadd.f32 %v1494, %v1817
  %v1882 = vadd.f32 %v1495, %v1818
  %v1883 = vadd.f32 %v1496, %v1819
  %v1884 = vadd.f32 %v1497, %v1820
  %v1885 = vadd.f32 %v1498, %v1821
  %v1886 = vadd.f32 %v1499, %v1822
  %v1887 = vadd.f32 %v1500, %v1823
  %v1888 = vadd.f32 %v1501, %v1824
  %v1889 = vadd.f32 %v1502, %v1825
  %v1890 = vadd.f32 %v1503, %v1826
  %v1891 = vadd.f32 %v1504, %v1827
  %v1892 = vadd.f32 %v1505, %v1828
  %v1893 = vadd.f32 %v1506, %v1829
  %v1894 = vadd.f32 %v1507, %v1830
  %v1895 = vadd.f32 %v1508, %v1831
  %v1896 = vadd.f32 %v1509, %v1832
  %v1897 = vadd.f32 %v1510, %v1833
  %s1898 = scalar_lea.vmem %s2, 1536
  %v1899 = vld [vmem:[%s1898] sm:$0xff]
  %v1900 = vld [vmem:[%s1898 + $0x8] sm:$0xff]
  %v1901 = vld [vmem:[%s1898 + $0x10] sm:$0xff]
  %v1902 = vld [vmem:[%s1898 + $0x18] sm:$0xff]
  %v1903 = vld [vmem:[%s1898 + $0x20] sm:$0xff]
  %v1904 = vld [vmem:[%s1898 + $0x28] sm:$0xff]
  %v1905 = vld [vmem:[%s1898 + $0x30] sm:$0xff]
  %v1906 = vld [vmem:[%s1898 + $0x38] sm:$0xff]
  %v1907 = vld [vmem:[%s1898 + $0x40] sm:$0xff]
  %v1908 = vld [vmem:[%s1898 + $0x48] sm:$0xff]
  %v1909 = vld [vmem:[%s1898 + $0x50] sm:$0xff]
  %v1910 = vld [vmem:[%s1898 + $0x58] sm:$0xff]
  %v1911 = vld [vmem:[%s1898 + $0x60] sm:$0xff]
  %v1912 = vld [vmem:[%s1898 + $0x68] sm:$0xff]
  %v1913 = vld [vmem:[%s1898 + $0x70] sm:$0xff]
  %v1914 = vld [vmem:[%s1898 + $0x78] sm:$0xff]
  %v1915 = vld [vmem:[%s1898 + $0x80] sm:$0xff]
  %v1916 = vld [vmem:[%s1898 + $0x88] sm:$0xff]
  %v1917 = vld [vmem:[%s1898 + $0x90] sm:$0xff]
  %v1918 = vld [vmem:[%s1898 + $0x98] sm:$0xff]
  %v1919 = vld [vmem:[%s1898 + $0xa0] sm:$0xff]
  %v1920 = vld [vmem:[%s1898 + $0xa8] sm:$0xff]
  %v1921 = vld [vmem:[%s1898 + $0xb0] sm:$0xff]
  %v1922 = vld [vmem:[%s1898 + $0xb8] sm:$0xff]
  %v1923 = vld [vmem:[%s1898 + $0xc0] sm:$0xff]
  %v1924 = vld [vmem:[%s1898 + $0xc8] sm:$0xff]
  %v1925 = vld [vmem:[%s1898 + $0xd0] sm:$0xff]
  %v1926 = vld [vmem:[%s1898 + $0xd8] sm:$0xff]
  %v1927 = vld [vmem:[%s1898 + $0xe0] sm:$0xff]
  %v1928 = vld [vmem:[%s1898 + $0xe8] sm:$0xff]
  %v1929 = vld [vmem:[%s1898 + $0xf0] sm:$0xff]
  %v1930 = vld [vmem:[%s1898 + $0xf8] sm:$0xff]
  %v1931 = vld [vmem:[%s1898 + $0x100] sm:$0xff]
  %v1932 = vld [vmem:[%s1898 + $0x108] sm:$0xff]
  %v1933 = vld [vmem:[%s1898 + $0x110] sm:$0xff]
  %v1934 = vld [vmem:[%s1898 + $0x118] sm:$0xff]
  %v1935 = vld [vmem:[%s1898 + $0x120] sm:$0xff]
  %v1936 = vld [vmem:[%s1898 + $0x128] sm:$0xff]
  %v1937 = vld [vmem:[%s1898 + $0x130] sm:$0xff]
  %v1938 = vld [vmem:[%s1898 + $0x138] sm:$0xff]
  %v1939 = vld [vmem:[%s1898 + $0x140] sm:$0xff]
  %v1940 = vld [vmem:[%s1898 + $0x148] sm:$0xff]
  %v1941 = vld [vmem:[%s1898 + $0x150] sm:$0xff]
  %v1942 = vld [vmem:[%s1898 + $0x158] sm:$0xff]
  %v1943 = vld [vmem:[%s1898 + $0x160] sm:$0xff]
  %v1944 = vld [vmem:[%s1898 + $0x168] sm:$0xff]
  %v1945 = vld [vmem:[%s1898 + $0x170] sm:$0xff]
  %v1946 = vld [vmem:[%s1898 + $0x178] sm:$0xff]
  %v1947 = vld [vmem:[%s1898 + $0x180] sm:$0xff]
  %v1948 = vld [vmem:[%s1898 + $0x188] sm:$0xff]
  %v1949 = vld [vmem:[%s1898 + $0x190] sm:$0xff]
  %v1950 = vld [vmem:[%s1898 + $0x198] sm:$0xff]
  %v1951 = vld [vmem:[%s1898 + $0x1a0] sm:$0xff]
  %v1952 = vld [vmem:[%s1898 + $0x1a8] sm:$0xff]
  %v1953 = vld [vmem:[%s1898 + $0x1b0] sm:$0xff]
  %v1954 = vld [vmem:[%s1898 + $0x1b8] sm:$0xff]
  %v1955 = vld [vmem:[%s1898 + $0x1c0] sm:$0xff]
  %v1956 = vld [vmem:[%s1898 + $0x1c8] sm:$0xff]
  %v1957 = vld [vmem:[%s1898 + $0x1d0] sm:$0xff]
  %v1958 = vld [vmem:[%s1898 + $0x1d8] sm:$0xff]
  %v1959 = vld [vmem:[%s1898 + $0x1e0] sm:$0xff]
  %v1960 = vld [vmem:[%s1898 + $0x1e8] sm:$0xff]
  %v1961 = vld [vmem:[%s1898 + $0x1f0] sm:$0xff]
  %v1962 = vld [vmem:[%s1898 + $0x1f8] sm:$0xff]
  %v1963 = vmul.f32 %v1125, %v1899
  %v1964 = vmul.f32 %v943, %v1900
  %v1965 = vmul.f32 %v945, %v1901
  %v1966 = vmul.f32 %v947, %v1902
  %v1967 = vmul.f32 %v949, %v1903
  %v1968 = vmul.f32 %v951, %v1904
  %v1969 = vmul.f32 %v953, %v1905
  %v1970 = vmul.f32 %v955, %v1906
  %v1971 = vmul.f32 %v957, %v1907
  %v1972 = vmul.f32 %v959, %v1908
  %v1973 = vmul.f32 %v961, %v1909
  %v1974 = vmul.f32 %v963, %v1910
  %v1975 = vmul.f32 %v965, %v1911
  %v1976 = vmul.f32 %v967, %v1912
  %v1977 = vmul.f32 %v969, %v1913
  %v1978 = vmul.f32 %v971, %v1914
  %v1979 = vmul.f32 %v973, %v1915
  %v1980 = vmul.f32 %v975, %v1916
  %v1981 = vmul.f32 %v977, %v1917
  %v1982 = vmul.f32 %v979, %v1918
  %v1983 = vmul.f32 %v981, %v1919
  %v1984 = vmul.f32 %v983, %v1920
  %v1985 = vmul.f32 %v985, %v1921
  %v1986 = vmul.f32 %v987, %v1922
  %v1987 = vmul.f32 %v989, %v1923
  %v1988 = vmul.f32 %v991, %v1924
  %v1989 = vmul.f32 %v993, %v1925
  %v1990 = vmul.f32 %v995, %v1926
  %v1991 = vmul.f32 %v997, %v1927
  %v1992 = vmul.f32 %v999, %v1928
  %v1993 = vmul.f32 %v1001, %v1929
  %v1994 = vmul.f32 %v1003, %v1930
  %v1995 = vmul.f32 %v1005, %v1931
  %v1996 = vmul.f32 %v1007, %v1932
  %v1997 = vmul.f32 %v1009, %v1933
  %v1998 = vmul.f32 %v1011, %v1934
  %v1999 = vmul.f32 %v1013, %v1935
  %v2000 = vmul.f32 %v1015, %v1936
  %v2001 = vmul.f32 %v1017, %v1937
  %v2002 = vmul.f32 %v1019, %v1938
  %v2003 = vmul.f32 %v1021, %v1939
  %v2004 = vmul.f32 %v1023, %v1940
  %v2005 = vmul.f32 %v1025, %v1941
  %v2006 = vmul.f32 %v1027, %v1942
  %v2007 = vmul.f32 %v1029, %v1943
  %v2008 = vmul.f32 %v1031, %v1944
  %v2009 = vmul.f32 %v1033, %v1945
  %v2010 = vmul.f32 %v1035, %v1946
  %v2011 = vmul.f32 %v1037, %v1947
  %v2012 = vmul.f32 %v1039, %v1948
  %v2013 = vmul.f32 %v1041, %v1949
  %v2014 = vmul.f32 %v1043, %v1950
  %v2015 = vmul.f32 %v1045, %v1951
  %v2016 = vmul.f32 %v1047, %v1952
  %v2017 = vmul.f32 %v1049, %v1953
  %v2018 = vmul.f32 %v1051, %v1954
  %v2019 = vmul.f32 %v1053, %v1955
  %v2020 = vmul.f32 %v1055, %v1956
  %v2021 = vmul.f32 %v1057, %v1957
  %v2022 = vmul.f32 %v1059, %v1958
  %v2023 = vmul.f32 %v1061, %v1959
  %v2024 = vmul.f32 %v1062, %v1960
  %v2025 = vmul.f32 %v874, %v1961
  %v2026 = vmul.f32 %v876, %v1962
  %v2027 = vadd.f32 %v1834, %v1963
  %v2028 = vadd.f32 %v1835, %v1964
  %v2029 = vadd.f32 %v1836, %v1965
  %v2030 = vadd.f32 %v1837, %v1966
  %v2031 = vadd.f32 %v1838, %v1967
  %v2032 = vadd.f32 %v1839, %v1968
  %v2033 = vadd.f32 %v1840, %v1969
  %v2034 = vadd.f32 %v1841, %v1970
  %v2035 = vadd.f32 %v1842, %v1971
  %v2036 = vadd.f32 %v1843, %v1972
  %v2037 = vadd.f32 %v1844, %v1973
  %v2038 = vadd.f32 %v1845, %v1974
  %v2039 = vadd.f32 %v1846, %v1975
  %v2040 = vadd.f32 %v1847, %v1976
  %v2041 = vadd.f32 %v1848, %v1977
  %v2042 = vadd.f32 %v1849, %v1978
  %v2043 = vadd.f32 %v1850, %v1979
  %v2044 = vadd.f32 %v1851, %v1980
  %v2045 = vadd.f32 %v1852, %v1981
  %v2046 = vadd.f32 %v1853, %v1982
  %v2047 = vadd.f32 %v1854, %v1983
  %v2048 = vadd.f32 %v1855, %v1984
  %v2049 = vadd.f32 %v1856, %v1985
  %v2050 = vadd.f32 %v1857, %v1986
  %v2051 = vadd.f32 %v1858, %v1987
  %v2052 = vadd.f32 %v1859, %v1988
  %v2053 = vadd.f32 %v1860, %v1989
  %v2054 = vadd.f32 %v1861, %v1990
  %v2055 = vadd.f32 %v1862, %v1991
  %v2056 = vadd.f32 %v1863, %v1992
  %v2057 = vadd.f32 %v1864, %v1993
  %v2058 = vadd.f32 %v1865, %v1994
  %v2059 = vadd.f32 %v1866, %v1995
  %v2060 = vadd.f32 %v1867, %v1996
  %v2061 = vadd.f32 %v1868, %v1997
  %v2062 = vadd.f32 %v1869, %v1998
  %v2063 = vadd.f32 %v1870, %v1999
  %v2064 = vadd.f32 %v1871, %v2000
  %v2065 = vadd.f32 %v1872, %v2001
  %v2066 = vadd.f32 %v1873, %v2002
  %v2067 = vadd.f32 %v1874, %v2003
  %v2068 = vadd.f32 %v1875, %v2004
  %v2069 = vadd.f32 %v1876, %v2005
  %v2070 = vadd.f32 %v1877, %v2006
  %v2071 = vadd.f32 %v1878, %v2007
  %v2072 = vadd.f32 %v1879, %v2008
  %v2073 = vadd.f32 %v1880, %v2009
  %v2074 = vadd.f32 %v1881, %v2010
  %v2075 = vadd.f32 %v1882, %v2011
  %v2076 = vadd.f32 %v1883, %v2012
  %v2077 = vadd.f32 %v1884, %v2013
  %v2078 = vadd.f32 %v1885, %v2014
  %v2079 = vadd.f32 %v1886, %v2015
  %v2080 = vadd.f32 %v1887, %v2016
  %v2081 = vadd.f32 %v1888, %v2017
  %v2082 = vadd.f32 %v1889, %v2018
  %v2083 = vadd.f32 %v1890, %v2019
  %v2084 = vadd.f32 %v1891, %v2020
  %v2085 = vadd.f32 %v1892, %v2021
  %v2086 = vadd.f32 %v1893, %v2022
  %v2087 = vadd.f32 %v1894, %v2023
  %v2088 = vadd.f32 %v1895, %v2024
  %v2089 = vadd.f32 %v1896, %v2025
  %v2090 = vadd.f32 %v1897, %v2026
  %s2091 = scalar_lea.vmem %s2, 2560
  %v2092 = vld [vmem:[%s2091] sm:$0xff]
  %v2093 = vld [vmem:[%s2091 + $0x8] sm:$0xff]
  %v2094 = vld [vmem:[%s2091 + $0x10] sm:$0xff]
  %v2095 = vld [vmem:[%s2091 + $0x18] sm:$0xff]
  %v2096 = vld [vmem:[%s2091 + $0x20] sm:$0xff]
  %v2097 = vld [vmem:[%s2091 + $0x28] sm:$0xff]
  %v2098 = vld [vmem:[%s2091 + $0x30] sm:$0xff]
  %v2099 = vld [vmem:[%s2091 + $0x38] sm:$0xff]
  %v2100 = vld [vmem:[%s2091 + $0x40] sm:$0xff]
  %v2101 = vld [vmem:[%s2091 + $0x48] sm:$0xff]
  %v2102 = vld [vmem:[%s2091 + $0x50] sm:$0xff]
  %v2103 = vld [vmem:[%s2091 + $0x58] sm:$0xff]
  %v2104 = vld [vmem:[%s2091 + $0x60] sm:$0xff]
  %v2105 = vld [vmem:[%s2091 + $0x68] sm:$0xff]
  %v2106 = vld [vmem:[%s2091 + $0x70] sm:$0xff]
  %v2107 = vld [vmem:[%s2091 + $0x78] sm:$0xff]
  %v2108 = vld [vmem:[%s2091 + $0x80] sm:$0xff]
  %v2109 = vld [vmem:[%s2091 + $0x88] sm:$0xff]
  %v2110 = vld [vmem:[%s2091 + $0x90] sm:$0xff]
  %v2111 = vld [vmem:[%s2091 + $0x98] sm:$0xff]
  %v2112 = vld [vmem:[%s2091 + $0xa0] sm:$0xff]
  %v2113 = vld [vmem:[%s2091 + $0xa8] sm:$0xff]
  %v2114 = vld [vmem:[%s2091 + $0xb0] sm:$0xff]
  %v2115 = vld [vmem:[%s2091 + $0xb8] sm:$0xff]
  %v2116 = vld [vmem:[%s2091 + $0xc0] sm:$0xff]
  %v2117 = vld [vmem:[%s2091 + $0xc8] sm:$0xff]
  %v2118 = vld [vmem:[%s2091 + $0xd0] sm:$0xff]
  %v2119 = vld [vmem:[%s2091 + $0xd8] sm:$0xff]
  %v2120 = vld [vmem:[%s2091 + $0xe0] sm:$0xff]
  %v2121 = vld [vmem:[%s2091 + $0xe8] sm:$0xff]
  %v2122 = vld [vmem:[%s2091 + $0xf0] sm:$0xff]
  %v2123 = vld [vmem:[%s2091 + $0xf8] sm:$0xff]
  %v2124 = vld [vmem:[%s2091 + $0x100] sm:$0xff]
  %v2125 = vld [vmem:[%s2091 + $0x108] sm:$0xff]
  %v2126 = vld [vmem:[%s2091 + $0x110] sm:$0xff]
  %v2127 = vld [vmem:[%s2091 + $0x118] sm:$0xff]
  %v2128 = vld [vmem:[%s2091 + $0x120] sm:$0xff]
  %v2129 = vld [vmem:[%s2091 + $0x128] sm:$0xff]
  %v2130 = vld [vmem:[%s2091 + $0x130] sm:$0xff]
  %v2131 = vld [vmem:[%s2091 + $0x138] sm:$0xff]
  %v2132 = vld [vmem:[%s2091 + $0x140] sm:$0xff]
  %v2133 = vld [vmem:[%s2091 + $0x148] sm:$0xff]
  %v2134 = vld [vmem:[%s2091 + $0x150] sm:$0xff]
  %v2135 = vld [vmem:[%s2091 + $0x158] sm:$0xff]
  %v2136 = vld [vmem:[%s2091 + $0x160] sm:$0xff]
  %v2137 = vld [vmem:[%s2091 + $0x168] sm:$0xff]
  %v2138 = vld [vmem:[%s2091 + $0x170] sm:$0xff]
  %v2139 = vld [vmem:[%s2091 + $0x178] sm:$0xff]
  %v2140 = vld [vmem:[%s2091 + $0x180] sm:$0xff]
  %v2141 = vld [vmem:[%s2091 + $0x188] sm:$0xff]
  %v2142 = vld [vmem:[%s2091 + $0x190] sm:$0xff]
  %v2143 = vld [vmem:[%s2091 + $0x198] sm:$0xff]
  %v2144 = vld [vmem:[%s2091 + $0x1a0] sm:$0xff]
  %v2145 = vld [vmem:[%s2091 + $0x1a8] sm:$0xff]
  %v2146 = vld [vmem:[%s2091 + $0x1b0] sm:$0xff]
  %v2147 = vld [vmem:[%s2091 + $0x1b8] sm:$0xff]
  %v2148 = vld [vmem:[%s2091 + $0x1c0] sm:$0xff]
  %v2149 = vld [vmem:[%s2091 + $0x1c8] sm:$0xff]
  %v2150 = vld [vmem:[%s2091 + $0x1d0] sm:$0xff]
  %v2151 = vld [vmem:[%s2091 + $0x1d8] sm:$0xff]
  %v2152 = vld [vmem:[%s2091 + $0x1e0] sm:$0xff]
  %v2153 = vld [vmem:[%s2091 + $0x1e8] sm:$0xff]
  %v2154 = vld [vmem:[%s2091 + $0x1f0] sm:$0xff]
  %v2155 = vld [vmem:[%s2091 + $0x1f8] sm:$0xff]
  %v2156 = vmul.f32 %v1519, %v2092
  %v2157 = vmul.f32 %v1521, %v2093
  %v2158 = vmul.f32 %v1523, %v2094
  %v2159 = vmul.f32 %v1525, %v2095
  %v2160 = vmul.f32 %v1527, %v2096
  %v2161 = vmul.f32 %v1529, %v2097
  %v2162 = vmul.f32 %v1531, %v2098
  %v2163 = vmul.f32 %v1533, %v2099
  %v2164 = vmul.f32 %v1535, %v2100
  %v2165 = vmul.f32 %v1537, %v2101
  %v2166 = vmul.f32 %v1539, %v2102
  %v2167 = vmul.f32 %v1541, %v2103
  %v2168 = vmul.f32 %v1543, %v2104
  %v2169 = vmul.f32 %v1545, %v2105
  %v2170 = vmul.f32 %v1547, %v2106
  %v2171 = vmul.f32 %v1549, %v2107
  %v2172 = vmul.f32 %v1551, %v2108
  %v2173 = vmul.f32 %v1553, %v2109
  %v2174 = vmul.f32 %v1555, %v2110
  %v2175 = vmul.f32 %v1557, %v2111
  %v2176 = vmul.f32 %v1559, %v2112
  %v2177 = vmul.f32 %v1561, %v2113
  %v2178 = vmul.f32 %v1563, %v2114
  %v2179 = vmul.f32 %v1565, %v2115
  %v2180 = vmul.f32 %v1567, %v2116
  %v2181 = vmul.f32 %v1569, %v2117
  %v2182 = vmul.f32 %v1571, %v2118
  %v2183 = vmul.f32 %v1573, %v2119
  %v2184 = vmul.f32 %v1575, %v2120
  %v2185 = vmul.f32 %v1577, %v2121
  %v2186 = vmul.f32 %v1579, %v2122
  %v2187 = vmul.f32 %v1581, %v2123
  %v2188 = vmul.f32 %v1583, %v2124
  %v2189 = vmul.f32 %v1585, %v2125
  %v2190 = vmul.f32 %v1587, %v2126
  %v2191 = vmul.f32 %v1589, %v2127
  %v2192 = vmul.f32 %v1591, %v2128
  %v2193 = vmul.f32 %v1593, %v2129
  %v2194 = vmul.f32 %v1595, %v2130
  %v2195 = vmul.f32 %v1597, %v2131
  %v2196 = vmul.f32 %v1599, %v2132
  %v2197 = vmul.f32 %v1601, %v2133
  %v2198 = vmul.f32 %v1603, %v2134
  %v2199 = vmul.f32 %v1605, %v2135
  %v2200 = vmul.f32 %v1607, %v2136
  %v2201 = vmul.f32 %v1609, %v2137
  %v2202 = vmul.f32 %v1611, %v2138
  %v2203 = vmul.f32 %v1613, %v2139
  %v2204 = vmul.f32 %v1615, %v2140
  %v2205 = vmul.f32 %v1617, %v2141
  %v2206 = vmul.f32 %v1619, %v2142
  %v2207 = vmul.f32 %v1621, %v2143
  %v2208 = vmul.f32 %v1623, %v2144
  %v2209 = vmul.f32 %v1625, %v2145
  %v2210 = vmul.f32 %v1627, %v2146
  %v2211 = vmul.f32 %v1629, %v2147
  %v2212 = vmul.f32 %v1631, %v2148
  %v2213 = vmul.f32 %v1633, %v2149
  %v2214 = vmul.f32 %v1635, %v2150
  %v2215 = vmul.f32 %v1637, %v2151
  %v2216 = vmul.f32 %v1639, %v2152
  %v2217 = vmul.f32 %v1640, %v2153
  %v2218 = vmul.f32 %v1514, %v2154
  %v2219 = vmul.f32 %v1704, %v2155
  %v2220 = vadd.f32 %v2027, %v2156
  %v2221 = vadd.f32 %v2028, %v2157
  %v2222 = vadd.f32 %v2029, %v2158
  %v2223 = vadd.f32 %v2030, %v2159
  %v2224 = vadd.f32 %v2031, %v2160
  %v2225 = vadd.f32 %v2032, %v2161
  %v2226 = vadd.f32 %v2033, %v2162
  %v2227 = vadd.f32 %v2034, %v2163
  %v2228 = vadd.f32 %v2035, %v2164
  %v2229 = vadd.f32 %v2036, %v2165
  %v2230 = vadd.f32 %v2037, %v2166
  %v2231 = vadd.f32 %v2038, %v2167
  %v2232 = vadd.f32 %v2039, %v2168
  %v2233 = vadd.f32 %v2040, %v2169
  %v2234 = vadd.f32 %v2041, %v2170
  %v2235 = vadd.f32 %v2042, %v2171
  %v2236 = vadd.f32 %v2043, %v2172
  %v2237 = vadd.f32 %v2044, %v2173
  %v2238 = vadd.f32 %v2045, %v2174
  %v2239 = vadd.f32 %v2046, %v2175
  %v2240 = vadd.f32 %v2047, %v2176
  %v2241 = vadd.f32 %v2048, %v2177
  %v2242 = vadd.f32 %v2049, %v2178
  %v2243 = vadd.f32 %v2050, %v2179
  %v2244 = vadd.f32 %v2051, %v2180
  %v2245 = vadd.f32 %v2052, %v2181
  %v2246 = vadd.f32 %v2053, %v2182
  %v2247 = vadd.f32 %v2054, %v2183
  %v2248 = vadd.f32 %v2055, %v2184
  %v2249 = vadd.f32 %v2056, %v2185
  %v2250 = vadd.f32 %v2057, %v2186
  %v2251 = vadd.f32 %v2058, %v2187
  %v2252 = vadd.f32 %v2059, %v2188
  %v2253 = vadd.f32 %v2060, %v2189
  %v2254 = vadd.f32 %v2061, %v2190
  %v2255 = vadd.f32 %v2062, %v2191
  %v2256 = vadd.f32 %v2063, %v2192
  %v2257 = vadd.f32 %v2064, %v2193
  %v2258 = vadd.f32 %v2065, %v2194
  %v2259 = vadd.f32 %v2066, %v2195
  %v2260 = vadd.f32 %v2067, %v2196
  %v2261 = vadd.f32 %v2068, %v2197
  %v2262 = vadd.f32 %v2069, %v2198
  %v2263 = vadd.f32 %v2070, %v2199
  %v2264 = vadd.f32 %v2071, %v2200
  %v2265 = vadd.f32 %v2072, %v2201
  %v2266 = vadd.f32 %v2073, %v2202
  %v2267 = vadd.f32 %v2074, %v2203
  %v2268 = vadd.f32 %v2075, %v2204
  %v2269 = vadd.f32 %v2076, %v2205
  %v2270 = vadd.f32 %v2077, %v2206
  %v2271 = vadd.f32 %v2078, %v2207
  %v2272 = vadd.f32 %v2079, %v2208
  %v2273 = vadd.f32 %v2080, %v2209
  %v2274 = vadd.f32 %v2081, %v2210
  %v2275 = vadd.f32 %v2082, %v2211
  %v2276 = vadd.f32 %v2083, %v2212
  %v2277 = vadd.f32 %v2084, %v2213
  %v2278 = vadd.f32 %v2085, %v2214
  %v2279 = vadd.f32 %v2086, %v2215
  %v2280 = vadd.f32 %v2087, %v2216
  %v2281 = vadd.f32 %v2088, %v2217
  %v2282 = vadd.f32 %v2089, %v2218
  %v2283 = vadd.f32 %v2090, %v2219
  %s2284 = scalar_lea.vmem %s2, 3072
  %v2285 = vld [vmem:[%s2284] sm:$0xff]
  %v2286 = vld [vmem:[%s2284 + $0x8] sm:$0xff]
  %v2287 = vld [vmem:[%s2284 + $0x10] sm:$0xff]
  %v2288 = vld [vmem:[%s2284 + $0x18] sm:$0xff]
  %v2289 = vld [vmem:[%s2284 + $0x20] sm:$0xff]
  %v2290 = vld [vmem:[%s2284 + $0x28] sm:$0xff]
  %v2291 = vld [vmem:[%s2284 + $0x30] sm:$0xff]
  %v2292 = vld [vmem:[%s2284 + $0x38] sm:$0xff]
  %v2293 = vld [vmem:[%s2284 + $0x40] sm:$0xff]
  %v2294 = vld [vmem:[%s2284 + $0x48] sm:$0xff]
  %v2295 = vld [vmem:[%s2284 + $0x50] sm:$0xff]
  %v2296 = vld [vmem:[%s2284 + $0x58] sm:$0xff]
  %v2297 = vld [vmem:[%s2284 + $0x60] sm:$0xff]
  %v2298 = vld [vmem:[%s2284 + $0x68] sm:$0xff]
  %v2299 = vld [vmem:[%s2284 + $0x70] sm:$0xff]
  %v2300 = vld [vmem:[%s2284 + $0x78] sm:$0xff]
  %v2301 = vld [vmem:[%s2284 + $0x80] sm:$0xff]
  %v2302 = vld [vmem:[%s2284 + $0x88] sm:$0xff]
  %v2303 = vld [vmem:[%s2284 + $0x90] sm:$0xff]
  %v2304 = vld [vmem:[%s2284 + $0x98] sm:$0xff]
  %v2305 = vld [vmem:[%s2284 + $0xa0] sm:$0xff]
  %v2306 = vld [vmem:[%s2284 + $0xa8] sm:$0xff]
  %v2307 = vld [vmem:[%s2284 + $0xb0] sm:$0xff]
  %v2308 = vld [vmem:[%s2284 + $0xb8] sm:$0xff]
  %v2309 = vld [vmem:[%s2284 + $0xc0] sm:$0xff]
  %v2310 = vld [vmem:[%s2284 + $0xc8] sm:$0xff]
  %v2311 = vld [vmem:[%s2284 + $0xd0] sm:$0xff]
  %v2312 = vld [vmem:[%s2284 + $0xd8] sm:$0xff]
  %v2313 = vld [vmem:[%s2284 + $0xe0] sm:$0xff]
  %v2314 = vld [vmem:[%s2284 + $0xe8] sm:$0xff]
  %v2315 = vld [vmem:[%s2284 + $0xf0] sm:$0xff]
  %v2316 = vld [vmem:[%s2284 + $0xf8] sm:$0xff]
  %v2317 = vld [vmem:[%s2284 + $0x100] sm:$0xff]
  %v2318 = vld [vmem:[%s2284 + $0x108] sm:$0xff]
  %v2319 = vld [vmem:[%s2284 + $0x110] sm:$0xff]
  %v2320 = vld [vmem:[%s2284 + $0x118] sm:$0xff]
  %v2321 = vld [vmem:[%s2284 + $0x120] sm:$0xff]
  %v2322 = vld [vmem:[%s2284 + $0x128] sm:$0xff]
  %v2323 = vld [vmem:[%s2284 + $0x130] sm:$0xff]
  %v2324 = vld [vmem:[%s2284 + $0x138] sm:$0xff]
  %v2325 = vld [vmem:[%s2284 + $0x140] sm:$0xff]
  %v2326 = vld [vmem:[%s2284 + $0x148] sm:$0xff]
  %v2327 = vld [vmem:[%s2284 + $0x150] sm:$0xff]
  %v2328 = vld [vmem:[%s2284 + $0x158] sm:$0xff]
  %v2329 = vld [vmem:[%s2284 + $0x160] sm:$0xff]
  %v2330 = vld [vmem:[%s2284 + $0x168] sm:$0xff]
  %v2331 = vld [vmem:[%s2284 + $0x170] sm:$0xff]
  %v2332 = vld [vmem:[%s2284 + $0x178] sm:$0xff]
  %v2333 = vld [vmem:[%s2284 + $0x180] sm:$0xff]
  %v2334 = vld [vmem:[%s2284 + $0x188] sm:$0xff]
  %v2335 = vld [vmem:[%s2284 + $0x190] sm:$0xff]
  %v2336 = vld [vmem:[%s2284 + $0x198] sm:$0xff]
  %v2337 = vld [vmem:[%s2284 + $0x1a0] sm:$0xff]
  %v2338 = vld [vmem:[%s2284 + $0x1a8] sm:$0xff]
  %v2339 = vld [vmem:[%s2284 + $0x1b0] sm:$0xff]
  %v2340 = vld [vmem:[%s2284 + $0x1b8] sm:$0xff]
  %v2341 = vld [vmem:[%s2284 + $0x1c0] sm:$0xff]
  %v2342 = vld [vmem:[%s2284 + $0x1c8] sm:$0xff]
  %v2343 = vld [vmem:[%s2284 + $0x1d0] sm:$0xff]
  %v2344 = vld [vmem:[%s2284 + $0x1d8] sm:$0xff]
  %v2345 = vld [vmem:[%s2284 + $0x1e0] sm:$0xff]
  %v2346 = vld [vmem:[%s2284 + $0x1e8] sm:$0xff]
  %v2347 = vld [vmem:[%s2284 + $0x1f0] sm:$0xff]
  %v2348 = vld [vmem:[%s2284 + $0x1f8] sm:$0xff]
  %v2349 = vmul.f32 %v945, %v2285
  %v2350 = vmul.f32 %v947, %v2286
  %v2351 = vmul.f32 %v949, %v2287
  %v2352 = vmul.f32 %v951, %v2288
  %v2353 = vmul.f32 %v953, %v2289
  %v2354 = vmul.f32 %v955, %v2290
  %v2355 = vmul.f32 %v957, %v2291
  %v2356 = vmul.f32 %v959, %v2292
  %v2357 = vmul.f32 %v961, %v2293
  %v2358 = vmul.f32 %v963, %v2294
  %v2359 = vmul.f32 %v965, %v2295
  %v2360 = vmul.f32 %v967, %v2296
  %v2361 = vmul.f32 %v969, %v2297
  %v2362 = vmul.f32 %v971, %v2298
  %v2363 = vmul.f32 %v973, %v2299
  %v2364 = vmul.f32 %v975, %v2300
  %v2365 = vmul.f32 %v977, %v2301
  %v2366 = vmul.f32 %v979, %v2302
  %v2367 = vmul.f32 %v981, %v2303
  %v2368 = vmul.f32 %v983, %v2304
  %v2369 = vmul.f32 %v985, %v2305
  %v2370 = vmul.f32 %v987, %v2306
  %v2371 = vmul.f32 %v989, %v2307
  %v2372 = vmul.f32 %v991, %v2308
  %v2373 = vmul.f32 %v993, %v2309
  %v2374 = vmul.f32 %v995, %v2310
  %v2375 = vmul.f32 %v997, %v2311
  %v2376 = vmul.f32 %v999, %v2312
  %v2377 = vmul.f32 %v1001, %v2313
  %v2378 = vmul.f32 %v1003, %v2314
  %v2379 = vmul.f32 %v1005, %v2315
  %v2380 = vmul.f32 %v1007, %v2316
  %v2381 = vmul.f32 %v1009, %v2317
  %v2382 = vmul.f32 %v1011, %v2318
  %v2383 = vmul.f32 %v1013, %v2319
  %v2384 = vmul.f32 %v1015, %v2320
  %v2385 = vmul.f32 %v1017, %v2321
  %v2386 = vmul.f32 %v1019, %v2322
  %v2387 = vmul.f32 %v1021, %v2323
  %v2388 = vmul.f32 %v1023, %v2324
  %v2389 = vmul.f32 %v1025, %v2325
  %v2390 = vmul.f32 %v1027, %v2326
  %v2391 = vmul.f32 %v1029, %v2327
  %v2392 = vmul.f32 %v1031, %v2328
  %v2393 = vmul.f32 %v1033, %v2329
  %v2394 = vmul.f32 %v1035, %v2330
  %v2395 = vmul.f32 %v1037, %v2331
  %v2396 = vmul.f32 %v1039, %v2332
  %v2397 = vmul.f32 %v1041, %v2333
  %v2398 = vmul.f32 %v1043, %v2334
  %v2399 = vmul.f32 %v1045, %v2335
  %v2400 = vmul.f32 %v1047, %v2336
  %v2401 = vmul.f32 %v1049, %v2337
  %v2402 = vmul.f32 %v1051, %v2338
  %v2403 = vmul.f32 %v1053, %v2339
  %v2404 = vmul.f32 %v1055, %v2340
  %v2405 = vmul.f32 %v1057, %v2341
  %v2406 = vmul.f32 %v1059, %v2342
  %v2407 = vmul.f32 %v1061, %v2343
  %v2408 = vmul.f32 %v1062, %v2344
  %v2409 = vmul.f32 %v874, %v2345
  %v2410 = vmul.f32 %v876, %v2346
  %v2411 = vmul.f32 %v1125, %v2347
  %v2412 = vmul.f32 %v943, %v2348
  %v2413 = vadd.f32 %v2220, %v2349
  %v2414 = vadd.f32 %v2221, %v2350
  %v2415 = vadd.f32 %v2222, %v2351
  %v2416 = vadd.f32 %v2223, %v2352
  %v2417 = vadd.f32 %v2224, %v2353
  %v2418 = vadd.f32 %v2225, %v2354
  %v2419 = vadd.f32 %v2226, %v2355
  %v2420 = vadd.f32 %v2227, %v2356
  %v2421 = vadd.f32 %v2228, %v2357
  %v2422 = vadd.f32 %v2229, %v2358
  %v2423 = vadd.f32 %v2230, %v2359
  %v2424 = vadd.f32 %v2231, %v2360
  %v2425 = vadd.f32 %v2232, %v2361
  %v2426 = vadd.f32 %v2233, %v2362
  %v2427 = vadd.f32 %v2234, %v2363
  %v2428 = vadd.f32 %v2235, %v2364
  %v2429 = vadd.f32 %v2236, %v2365
  %v2430 = vadd.f32 %v2237, %v2366
  %v2431 = vadd.f32 %v2238, %v2367
  %v2432 = vadd.f32 %v2239, %v2368
  %v2433 = vadd.f32 %v2240, %v2369
  %v2434 = vadd.f32 %v2241, %v2370
  %v2435 = vadd.f32 %v2242, %v2371
  %v2436 = vadd.f32 %v2243, %v2372
  %v2437 = vadd.f32 %v2244, %v2373
  %v2438 = vadd.f32 %v2245, %v2374
  %v2439 = vadd.f32 %v2246, %v2375
  %v2440 = vadd.f32 %v2247, %v2376
  %v2441 = vadd.f32 %v2248, %v2377
  %v2442 = vadd.f32 %v2249, %v2378
  %v2443 = vadd.f32 %v2250, %v2379
  %v2444 = vadd.f32 %v2251, %v2380
  %v2445 = vadd.f32 %v2252, %v2381
  %v2446 = vadd.f32 %v2253, %v2382
  %v2447 = vadd.f32 %v2254, %v2383
  %v2448 = vadd.f32 %v2255, %v2384
  %v2449 = vadd.f32 %v2256, %v2385
  %v2450 = vadd.f32 %v2257, %v2386
  %v2451 = vadd.f32 %v2258, %v2387
  %v2452 = vadd.f32 %v2259, %v2388
  %v2453 = vadd.f32 %v2260, %v2389
  %v2454 = vadd.f32 %v2261, %v2390
  %v2455 = vadd.f32 %v2262, %v2391
  %v2456 = vadd.f32 %v2263, %v2392
  %v2457 = vadd.f32 %v2264, %v2393
  %v2458 = vadd.f32 %v2265, %v2394
  %v2459 = vadd.f32 %v2266, %v2395
  %v2460 = vadd.f32 %v2267, %v2396
  %v2461 = vadd.f32 %v2268, %v2397
  %v2462 = vadd.f32 %v2269, %v2398
  %v2463 = vadd.f32 %v2270, %v2399
  %v2464 = vadd.f32 %v2271, %v2400
  %v2465 = vadd.f32 %v2272, %v2401
  %v2466 = vadd.f32 %v2273, %v2402
  %v2467 = vadd.f32 %v2274, %v2403
  %v2468 = vadd.f32 %v2275, %v2404
  %v2469 = vadd.f32 %v2276, %v2405
  %v2470 = vadd.f32 %v2277, %v2406
  %v2471 = vadd.f32 %v2278, %v2407
  %v2472 = vadd.f32 %v2279, %v2408
  %v2473 = vadd.f32 %v2280, %v2409
  %v2474 = vadd.f32 %v2281, %v2410
  %v2475 = vadd.f32 %v2282, %v2411
  %v2476 = vadd.f32 %v2283, %v2412
  %s2477 = scalar_lea.vmem %s2, 3584
  %v2478 = vld [vmem:[%s2477] sm:$0xff]
  %v2479 = vld [vmem:[%s2477 + $0x8] sm:$0xff]
  %v2480 = vld [vmem:[%s2477 + $0x10] sm:$0xff]
  %v2481 = vld [vmem:[%s2477 + $0x18] sm:$0xff]
  %v2482 = vld [vmem:[%s2477 + $0x20] sm:$0xff]
  %v2483 = vld [vmem:[%s2477 + $0x28] sm:$0xff]
  %v2484 = vld [vmem:[%s2477 + $0x30] sm:$0xff]
  %v2485 = vld [vmem:[%s2477 + $0x38] sm:$0xff]
  %v2486 = vld [vmem:[%s2477 + $0x40] sm:$0xff]
  %v2487 = vld [vmem:[%s2477 + $0x48] sm:$0xff]
  %v2488 = vld [vmem:[%s2477 + $0x50] sm:$0xff]
  %v2489 = vld [vmem:[%s2477 + $0x58] sm:$0xff]
  %v2490 = vld [vmem:[%s2477 + $0x60] sm:$0xff]
  %v2491 = vld [vmem:[%s2477 + $0x68] sm:$0xff]
  %v2492 = vld [vmem:[%s2477 + $0x70] sm:$0xff]
  %v2493 = vld [vmem:[%s2477 + $0x78] sm:$0xff]
  %v2494 = vld [vmem:[%s2477 + $0x80] sm:$0xff]
  %v2495 = vld [vmem:[%s2477 + $0x88] sm:$0xff]
  %v2496 = vld [vmem:[%s2477 + $0x90] sm:$0xff]
  %v2497 = vld [vmem:[%s2477 + $0x98] sm:$0xff]
  %v2498 = vld [vmem:[%s2477 + $0xa0] sm:$0xff]
  %v2499 = vld [vmem:[%s2477 + $0xa8] sm:$0xff]
  %v2500 = vld [vmem:[%s2477 + $0xb0] sm:$0xff]
  %v2501 = vld [vmem:[%s2477 + $0xb8] sm:$0xff]
  %v2502 = vld [vmem:[%s2477 + $0xc0] sm:$0xff]
  %v2503 = vld [vmem:[%s2477 + $0xc8] sm:$0xff]
  %v2504 = vld [vmem:[%s2477 + $0xd0] sm:$0xff]
  %v2505 = vld [vmem:[%s2477 + $0xd8] sm:$0xff]
  %v2506 = vld [vmem:[%s2477 + $0xe0] sm:$0xff]
  %v2507 = vld [vmem:[%s2477 + $0xe8] sm:$0xff]
  %v2508 = vld [vmem:[%s2477 + $0xf0] sm:$0xff]
  %v2509 = vld [vmem:[%s2477 + $0xf8] sm:$0xff]
  %v2510 = vld [vmem:[%s2477 + $0x100] sm:$0xff]
  %v2511 = vld [vmem:[%s2477 + $0x108] sm:$0xff]
  %v2512 = vld [vmem:[%s2477 + $0x110] sm:$0xff]
  %v2513 = vld [vmem:[%s2477 + $0x118] sm:$0xff]
  %v2514 = vld [vmem:[%s2477 + $0x120] sm:$0xff]
  %v2515 = vld [vmem:[%s2477 + $0x128] sm:$0xff]
  %v2516 = vld [vmem:[%s2477 + $0x130] sm:$0xff]
  %v2517 = vld [vmem:[%s2477 + $0x138] sm:$0xff]
  %v2518 = vld [vmem:[%s2477 + $0x140] sm:$0xff]
  %v2519 = vld [vmem:[%s2477 + $0x148] sm:$0xff]
  %v2520 = vld [vmem:[%s2477 + $0x150] sm:$0xff]
  %v2521 = vld [vmem:[%s2477 + $0x158] sm:$0xff]
  %v2522 = vld [vmem:[%s2477 + $0x160] sm:$0xff]
  %v2523 = vld [vmem:[%s2477 + $0x168] sm:$0xff]
  %v2524 = vld [vmem:[%s2477 + $0x170] sm:$0xff]
  %v2525 = vld [vmem:[%s2477 + $0x178] sm:$0xff]
  %v2526 = vld [vmem:[%s2477 + $0x180] sm:$0xff]
  %v2527 = vld [vmem:[%s2477 + $0x188] sm:$0xff]
  %v2528 = vld [vmem:[%s2477 + $0x190] sm:$0xff]
  %v2529 = vld [vmem:[%s2477 + $0x198] sm:$0xff]
  %v2530 = vld [vmem:[%s2477 + $0x1a0] sm:$0xff]
  %v2531 = vld [vmem:[%s2477 + $0x1a8] sm:$0xff]
  %v2532 = vld [vmem:[%s2477 + $0x1b0] sm:$0xff]
  %v2533 = vld [vmem:[%s2477 + $0x1b8] sm:$0xff]
  %v2534 = vld [vmem:[%s2477 + $0x1c0] sm:$0xff]
  %v2535 = vld [vmem:[%s2477 + $0x1c8] sm:$0xff]
  %v2536 = vld [vmem:[%s2477 + $0x1d0] sm:$0xff]
  %v2537 = vld [vmem:[%s2477 + $0x1d8] sm:$0xff]
  %v2538 = vld [vmem:[%s2477 + $0x1e0] sm:$0xff]
  %v2539 = vld [vmem:[%s2477 + $0x1e8] sm:$0xff]
  %v2540 = vld [vmem:[%s2477 + $0x1f0] sm:$0xff]
  %v2541 = vld [vmem:[%s2477 + $0x1f8] sm:$0xff]
  %v2542 = vmul.f32 %v677, %v2478
  %v2543 = vmul.f32 %v678, %v2479
  %v2544 = vmul.f32 %v679, %v2480
  %v2545 = vmul.f32 %v680, %v2481
  %v2546 = vmul.f32 %v681, %v2482
  %v2547 = vmul.f32 %v682, %v2483
  %v2548 = vmul.f32 %v683, %v2484
  %v2549 = vmul.f32 %v684, %v2485
  %v2550 = vmul.f32 %v685, %v2486
  %v2551 = vmul.f32 %v686, %v2487
  %v2552 = vmul.f32 %v687, %v2488
  %v2553 = vmul.f32 %v688, %v2489
  %v2554 = vmul.f32 %v689, %v2490
  %v2555 = vmul.f32 %v690, %v2491
  %v2556 = vmul.f32 %v691, %v2492
  %v2557 = vmul.f32 %v692, %v2493
  %v2558 = vmul.f32 %v693, %v2494
  %v2559 = vmul.f32 %v694, %v2495
  %v2560 = vmul.f32 %v695, %v2496
  %v2561 = vmul.f32 %v696, %v2497
  %v2562 = vmul.f32 %v697, %v2498
  %v2563 = vmul.f32 %v698, %v2499
  %v2564 = vmul.f32 %v699, %v2500
  %v2565 = vmul.f32 %v700, %v2501
  %v2566 = vmul.f32 %v701, %v2502
  %v2567 = vmul.f32 %v702, %v2503
  %v2568 = vmul.f32 %v703, %v2504
  %v2569 = vmul.f32 %v704, %v2505
  %v2570 = vmul.f32 %v705, %v2506
  %v2571 = vmul.f32 %v706, %v2507
  %v2572 = vmul.f32 %v707, %v2508
  %v2573 = vmul.f32 %v708, %v2509
  %v2574 = vmul.f32 %v709, %v2510
  %v2575 = vmul.f32 %v710, %v2511
  %v2576 = vmul.f32 %v711, %v2512
  %v2577 = vmul.f32 %v712, %v2513
  %v2578 = vmul.f32 %v713, %v2514
  %v2579 = vmul.f32 %v714, %v2515
  %v2580 = vmul.f32 %v715, %v2516
  %v2581 = vmul.f32 %v716, %v2517
  %v2582 = vmul.f32 %v717, %v2518
  %v2583 = vmul.f32 %v718, %v2519
  %v2584 = vmul.f32 %v719, %v2520
  %v2585 = vmul.f32 %v720, %v2521
  %v2586 = vmul.f32 %v721, %v2522
  %v2587 = vmul.f32 %v722, %v2523
  %v2588 = vmul.f32 %v723, %v2524
  %v2589 = vmul.f32 %v724, %v2525
  %v2590 = vmul.f32 %v725, %v2526
  %v2591 = vmul.f32 %v726, %v2527
  %v2592 = vmul.f32 %v727, %v2528
  %v2593 = vmul.f32 %v728, %v2529
  %v2594 = vmul.f32 %v729, %v2530
  %v2595 = vmul.f32 %v730, %v2531
  %v2596 = vmul.f32 %v731, %v2532
  %v2597 = vmul.f32 %v732, %v2533
  %v2598 = vmul.f32 %v733, %v2534
  %v2599 = vmul.f32 %v734, %v2535
  %v2600 = vmul.f32 %v735, %v2536
  %v2601 = vmul.f32 %v736, %v2537
  %v2602 = vmul.f32 %v737, %v2538
  %v2603 = vmul.f32 %v738, %v2539
  %v2604 = vmul.f32 %v675, %v2540
  %v2605 = vmul.f32 %v676, %v2541
  %v2606 = vadd.f32 %v2413, %v2542
  %v2607 = vadd.f32 %v2414, %v2543
  %v2608 = vadd.f32 %v2415, %v2544
  %v2609 = vadd.f32 %v2416, %v2545
  %v2610 = vadd.f32 %v2417, %v2546
  %v2611 = vadd.f32 %v2418, %v2547
  %v2612 = vadd.f32 %v2419, %v2548
  %v2613 = vadd.f32 %v2420, %v2549
  %v2614 = vadd.f32 %v2421, %v2550
  %v2615 = vadd.f32 %v2422, %v2551
  %v2616 = vadd.f32 %v2423, %v2552
  %v2617 = vadd.f32 %v2424, %v2553
  %v2618 = vadd.f32 %v2425, %v2554
  %v2619 = vadd.f32 %v2426, %v2555
  %v2620 = vadd.f32 %v2427, %v2556
  %v2621 = vadd.f32 %v2428, %v2557
  %v2622 = vadd.f32 %v2429, %v2558
  %v2623 = vadd.f32 %v2430, %v2559
  %v2624 = vadd.f32 %v2431, %v2560
  %v2625 = vadd.f32 %v2432, %v2561
  %v2626 = vadd.f32 %v2433, %v2562
  %v2627 = vadd.f32 %v2434, %v2563
  %v2628 = vadd.f32 %v2435, %v2564
  %v2629 = vadd.f32 %v2436, %v2565
  %v2630 = vadd.f32 %v2437, %v2566
  %v2631 = vadd.f32 %v2438, %v2567
  %v2632 = vadd.f32 %v2439, %v2568
  %v2633 = vadd.f32 %v2440, %v2569
  %v2634 = vadd.f32 %v2441, %v2570
  %v2635 = vadd.f32 %v2442, %v2571
  %v2636 = vadd.f32 %v2443, %v2572
  %v2637 = vadd.f32 %v2444, %v2573
  %v2638 = vadd.f32 %v2445, %v2574
  %v2639 = vadd.f32 %v2446, %v2575
  %v2640 = vadd.f32 %v2447, %v2576
  %v2641 = vadd.f32 %v2448, %v2577
  %v2642 = vadd.f32 %v2449, %v2578
  %v2643 = vadd.f32 %v2450, %v2579
  %v2644 = vadd.f32 %v2451, %v2580
  %v2645 = vadd.f32 %v2452, %v2581
  %v2646 = vadd.f32 %v2453, %v2582
  %v2647 = vadd.f32 %v2454, %v2583
  %v2648 = vadd.f32 %v2455, %v2584
  %v2649 = vadd.f32 %v2456, %v2585
  %v2650 = vadd.f32 %v2457, %v2586
  %v2651 = vadd.f32 %v2458, %v2587
  %v2652 = vadd.f32 %v2459, %v2588
  %v2653 = vadd.f32 %v2460, %v2589
  %v2654 = vadd.f32 %v2461, %v2590
  %v2655 = vadd.f32 %v2462, %v2591
  %v2656 = vadd.f32 %v2463, %v2592
  %v2657 = vadd.f32 %v2464, %v2593
  %v2658 = vadd.f32 %v2465, %v2594
  %v2659 = vadd.f32 %v2466, %v2595
  %v2660 = vadd.f32 %v2467, %v2596
  %v2661 = vadd.f32 %v2468, %v2597
  %v2662 = vadd.f32 %v2469, %v2598
  %v2663 = vadd.f32 %v2470, %v2599
  %v2664 = vadd.f32 %v2471, %v2600
  %v2665 = vadd.f32 %v2472, %v2601
  %v2666 = vadd.f32 %v2473, %v2602
  %v2667 = vadd.f32 %v2474, %v2603
  %v2668 = vadd.f32 %v2475, %v2604
  %v2669 = vadd.f32 %v2476, %v2605
  %s2670 = scalar_lea.vmem %s2, 4096
  %v2671 = vld [vmem:[%s2670] sm:$0xff]
  %v2672 = vld [vmem:[%s2670 + $0x8] sm:$0xff]
  %v2673 = vld [vmem:[%s2670 + $0x10] sm:$0xff]
  %v2674 = vld [vmem:[%s2670 + $0x18] sm:$0xff]
  %v2675 = vld [vmem:[%s2670 + $0x20] sm:$0xff]
  %v2676 = vld [vmem:[%s2670 + $0x28] sm:$0xff]
  %v2677 = vld [vmem:[%s2670 + $0x30] sm:$0xff]
  %v2678 = vld [vmem:[%s2670 + $0x38] sm:$0xff]
  %v2679 = vld [vmem:[%s2670 + $0x40] sm:$0xff]
  %v2680 = vld [vmem:[%s2670 + $0x48] sm:$0xff]
  %v2681 = vld [vmem:[%s2670 + $0x50] sm:$0xff]
  %v2682 = vld [vmem:[%s2670 + $0x58] sm:$0xff]
  %v2683 = vld [vmem:[%s2670 + $0x60] sm:$0xff]
  %v2684 = vld [vmem:[%s2670 + $0x68] sm:$0xff]
  %v2685 = vld [vmem:[%s2670 + $0x70] sm:$0xff]
  %v2686 = vld [vmem:[%s2670 + $0x78] sm:$0xff]
  %v2687 = vld [vmem:[%s2670 + $0x80] sm:$0xff]
  %v2688 = vld [vmem:[%s2670 + $0x88] sm:$0xff]
  %v2689 = vld [vmem:[%s2670 + $0x90] sm:$0xff]
  %v2690 = vld [vmem:[%s2670 + $0x98] sm:$0xff]
  %v2691 = vld [vmem:[%s2670 + $0xa0] sm:$0xff]
  %v2692 = vld [vmem:[%s2670 + $0xa8] sm:$0xff]
  %v2693 = vld [vmem:[%s2670 + $0xb0] sm:$0xff]
  %v2694 = vld [vmem:[%s2670 + $0xb8] sm:$0xff]
  %v2695 = vld [vmem:[%s2670 + $0xc0] sm:$0xff]
  %v2696 = vld [vmem:[%s2670 + $0xc8] sm:$0xff]
  %v2697 = vld [vmem:[%s2670 + $0xd0] sm:$0xff]
  %v2698 = vld [vmem:[%s2670 + $0xd8] sm:$0xff]
  %v2699 = vld [vmem:[%s2670 + $0xe0] sm:$0xff]
  %v2700 = vld [vmem:[%s2670 + $0xe8] sm:$0xff]
  %v2701 = vld [vmem:[%s2670 + $0xf0] sm:$0xff]
  %v2702 = vld [vmem:[%s2670 + $0xf8] sm:$0xff]
  %v2703 = vld [vmem:[%s2670 + $0x100] sm:$0xff]
  %v2704 = vld [vmem:[%s2670 + $0x108] sm:$0xff]
  %v2705 = vld [vmem:[%s2670 + $0x110] sm:$0xff]
  %v2706 = vld [vmem:[%s2670 + $0x118] sm:$0xff]
  %v2707 = vld [vmem:[%s2670 + $0x120] sm:$0xff]
  %v2708 = vld [vmem:[%s2670 + $0x128] sm:$0xff]
  %v2709 = vld [vmem:[%s2670 + $0x130] sm:$0xff]
  %v2710 = vld [vmem:[%s2670 + $0x138] sm:$0xff]
  %v2711 = vld [vmem:[%s2670 + $0x140] sm:$0xff]
  %v2712 = vld [vmem:[%s2670 + $0x148] sm:$0xff]
  %v2713 = vld [vmem:[%s2670 + $0x150] sm:$0xff]
  %v2714 = vld [vmem:[%s2670 + $0x158] sm:$0xff]
  %v2715 = vld [vmem:[%s2670 + $0x160] sm:$0xff]
  %v2716 = vld [vmem:[%s2670 + $0x168] sm:$0xff]
  %v2717 = vld [vmem:[%s2670 + $0x170] sm:$0xff]
  %v2718 = vld [vmem:[%s2670 + $0x178] sm:$0xff]
  %v2719 = vld [vmem:[%s2670 + $0x180] sm:$0xff]
  %v2720 = vld [vmem:[%s2670 + $0x188] sm:$0xff]
  %v2721 = vld [vmem:[%s2670 + $0x190] sm:$0xff]
  %v2722 = vld [vmem:[%s2670 + $0x198] sm:$0xff]
  %v2723 = vld [vmem:[%s2670 + $0x1a0] sm:$0xff]
  %v2724 = vld [vmem:[%s2670 + $0x1a8] sm:$0xff]
  %v2725 = vld [vmem:[%s2670 + $0x1b0] sm:$0xff]
  %v2726 = vld [vmem:[%s2670 + $0x1b8] sm:$0xff]
  %v2727 = vld [vmem:[%s2670 + $0x1c0] sm:$0xff]
  %v2728 = vld [vmem:[%s2670 + $0x1c8] sm:$0xff]
  %v2729 = vld [vmem:[%s2670 + $0x1d0] sm:$0xff]
  %v2730 = vld [vmem:[%s2670 + $0x1d8] sm:$0xff]
  %v2731 = vld [vmem:[%s2670 + $0x1e0] sm:$0xff]
  %v2732 = vld [vmem:[%s2670 + $0x1e8] sm:$0xff]
  %v2733 = vld [vmem:[%s2670 + $0x1f0] sm:$0xff]
  %v2734 = vld [vmem:[%s2670 + $0x1f8] sm:$0xff]
  %v2735 = vmul.f32 %v1523, %v2671
  %v2736 = vmul.f32 %v1525, %v2672
  %v2737 = vmul.f32 %v1527, %v2673
  %v2738 = vmul.f32 %v1529, %v2674
  %v2739 = vmul.f32 %v1531, %v2675
  %v2740 = vmul.f32 %v1533, %v2676
  %v2741 = vmul.f32 %v1535, %v2677
  %v2742 = vmul.f32 %v1537, %v2678
  %v2743 = vmul.f32 %v1539, %v2679
  %v2744 = vmul.f32 %v1541, %v2680
  %v2745 = vmul.f32 %v1543, %v2681
  %v2746 = vmul.f32 %v1545, %v2682
  %v2747 = vmul.f32 %v1547, %v2683
  %v2748 = vmul.f32 %v1549, %v2684
  %v2749 = vmul.f32 %v1551, %v2685
  %v2750 = vmul.f32 %v1553, %v2686
  %v2751 = vmul.f32 %v1555, %v2687
  %v2752 = vmul.f32 %v1557, %v2688
  %v2753 = vmul.f32 %v1559, %v2689
  %v2754 = vmul.f32 %v1561, %v2690
  %v2755 = vmul.f32 %v1563, %v2691
  %v2756 = vmul.f32 %v1565, %v2692
  %v2757 = vmul.f32 %v1567, %v2693
  %v2758 = vmul.f32 %v1569, %v2694
  %v2759 = vmul.f32 %v1571, %v2695
  %v2760 = vmul.f32 %v1573, %v2696
  %v2761 = vmul.f32 %v1575, %v2697
  %v2762 = vmul.f32 %v1577, %v2698
  %v2763 = vmul.f32 %v1579, %v2699
  %v2764 = vmul.f32 %v1581, %v2700
  %v2765 = vmul.f32 %v1583, %v2701
  %v2766 = vmul.f32 %v1585, %v2702
  %v2767 = vmul.f32 %v1587, %v2703
  %v2768 = vmul.f32 %v1589, %v2704
  %v2769 = vmul.f32 %v1591, %v2705
  %v2770 = vmul.f32 %v1593, %v2706
  %v2771 = vmul.f32 %v1595, %v2707
  %v2772 = vmul.f32 %v1597, %v2708
  %v2773 = vmul.f32 %v1599, %v2709
  %v2774 = vmul.f32 %v1601, %v2710
  %v2775 = vmul.f32 %v1603, %v2711
  %v2776 = vmul.f32 %v1605, %v2712
  %v2777 = vmul.f32 %v1607, %v2713
  %v2778 = vmul.f32 %v1609, %v2714
  %v2779 = vmul.f32 %v1611, %v2715
  %v2780 = vmul.f32 %v1613, %v2716
  %v2781 = vmul.f32 %v1615, %v2717
  %v2782 = vmul.f32 %v1617, %v2718
  %v2783 = vmul.f32 %v1619, %v2719
  %v2784 = vmul.f32 %v1621, %v2720
  %v2785 = vmul.f32 %v1623, %v2721
  %v2786 = vmul.f32 %v1625, %v2722
  %v2787 = vmul.f32 %v1627, %v2723
  %v2788 = vmul.f32 %v1629, %v2724
  %v2789 = vmul.f32 %v1631, %v2725
  %v2790 = vmul.f32 %v1633, %v2726
  %v2791 = vmul.f32 %v1635, %v2727
  %v2792 = vmul.f32 %v1637, %v2728
  %v2793 = vmul.f32 %v1639, %v2729
  %v2794 = vmul.f32 %v1640, %v2730
  %v2795 = vmul.f32 %v1514, %v2731
  %v2796 = vmul.f32 %v1704, %v2732
  %v2797 = vmul.f32 %v1519, %v2733
  %v2798 = vmul.f32 %v1521, %v2734
  %v2799 = vadd.f32 %v2606, %v2735
  %v2800 = vadd.f32 %v2607, %v2736
  %v2801 = vadd.f32 %v2608, %v2737
  %v2802 = vadd.f32 %v2609, %v2738
  %v2803 = vadd.f32 %v2610, %v2739
  %v2804 = vadd.f32 %v2611, %v2740
  %v2805 = vadd.f32 %v2612, %v2741
  %v2806 = vadd.f32 %v2613, %v2742
  %v2807 = vadd.f32 %v2614, %v2743
  %v2808 = vadd.f32 %v2615, %v2744
  %v2809 = vadd.f32 %v2616, %v2745
  %v2810 = vadd.f32 %v2617, %v2746
  %v2811 = vadd.f32 %v2618, %v2747
  %v2812 = vadd.f32 %v2619, %v2748
  %v2813 = vadd.f32 %v2620, %v2749
  %v2814 = vadd.f32 %v2621, %v2750
  %v2815 = vadd.f32 %v2622, %v2751
  %v2816 = vadd.f32 %v2623, %v2752
  %v2817 = vadd.f32 %v2624, %v2753
  %v2818 = vadd.f32 %v2625, %v2754
  %v2819 = vadd.f32 %v2626, %v2755
  %v2820 = vadd.f32 %v2627, %v2756
  %v2821 = vadd.f32 %v2628, %v2757
  %v2822 = vadd.f32 %v2629, %v2758
  %v2823 = vadd.f32 %v2630, %v2759
  %v2824 = vadd.f32 %v2631, %v2760
  %v2825 = vadd.f32 %v2632, %v2761
  %v2826 = vadd.f32 %v2633, %v2762
  %v2827 = vadd.f32 %v2634, %v2763
  %v2828 = vadd.f32 %v2635, %v2764
  %v2829 = vadd.f32 %v2636, %v2765
  %v2830 = vadd.f32 %v2637, %v2766
  %v2831 = vadd.f32 %v2638, %v2767
  %v2832 = vadd.f32 %v2639, %v2768
  %v2833 = vadd.f32 %v2640, %v2769
  %v2834 = vadd.f32 %v2641, %v2770
  %v2835 = vadd.f32 %v2642, %v2771
  %v2836 = vadd.f32 %v2643, %v2772
  %v2837 = vadd.f32 %v2644, %v2773
  %v2838 = vadd.f32 %v2645, %v2774
  %v2839 = vadd.f32 %v2646, %v2775
  %v2840 = vadd.f32 %v2647, %v2776
  %v2841 = vadd.f32 %v2648, %v2777
  %v2842 = vadd.f32 %v2649, %v2778
  %v2843 = vadd.f32 %v2650, %v2779
  %v2844 = vadd.f32 %v2651, %v2780
  %v2845 = vadd.f32 %v2652, %v2781
  %v2846 = vadd.f32 %v2653, %v2782
  %v2847 = vadd.f32 %v2654, %v2783
  %v2848 = vadd.f32 %v2655, %v2784
  %v2849 = vadd.f32 %v2656, %v2785
  %v2850 = vadd.f32 %v2657, %v2786
  %v2851 = vadd.f32 %v2658, %v2787
  %v2852 = vadd.f32 %v2659, %v2788
  %v2853 = vadd.f32 %v2660, %v2789
  %v2854 = vadd.f32 %v2661, %v2790
  %v2855 = vadd.f32 %v2662, %v2791
  %v2856 = vadd.f32 %v2663, %v2792
  %v2857 = vadd.f32 %v2664, %v2793
  %v2858 = vadd.f32 %v2665, %v2794
  %v2859 = vadd.f32 %v2666, %v2795
  %v2860 = vadd.f32 %v2667, %v2796
  %v2861 = vadd.f32 %v2668, %v2797
  %v2862 = vadd.f32 %v2669, %v2798
  %v2863 = vlaneseq
  %v2864 = vshrl.u32 %v2863, 7
  %v2865 = vsub.s32 0, %v2864
  %v2866 = vrot.slane %v24, %v2865
  %v2867 = vadd.f32 %v2799, %v2866
  %v2868 = vadd.f32 %v2800, %v2866
  %v2869 = vadd.f32 %v2801, %v2866
  %v2870 = vadd.f32 %v2802, %v2866
  %v2871 = vadd.f32 %v2803, %v2866
  %v2872 = vadd.f32 %v2804, %v2866
  %v2873 = vadd.f32 %v2805, %v2866
  %v2874 = vadd.f32 %v2806, %v2866
  %v2875 = vadd.f32 %v2807, %v2866
  %v2876 = vadd.f32 %v2808, %v2866
  %v2877 = vadd.f32 %v2809, %v2866
  %v2878 = vadd.f32 %v2810, %v2866
  %v2879 = vadd.f32 %v2811, %v2866
  %v2880 = vadd.f32 %v2812, %v2866
  %v2881 = vadd.f32 %v2813, %v2866
  %v2882 = vadd.f32 %v2814, %v2866
  %v2883 = vadd.f32 %v2815, %v2866
  %v2884 = vadd.f32 %v2816, %v2866
  %v2885 = vadd.f32 %v2817, %v2866
  %v2886 = vadd.f32 %v2818, %v2866
  %v2887 = vadd.f32 %v2819, %v2866
  %v2888 = vadd.f32 %v2820, %v2866
  %v2889 = vadd.f32 %v2821, %v2866
  %v2890 = vadd.f32 %v2822, %v2866
  %v2891 = vadd.f32 %v2823, %v2866
  %v2892 = vadd.f32 %v2824, %v2866
  %v2893 = vadd.f32 %v2825, %v2866
  %v2894 = vadd.f32 %v2826, %v2866
  %v2895 = vadd.f32 %v2827, %v2866
  %v2896 = vadd.f32 %v2828, %v2866
  %v2897 = vadd.f32 %v2829, %v2866
  %v2898 = vadd.f32 %v2830, %v2866
  %v2899 = vadd.f32 %v2831, %v2866
  %v2900 = vadd.f32 %v2832, %v2866
  %v2901 = vadd.f32 %v2833, %v2866
  %v2902 = vadd.f32 %v2834, %v2866
  %v2903 = vadd.f32 %v2835, %v2866
  %v2904 = vadd.f32 %v2836, %v2866
  %v2905 = vadd.f32 %v2837, %v2866
  %v2906 = vadd.f32 %v2838, %v2866
  %v2907 = vadd.f32 %v2839, %v2866
  %v2908 = vadd.f32 %v2840, %v2866
  %v2909 = vadd.f32 %v2841, %v2866
  %v2910 = vadd.f32 %v2842, %v2866
  %v2911 = vadd.f32 %v2843, %v2866
  %v2912 = vadd.f32 %v2844, %v2866
  %v2913 = vadd.f32 %v2845, %v2866
  %v2914 = vadd.f32 %v2846, %v2866
  %v2915 = vadd.f32 %v2847, %v2866
  %v2916 = vadd.f32 %v2848, %v2866
  %v2917 = vadd.f32 %v2849, %v2866
  %v2918 = vadd.f32 %v2850, %v2866
  %v2919 = vadd.f32 %v2851, %v2866
  %v2920 = vadd.f32 %v2852, %v2866
  %v2921 = vadd.f32 %v2853, %v2866
  %v2922 = vadd.f32 %v2854, %v2866
  %v2923 = vadd.f32 %v2855, %v2866
  %v2924 = vadd.f32 %v2856, %v2866
  %v2925 = vadd.f32 %v2857, %v2866
  %v2926 = vadd.f32 %v2858, %v2866
  %v2927 = vadd.f32 %v2859, %v2866
  %v2928 = vadd.f32 %v2860, %v2866
  %v2929 = vadd.f32 %v2861, %v2866
  %v2930 = vadd.f32 %v2862, %v2866
  %v2931 = vmax.f32 %v2867, 0.0
  %v2932 = vmax.f32 %v2868, 0.0
  %v2933 = vmax.f32 %v2869, 0.0
  %v2934 = vmax.f32 %v2870, 0.0
  %v2935 = vmax.f32 %v2871, 0.0
  %v2936 = vmax.f32 %v2872, 0.0
  %v2937 = vmax.f32 %v2873, 0.0
  %v2938 = vmax.f32 %v2874, 0.0
  %v2939 = vmax.f32 %v2875, 0.0
  %v2940 = vmax.f32 %v2876, 0.0
  %v2941 = vmax.f32 %v2877, 0.0
  %v2942 = vmax.f32 %v2878, 0.0
  %v2943 = vmax.f32 %v2879, 0.0
  %v2944 = vmax.f32 %v2880, 0.0
  %v2945 = vmax.f32 %v2881, 0.0
  %v2946 = vmax.f32 %v2882, 0.0
  %v2947 = vmax.f32 %v2883, 0.0
  %v2948 = vmax.f32 %v2884, 0.0
  %v2949 = vmax.f32 %v2885, 0.0
  %v2950 = vmax.f32 %v2886, 0.0
  %v2951 = vmax.f32 %v2887, 0.0
  %v2952 = vmax.f32 %v2888, 0.0
  %v2953 = vmax.f32 %v2889, 0.0
  %v2954 = vmax.f32 %v2890, 0.0
  %v2955 = vmax.f32 %v2891, 0.0
  %v2956 = vmax.f32 %v2892, 0.0
  %v2957 = vmax.f32 %v2893, 0.0
  %v2958 = vmax.f32 %v2894, 0.0
  %v2959 = vmax.f32 %v2895, 0.0
  %v2960 = vmax.f32 %v2896, 0.0
  %v2961 = vmax.f32 %v2897, 0.0
  %v2962 = vmax.f32 %v2898, 0.0
  %v2963 = vmax.f32 %v2899, 0.0
  %v2964 = vmax.f32 %v2900, 0.0
  %v2965 = vmax.f32 %v2901, 0.0
  %v2966 = vmax.f32 %v2902, 0.0
  %v2967 = vmax.f32 %v2903, 0.0
  %v2968 = vmax.f32 %v2904, 0.0
  %v2969 = vmax.f32 %v2905, 0.0
  %v2970 = vmax.f32 %v2906, 0.0
  %v2971 = vmax.f32 %v2907, 0.0
  %v2972 = vmax.f32 %v2908, 0.0
  %v2973 = vmax.f32 %v2909, 0.0
  %v2974 = vmax.f32 %v2910, 0.0
  %v2975 = vmax.f32 %v2911, 0.0
  %v2976 = vmax.f32 %v2912, 0.0
  %v2977 = vmax.f32 %v2913, 0.0
  %v2978 = vmax.f32 %v2914, 0.0
  %v2979 = vmax.f32 %v2915, 0.0
  %v2980 = vmax.f32 %v2916, 0.0
  %v2981 = vmax.f32 %v2917, 0.0
  %v2982 = vmax.f32 %v2918, 0.0
  %v2983 = vmax.f32 %v2919, 0.0
  %v2984 = vmax.f32 %v2920, 0.0
  %v2985 = vmax.f32 %v2921, 0.0
  %v2986 = vmax.f32 %v2922, 0.0
  %v2987 = vmax.f32 %v2923, 0.0
  %v2988 = vmax.f32 %v2924, 0.0
  %v2989 = vmax.f32 %v2925, 0.0
  %v2990 = vmax.f32 %v2926, 0.0
  %v2991 = vmax.f32 %v2927, 0.0
  %v2992 = vmax.f32 %v2928, 0.0
  %v2993 = vmax.f32 %v2929, 0.0
  %v2994 = vmax.f32 %v2930, 0.0
  %vm2995 = vcmask 130048
  %v2996 = vsel %vm2995, %v2931, %v675
  %v2997 = vsel %vm2995, %v2932, %v676
  %v2998 = vsel %vm2995, %v2933, %v677
  %v2999 = vsel %vm2995, %v2934, %v678
  %v3000 = vsel %vm2995, %v2935, %v679
  %v3001 = vsel %vm2995, %v2936, %v680
  %v3002 = vsel %vm2995, %v2937, %v681
  %v3003 = vsel %vm2995, %v2938, %v682
  %v3004 = vsel %vm2995, %v2939, %v683
  %v3005 = vsel %vm2995, %v2940, %v684
  %v3006 = vsel %vm2995, %v2941, %v685
  %v3007 = vsel %vm2995, %v2942, %v686
  %v3008 = vsel %vm2995, %v2943, %v687
  %v3009 = vsel %vm2995, %v2944, %v688
  %v3010 = vsel %vm2995, %v2945, %v689
  %v3011 = vsel %vm2995, %v2946, %v690
  %v3012 = vsel %vm2995, %v2947, %v691
  %v3013 = vsel %vm2995, %v2948, %v692
  %v3014 = vsel %vm2995, %v2949, %v693
  %v3015 = vsel %vm2995, %v2950, %v694
  %v3016 = vsel %vm2995, %v2951, %v695
  %v3017 = vsel %vm2995, %v2952, %v696
  %v3018 = vsel %vm2995, %v2953, %v697
  %v3019 = vsel %vm2995, %v2954, %v698
  %v3020 = vsel %vm2995, %v2955, %v699
  %v3021 = vsel %vm2995, %v2956, %v700
  %v3022 = vsel %vm2995, %v2957, %v701
  %v3023 = vsel %vm2995, %v2958, %v702
  %v3024 = vsel %vm2995, %v2959, %v703
  %v3025 = vsel %vm2995, %v2960, %v704
  %v3026 = vsel %vm2995, %v2961, %v705
  %v3027 = vsel %vm2995, %v2962, %v706
  %v3028 = vsel %vm2995, %v2963, %v707
  %v3029 = vsel %vm2995, %v2964, %v708
  %v3030 = vsel %vm2995, %v2965, %v709
  %v3031 = vsel %vm2995, %v2966, %v710
  %v3032 = vsel %vm2995, %v2967, %v711
  %v3033 = vsel %vm2995, %v2968, %v712
  %v3034 = vsel %vm2995, %v2969, %v713
  %v3035 = vsel %vm2995, %v2970, %v714
  %v3036 = vsel %vm2995, %v2971, %v715
  %v3037 = vsel %vm2995, %v2972, %v716
  %v3038 = vsel %vm2995, %v2973, %v717
  %v3039 = vsel %vm2995, %v2974, %v718
  %v3040 = vsel %vm2995, %v2975, %v719
  %v3041 = vsel %vm2995, %v2976, %v720
  %v3042 = vsel %vm2995, %v2977, %v721
  %v3043 = vsel %vm2995, %v2978, %v722
  %v3044 = vsel %vm2995, %v2979, %v723
  %v3045 = vsel %vm2995, %v2980, %v724
  %v3046 = vsel %vm2995, %v2981, %v725
  %v3047 = vsel %vm2995, %v2982, %v726
  %v3048 = vsel %vm2995, %v2983, %v727
  %v3049 = vsel %vm2995, %v2984, %v728
  %v3050 = vsel %vm2995, %v2985, %v729
  %v3051 = vsel %vm2995, %v2986, %v730
  %v3052 = vsel %vm2995, %v2987, %v731
  %v3053 = vsel %vm2995, %v2988, %v732
  %v3054 = vsel %vm2995, %v2989, %v733
  %v3055 = vsel %vm2995, %v2990, %v734
  %v3056 = vsel %vm2995, %v2991, %v735
  %v3057 = vsel %vm2995, %v2992, %v736
  %v3058 = vsel %vm2995, %v2993, %v737
  %v3059 = vsel %vm2995, %v2994, %v738
  %v3060 = vlaneseq
  %v3061 = vshrl.u32 %v3060, 7
  %v3062 = vsub.s32 0, %v3061
  %v3063 = vrot.slane %v28, %v3062
  %vm3064 = vcmask 195584
  %v3066 = vsel %vm3064, %v2996, 0
  %v3069 = vsel %vm3064, %v2997, 0
  %v3072 = vsel %vm3064, %v2998, 0
  %v3075 = vsel %vm3064, %v2999, 0
  %v3078 = vsel %vm3064, %v3000, 0
  %v3081 = vsel %vm3064, %v3001, 0
  %v3084 = vsel %vm3064, %v3002, 0
  %v3087 = vsel %vm3064, %v3003, 0
  %v3090 = vsel %vm3064, %v3004, 0
  %v3093 = vsel %vm3064, %v3005, 0
  %v3096 = vsel %vm3064, %v3006, 0
  %v3099 = vsel %vm3064, %v3007, 0
  %v3102 = vsel %vm3064, %v3008, 0
  %v3105 = vsel %vm3064, %v3009, 0
  %v3108 = vsel %vm3064, %v3010, 0
  %v3111 = vsel %vm3064, %v3011, 0
  %v3114 = vsel %vm3064, %v3012, 0
  %v3117 = vsel %vm3064, %v3013, 0
  %v3120 = vsel %vm3064, %v3014, 0
  %v3123 = vsel %vm3064, %v3015, 0
  %v3126 = vsel %vm3064, %v3016, 0
  %v3129 = vsel %vm3064, %v3017, 0
  %v3132 = vsel %vm3064, %v3018, 0
  %v3135 = vsel %vm3064, %v3019, 0
  %v3138 = vsel %vm3064, %v3020, 0
  %v3141 = vsel %vm3064, %v3021, 0
  %v3144 = vsel %vm3064, %v3022, 0
  %v3147 = vsel %vm3064, %v3023, 0
  %v3150 = vsel %vm3064, %v3024, 0
  %v3153 = vsel %vm3064, %v3025, 0
  %v3156 = vsel %vm3064, %v3026, 0
  %v3159 = vsel %vm3064, %v3027, 0
  %v3162 = vsel %vm3064, %v3028, 0
  %v3165 = vsel %vm3064, %v3029, 0
  %v3168 = vsel %vm3064, %v3030, 0
  %v3171 = vsel %vm3064, %v3031, 0
  %v3174 = vsel %vm3064, %v3032, 0
  %v3177 = vsel %vm3064, %v3033, 0
  %v3180 = vsel %vm3064, %v3034, 0
  %v3183 = vsel %vm3064, %v3035, 0
  %v3186 = vsel %vm3064, %v3036, 0
  %v3189 = vsel %vm3064, %v3037, 0
  %v3192 = vsel %vm3064, %v3038, 0
  %v3195 = vsel %vm3064, %v3039, 0
  %v3198 = vsel %vm3064, %v3040, 0
  %v3201 = vsel %vm3064, %v3041, 0
  %v3204 = vsel %vm3064, %v3042, 0
  %v3207 = vsel %vm3064, %v3043, 0
  %v3210 = vsel %vm3064, %v3044, 0
  %v3213 = vsel %vm3064, %v3045, 0
  %v3216 = vsel %vm3064, %v3046, 0
  %v3219 = vsel %vm3064, %v3047, 0
  %v3222 = vsel %vm3064, %v3048, 0
  %v3225 = vsel %vm3064, %v3049, 0
  %v3228 = vsel %vm3064, %v3050, 0
  %v3231 = vsel %vm3064, %v3051, 0
  %v3234 = vsel %vm3064, %v3052, 0
  %v3237 = vsel %vm3064, %v3053, 0
  %v3240 = vsel %vm3064, %v3054, 0
  %v3243 = vsel %vm3064, %v3055, 0
  %v3246 = vsel %vm3064, %v3056, 0
  %v3249 = vsel %vm3064, %v3057, 0
  %v3252 = vsel %vm3064, %v3058, 0
  %v3255 = vsel %vm3064, %v3059, 0
  %3257 = vmatprep.subr.mxu0 0.0
  %3258 = vmatpush1.msra.mxu0 %v25
  %3259 = vmatprep.subr.mxu0 0.0
  %3260 = vmatpush1.msra.mxu0 %v26
  %3261 = vmatprep.subr.mxu0 0.0
  %3262 = vmatpush1.msra.mxu0 %v27
  %3263 = vmatprep.subr.mxu0 0.0
  %3264 = vmatpush1.msra.mxu0 0.0
  %3265 = vmatprep.subr.mxu0 0.0
  %3266 = vmatpush1.msra.mxu0 0.0
  %3267 = vmatprep.subr.mxu0 0.0
  %3268 = vmatpush1.msra.mxu0 0.0
  %3269 = vmatprep.subr.mxu0 0.0
  %3270 = vmatpush1.msra.mxu0 0.0
  %3271 = vmatprep.subr.mxu0 0.0
  %3272 = vmatpush1.msra.mxu0 0.0
  %3273 = vmatprep.subr.mxu0 0.0
  %3274 = vmatpush1.msra.mxu0 0.0
  %3275 = vmatprep.subr.mxu0 0.0
  %3276 = vmatpush1.msra.mxu0 0.0
  %3277 = vmatprep.subr.mxu0 0.0
  %3278 = vmatpush1.msra.mxu0 0.0
  %3279 = vmatprep.subr.mxu0 0.0
  %3280 = vmatpush1.msra.mxu0 0.0
  %3281 = vmatprep.subr.mxu0 0.0
  %3282 = vmatpush1.msra.mxu0 0.0
  %3283 = vmatprep.subr.mxu0 0.0
  %3284 = vmatpush1.msra.mxu0 0.0
  %3285 = vmatprep.subr.mxu0 0.0
  %3286 = vmatpush1.msra.mxu0 0.0
  %3287 = vmatprep.subr.mxu0 0.0
  %3288 = vmatpush1.msra.mxu0 0.0
  %3289 = vmatprep.subr.mxu0 0.0
  %3290 = vmatpush1.msra.mxu0 0.0
  %3291 = vmatprep.subr.mxu0 0.0
  %3292 = vmatpush1.msra.mxu0 0.0
  %3293 = vmatprep.subr.mxu0 0.0
  %3294 = vmatpush1.msra.mxu0 0.0
  %3295 = vmatprep.subr.mxu0 0.0
  %3296 = vmatpush1.msra.mxu0 0.0
  %3297 = vmatprep.subr.mxu0 0.0
  %3298 = vmatpush1.msra.mxu0 0.0
  %3299 = vmatprep.subr.mxu0 0.0
  %3300 = vmatpush1.msra.mxu0 0.0
  %3301 = vmatprep.subr.mxu0 0.0
  %3302 = vmatpush1.msra.mxu0 0.0
  %3303 = vmatprep.subr.mxu0 0.0
  %3304 = vmatpush1.msra.mxu0 0.0
  %3305 = vmatprep.subr.mxu0 0.0
  %3306 = vmatpush1.msra.mxu0 0.0
  %3307 = vmatprep.subr.mxu0 0.0
  %3308 = vmatpush1.msra.mxu0 0.0
  %3309 = vmatprep.subr.mxu0 0.0
  %3310 = vmatpush1.msra.mxu0 0.0
  %3311 = vmatprep.subr.mxu0 0.0
  %3312 = vmatpush1.msra.mxu0 0.0
  %3313 = vmatprep.subr.mxu0 0.0
  %3314 = vmatpush1.msra.mxu0 0.0
  %3315 = vmatprep.subr.mxu0 0.0
  %3316 = vmatpush1.msra.mxu0 0.0
  %3317 = vmatprep.subr.mxu0 0.0
  %3318 = vmatpush1.msra.mxu0 0.0
  %3319 = vmatprep.subr.mxu0 0.0
  %3320 = vmatpush1.msra.mxu0 0.0
  %3321 = vmatprep.mubr.f32.mxu0 0.0
  %3322 = vmatmul.mubr.f32.gmra.mrb[0].mxu0 %v3066
  %v3323 = vpop.f32.mrb[0].mxu0
  %v3324 = vadd.f32 %v3063, %v3323
  %v3325 = vpop.f32.mrb[0].mxu0
  %3326 = vmatprep.mubr.f32.mxu0 0.0
  %3327 = vmatmul.mubr.f32.gmra.mrb[0].mxu0 %v3069
  %v3328 = vpop.f32.mrb[0].mxu0
  %v3329 = vadd.f32 %v3063, %v3328
  %v3330 = vpop.f32.mrb[0].mxu0
  %3331 = vmatprep.mubr.f32.mxu0 0.0
  %3332 = vmatmul.mubr.f32.gmra.mrb[0].mxu0 %v3072
  %v3333 = vpop.f32.mrb[0].mxu0
  %v3334 = vadd.f32 %v3063, %v3333
  %v3335 = vpop.f32.mrb[0].mxu0
  %3336 = vmatprep.mubr.f32.mxu0 0.0
  %3337 = vmatmul.mubr.f32.gmra.mrb[0].mxu0 %v3075
  %v3338 = vpop.f32.mrb[0].mxu0
  %v3339 = vadd.f32 %v3063, %v3338
  %v3340 = vpop.f32.mrb[0].mxu0
  %3341 = vmatprep.mubr.f32.mxu0 0.0
  %3342 = vmatmul.mubr.f32.gmra.mrb[0].mxu0 %v3078
  %v3343 = vpop.f32.mrb[0].mxu0
  %v3344 = vadd.f32 %v3063, %v3343
  %v3345 = vpop.f32.mrb[0].mxu0
  %3346 = vmatprep.mubr.f32.mxu0 0.0
  %3347 = vmatmul.mubr.f32.gmra.mrb[0].mxu0 %v3081
  %v3348 = vpop.f32.mrb[0].mxu0
  %v3349 = vadd.f32 %v3063, %v3348
  %v3350 = vpop.f32.mrb[0].mxu0
  %3351 = vmatprep.mubr.f32.mxu0 0.0
  %3352 = vmatmul.mubr.f32.gmra.mrb[0].mxu0 %v3084
  %v3353 = vpop.f32.mrb[0].mxu0
  %v3354 = vadd.f32 %v3063, %v3353
  %v3355 = vpop.f32.mrb[0].mxu0
  %3356 = vmatprep.mubr.f32.mxu0 0.0
  %3357 = vmatmul.mubr.f32.gmra.mrb[0].mxu0 %v3087
  %v3358 = vpop.f32.mrb[0].mxu0
  %v3359 = vadd.f32 %v3063, %v3358
  %v3360 = vpop.f32.mrb[0].mxu0
  %3361 = vmatprep.mubr.f32.mxu0 0.0
  %3362 = vmatmul.mubr.f32.gmra.mrb[0].mxu0 %v3090
  %v3363 = vpop.f32.mrb[0].mxu0
  %v3364 = vadd.f32 %v3063, %v3363
  %v3365 = vpop.f32.mrb[0].mxu0
  %3366 = vmatprep.mubr.f32.mxu0 0.0
  %3367 = vmatmul.mubr.f32.gmra.mrb[0].mxu0 %v3093
  %v3368 = vpop.f32.mrb[0].mxu0
  %v3369 = vadd.f32 %v3063, %v3368
  %v3370 = vpop.f32.mrb[0].mxu0
  %3371 = vmatprep.mubr.f32.mxu0 0.0
  %3372 = vmatmul.mubr.f32.gmra.mrb[0].mxu0 %v3096
  %v3373 = vpop.f32.mrb[0].mxu0
  %v3374 = vadd.f32 %v3063, %v3373
  %v3375 = vpop.f32.mrb[0].mxu0
  %3376 = vmatprep.mubr.f32.mxu0 0.0
  %3377 = vmatmul.mubr.f32.gmra.mrb[0].mxu0 %v3099
  %v3378 = vpop.f32.mrb[0].mxu0
  %v3379 = vadd.f32 %v3063, %v3378
  %v3380 = vpop.f32.mrb[0].mxu0
  %3381 = vmatprep.mubr.f32.mxu0 0.0
  %3382 = vmatmul.mubr.f32.gmra.mrb[0].mxu0 %v3102
  %v3383 = vpop.f32.mrb[0].mxu0
  %v3384 = vadd.f32 %v3063, %v3383
  %v3385 = vpop.f32.mrb[0].mxu0
  %3386 = vmatprep.mubr.f32.mxu0 0.0
  %3387 = vmatmul.mubr.f32.gmra.mrb[0].mxu0 %v3105
  %v3388 = vpop.f32.mrb[0].mxu0
  %v3389 = vadd.f32 %v3063, %v3388
  %v3390 = vpop.f32.mrb[0].mxu0
  %3391 = vmatprep.mubr.f32.mxu0 0.0
  %3392 = vmatmul.mubr.f32.gmra.mrb[0].mxu0 %v3108
  %v3393 = vpop.f32.mrb[0].mxu0
  %v3394 = vadd.f32 %v3063, %v3393
  %v3395 = vpop.f32.mrb[0].mxu0
  %3396 = vmatprep.mubr.f32.mxu0 0.0
  %3397 = vmatmul.mubr.f32.gmra.mrb[0].mxu0 %v3111
  %v3398 = vpop.f32.mrb[0].mxu0
  %v3399 = vadd.f32 %v3063, %v3398
  %v3400 = vpop.f32.mrb[0].mxu0
  %3401 = vmatprep.mubr.f32.mxu0 0.0
  %3402 = vmatmul.mubr.f32.gmra.mrb[0].mxu0 %v3114
  %v3403 = vpop.f32.mrb[0].mxu0
  %v3404 = vadd.f32 %v3063, %v3403
  %v3405 = vpop.f32.mrb[0].mxu0
  %3406 = vmatprep.mubr.f32.mxu0 0.0
  %3407 = vmatmul.mubr.f32.gmra.mrb[0].mxu0 %v3117
  %v3408 = vpop.f32.mrb[0].mxu0
  %v3409 = vadd.f32 %v3063, %v3408
  %v3410 = vpop.f32.mrb[0].mxu0
  %3411 = vmatprep.mubr.f32.mxu0 0.0
  %3412 = vmatmul.mubr.f32.gmra.mrb[0].mxu0 %v3120
  %v3413 = vpop.f32.mrb[0].mxu0
  %v3414 = vadd.f32 %v3063, %v3413
  %v3415 = vpop.f32.mrb[0].mxu0
  %3416 = vmatprep.mubr.f32.mxu0 0.0
  %3417 = vmatmul.mubr.f32.gmra.mrb[0].mxu0 %v3123
  %v3418 = vpop.f32.mrb[0].mxu0
  %v3419 = vadd.f32 %v3063, %v3418
  %v3420 = vpop.f32.mrb[0].mxu0
  %3421 = vmatprep.mubr.f32.mxu0 0.0
  %3422 = vmatmul.mubr.f32.gmra.mrb[0].mxu0 %v3126
  %v3423 = vpop.f32.mrb[0].mxu0
  %v3424 = vadd.f32 %v3063, %v3423
  %v3425 = vpop.f32.mrb[0].mxu0
  %3426 = vmatprep.mubr.f32.mxu0 0.0
  %3427 = vmatmul.mubr.f32.gmra.mrb[0].mxu0 %v3129
  %v3428 = vpop.f32.mrb[0].mxu0
  %v3429 = vadd.f32 %v3063, %v3428
  %v3430 = vpop.f32.mrb[0].mxu0
  %3431 = vmatprep.mubr.f32.mxu0 0.0
  %3432 = vmatmul.mubr.f32.gmra.mrb[0].mxu0 %v3132
  %v3433 = vpop.f32.mrb[0].mxu0
  %v3434 = vadd.f32 %v3063, %v3433
  %v3435 = vpop.f32.mrb[0].mxu0
  %3436 = vmatprep.mubr.f32.mxu0 0.0
  %3437 = vmatmul.mubr.f32.gmra.mrb[0].mxu0 %v3135
  %v3438 = vpop.f32.mrb[0].mxu0
  %v3439 = vadd.f32 %v3063, %v3438
  %v3440 = vpop.f32.mrb[0].mxu0
  %3441 = vmatprep.mubr.f32.mxu0 0.0
  %3442 = vmatmul.mubr.f32.gmra.mrb[0].mxu0 %v3138
  %v3443 = vpop.f32.mrb[0].mxu0
  %v3444 = vadd.f32 %v3063, %v3443
  %v3445 = vpop.f32.mrb[0].mxu0
  %3446 = vmatprep.mubr.f32.mxu0 0.0
  %3447 = vmatmul.mubr.f32.gmra.mrb[0].mxu0 %v3141
  %v3448 = vpop.f32.mrb[0].mxu0
  %v3449 = vadd.f32 %v3063, %v3448
  %v3450 = vpop.f32.mrb[0].mxu0
  %3451 = vmatprep.mubr.f32.mxu0 0.0
  %3452 = vmatmul.mubr.f32.gmra.mrb[0].mxu0 %v3144
  %v3453 = vpop.f32.mrb[0].mxu0
  %v3454 = vadd.f32 %v3063, %v3453
  %v3455 = vpop.f32.mrb[0].mxu0
  %3456 = vmatprep.mubr.f32.mxu0 0.0
  %3457 = vmatmul.mubr.f32.gmra.mrb[0].mxu0 %v3147
  %v3458 = vpop.f32.mrb[0].mxu0
  %v3459 = vadd.f32 %v3063, %v3458
  %v3460 = vpop.f32.mrb[0].mxu0
  %3461 = vmatprep.mubr.f32.mxu0 0.0
  %3462 = vmatmul.mubr.f32.gmra.mrb[0].mxu0 %v3150
  %v3463 = vpop.f32.mrb[0].mxu0
  %v3464 = vadd.f32 %v3063, %v3463
  %v3465 = vpop.f32.mrb[0].mxu0
  %3466 = vmatprep.mubr.f32.mxu0 0.0
  %3467 = vmatmul.mubr.f32.gmra.mrb[0].mxu0 %v3153
  %v3468 = vpop.f32.mrb[0].mxu0
  %v3469 = vadd.f32 %v3063, %v3468
  %v3470 = vpop.f32.mrb[0].mxu0
  %3471 = vmatprep.mubr.f32.mxu0 0.0
  %3472 = vmatmul.mubr.f32.gmra.mrb[0].mxu0 %v3156
  %v3473 = vpop.f32.mrb[0].mxu0
  %v3474 = vadd.f32 %v3063, %v3473
  %v3475 = vpop.f32.mrb[0].mxu0
  %3476 = vmatprep.mubr.f32.mxu0 0.0
  %3477 = vmatmul.mubr.f32.gmra.mrb[0].mxu0 %v3159
  %v3478 = vpop.f32.mrb[0].mxu0
  %v3479 = vadd.f32 %v3063, %v3478
  %v3480 = vpop.f32.mrb[0].mxu0
  %3481 = vmatprep.mubr.f32.mxu0 0.0
  %3482 = vmatmul.mubr.f32.gmra.mrb[0].mxu0 %v3162
  %v3483 = vpop.f32.mrb[0].mxu0
  %v3484 = vadd.f32 %v3063, %v3483
  %v3485 = vpop.f32.mrb[0].mxu0
  %3486 = vmatprep.mubr.f32.mxu0 0.0
  %3487 = vmatmul.mubr.f32.gmra.mrb[0].mxu0 %v3165
  %v3488 = vpop.f32.mrb[0].mxu0
  %v3489 = vadd.f32 %v3063, %v3488
  %v3490 = vpop.f32.mrb[0].mxu0
  %3491 = vmatprep.mubr.f32.mxu0 0.0
  %3492 = vmatmul.mubr.f32.gmra.mrb[0].mxu0 %v3168
  %v3493 = vpop.f32.mrb[0].mxu0
  %v3494 = vadd.f32 %v3063, %v3493
  %v3495 = vpop.f32.mrb[0].mxu0
  %3496 = vmatprep.mubr.f32.mxu0 0.0
  %3497 = vmatmul.mubr.f32.gmra.mrb[0].mxu0 %v3171
  %v3498 = vpop.f32.mrb[0].mxu0
  %v3499 = vadd.f32 %v3063, %v3498
  %v3500 = vpop.f32.mrb[0].mxu0
  %3501 = vmatprep.mubr.f32.mxu0 0.0
  %3502 = vmatmul.mubr.f32.gmra.mrb[0].mxu0 %v3174
  %v3503 = vpop.f32.mrb[0].mxu0
  %v3504 = vadd.f32 %v3063, %v3503
  %v3505 = vpop.f32.mrb[0].mxu0
  %3506 = vmatprep.mubr.f32.mxu0 0.0
  %3507 = vmatmul.mubr.f32.gmra.mrb[0].mxu0 %v3177
  %v3508 = vpop.f32.mrb[0].mxu0
  %v3509 = vadd.f32 %v3063, %v3508
  %v3510 = vpop.f32.mrb[0].mxu0
  %3511 = vmatprep.mubr.f32.mxu0 0.0
  %3512 = vmatmul.mubr.f32.gmra.mrb[0].mxu0 %v3180
  %v3513 = vpop.f32.mrb[0].mxu0
  %v3514 = vadd.f32 %v3063, %v3513
  %v3515 = vpop.f32.mrb[0].mxu0
  %3516 = vmatprep.mubr.f32.mxu0 0.0
  %3517 = vmatmul.mubr.f32.gmra.mrb[0].mxu0 %v3183
  %v3518 = vpop.f32.mrb[0].mxu0
  %v3519 = vadd.f32 %v3063, %v3518
  %v3520 = vpop.f32.mrb[0].mxu0
  %3521 = vmatprep.mubr.f32.mxu0 0.0
  %3522 = vmatmul.mubr.f32.gmra.mrb[0].mxu0 %v3186
  %v3523 = vpop.f32.mrb[0].mxu0
  %v3524 = vadd.f32 %v3063, %v3523
  %v3525 = vpop.f32.mrb[0].mxu0
  %3526 = vmatprep.mubr.f32.mxu0 0.0
  %3527 = vmatmul.mubr.f32.gmra.mrb[0].mxu0 %v3189
  %v3528 = vpop.f32.mrb[0].mxu0
  %v3529 = vadd.f32 %v3063, %v3528
  %v3530 = vpop.f32.mrb[0].mxu0
  %3531 = vmatprep.mubr.f32.mxu0 0.0
  %3532 = vmatmul.mubr.f32.gmra.mrb[0].mxu0 %v3192
  %v3533 = vpop.f32.mrb[0].mxu0
  %v3534 = vadd.f32 %v3063, %v3533
  %v3535 = vpop.f32.mrb[0].mxu0
  %3536 = vmatprep.mubr.f32.mxu0 0.0
  %3537 = vmatmul.mubr.f32.gmra.mrb[0].mxu0 %v3195
  %v3538 = vpop.f32.mrb[0].mxu0
  %v3539 = vadd.f32 %v3063, %v3538
  %v3540 = vpop.f32.mrb[0].mxu0
  %3541 = vmatprep.mubr.f32.mxu0 0.0
  %3542 = vmatmul.mubr.f32.gmra.mrb[0].mxu0 %v3198
  %v3543 = vpop.f32.mrb[0].mxu0
  %v3544 = vadd.f32 %v3063, %v3543
  %v3545 = vpop.f32.mrb[0].mxu0
  %3546 = vmatprep.mubr.f32.mxu0 0.0
  %3547 = vmatmul.mubr.f32.gmra.mrb[0].mxu0 %v3201
  %v3548 = vpop.f32.mrb[0].mxu0
  %v3549 = vadd.f32 %v3063, %v3548
  %v3550 = vpop.f32.mrb[0].mxu0
  %3551 = vmatprep.mubr.f32.mxu0 0.0
  %3552 = vmatmul.mubr.f32.gmra.mrb[0].mxu0 %v3204
  %v3553 = vpop.f32.mrb[0].mxu0
  %v3554 = vadd.f32 %v3063, %v3553
  %v3555 = vpop.f32.mrb[0].mxu0
  %3556 = vmatprep.mubr.f32.mxu0 0.0
  %3557 = vmatmul.mubr.f32.gmra.mrb[0].mxu0 %v3207
  %v3558 = vpop.f32.mrb[0].mxu0
  %v3559 = vadd.f32 %v3063, %v3558
  %v3560 = vpop.f32.mrb[0].mxu0
  %3561 = vmatprep.mubr.f32.mxu0 0.0
  %3562 = vmatmul.mubr.f32.gmra.mrb[0].mxu0 %v3210
  %v3563 = vpop.f32.mrb[0].mxu0
  %v3564 = vadd.f32 %v3063, %v3563
  %v3565 = vpop.f32.mrb[0].mxu0
  %3566 = vmatprep.mubr.f32.mxu0 0.0
  %3567 = vmatmul.mubr.f32.gmra.mrb[0].mxu0 %v3213
  %v3568 = vpop.f32.mrb[0].mxu0
  %v3569 = vadd.f32 %v3063, %v3568
  %v3570 = vpop.f32.mrb[0].mxu0
  %3571 = vmatprep.mubr.f32.mxu0 0.0
  %3572 = vmatmul.mubr.f32.gmra.mrb[0].mxu0 %v3216
  %v3573 = vpop.f32.mrb[0].mxu0
  %v3574 = vadd.f32 %v3063, %v3573
  %v3575 = vpop.f32.mrb[0].mxu0
  %3576 = vmatprep.mubr.f32.mxu0 0.0
  %3577 = vmatmul.mubr.f32.gmra.mrb[0].mxu0 %v3219
  %v3578 = vpop.f32.mrb[0].mxu0
  %v3579 = vadd.f32 %v3063, %v3578
  %v3580 = vpop.f32.mrb[0].mxu0
  %3581 = vmatprep.mubr.f32.mxu0 0.0
  %3582 = vmatmul.mubr.f32.gmra.mrb[0].mxu0 %v3222
  %v3583 = vpop.f32.mrb[0].mxu0
  %v3584 = vadd.f32 %v3063, %v3583
  %v3585 = vpop.f32.mrb[0].mxu0
  %3586 = vmatprep.mubr.f32.mxu0 0.0
  %3587 = vmatmul.mubr.f32.gmra.mrb[0].mxu0 %v3225
  %v3588 = vpop.f32.mrb[0].mxu0
  %v3589 = vadd.f32 %v3063, %v3588
  %v3590 = vpop.f32.mrb[0].mxu0
  %3591 = vmatprep.mubr.f32.mxu0 0.0
  %3592 = vmatmul.mubr.f32.gmra.mrb[0].mxu0 %v3228
  %v3593 = vpop.f32.mrb[0].mxu0
  %v3594 = vadd.f32 %v3063, %v3593
  %v3595 = vpop.f32.mrb[0].mxu0
  %3596 = vmatprep.mubr.f32.mxu0 0.0
  %3597 = vmatmul.mubr.f32.gmra.mrb[0].mxu0 %v3231
  %v3598 = vpop.f32.mrb[0].mxu0
  %v3599 = vadd.f32 %v3063, %v3598
  %v3600 = vpop.f32.mrb[0].mxu0
  %3601 = vmatprep.mubr.f32.mxu0 0.0
  %3602 = vmatmul.mubr.f32.gmra.mrb[0].mxu0 %v3234
  %v3603 = vpop.f32.mrb[0].mxu0
  %v3604 = vadd.f32 %v3063, %v3603
  %v3605 = vpop.f32.mrb[0].mxu0
  %3606 = vmatprep.mubr.f32.mxu0 0.0
  %3607 = vmatmul.mubr.f32.gmra.mrb[0].mxu0 %v3237
  %v3608 = vpop.f32.mrb[0].mxu0
  %v3609 = vadd.f32 %v3063, %v3608
  %v3610 = vpop.f32.mrb[0].mxu0
  %3611 = vmatprep.mubr.f32.mxu0 0.0
  %3612 = vmatmul.mubr.f32.gmra.mrb[0].mxu0 %v3240
  %v3613 = vpop.f32.mrb[0].mxu0
  %v3614 = vadd.f32 %v3063, %v3613
  %v3615 = vpop.f32.mrb[0].mxu0
  %3616 = vmatprep.mubr.f32.mxu0 0.0
  %3617 = vmatmul.mubr.f32.gmra.mrb[0].mxu0 %v3243
  %v3618 = vpop.f32.mrb[0].mxu0
  %v3619 = vadd.f32 %v3063, %v3618
  %v3620 = vpop.f32.mrb[0].mxu0
  %3621 = vmatprep.mubr.f32.mxu0 0.0
  %3622 = vmatmul.mubr.f32.gmra.mrb[0].mxu0 %v3246
  %v3623 = vpop.f32.mrb[0].mxu0
  %v3624 = vadd.f32 %v3063, %v3623
  %v3625 = vpop.f32.mrb[0].mxu0
  %3626 = vmatprep.mubr.f32.mxu0 0.0
  %3627 = vmatmul.mubr.f32.gmra.mrb[0].mxu0 %v3249
  %v3628 = vpop.f32.mrb[0].mxu0
  %v3629 = vadd.f32 %v3063, %v3628
  %v3630 = vpop.f32.mrb[0].mxu0
  %3631 = vmatprep.mubr.f32.mxu0 0.0
  %3632 = vmatmul.mubr.f32.gmra.mrb[0].mxu0 %v3252
  %v3633 = vpop.f32.mrb[0].mxu0
  %v3634 = vadd.f32 %v3063, %v3633
  %v3635 = vpop.f32.mrb[0].mxu0
  %3636 = vmatprep.mubr.f32.mxu0 0.0
  %3637 = vmatmul.mubr.f32.gmra.mrb[0].mxu0 %v3255
  %v3638 = vpop.f32.mrb[0].mxu0
  %v3639 = vadd.f32 %v3063, %v3638
  %v3640 = vpop.f32.mrb[0].mxu0
  %3641 = vdwg.mxu0
  %vm3642 = vcmask 64512
  %3643 = vst.msk [vmem:[%s3] sm:$0xff] %vm3642, %v3324
  %3644 = vst.msk [vmem:[%s3 + $0x8] sm:$0xff] %vm3642, %v3329
  %3645 = vst.msk [vmem:[%s3 + $0x10] sm:$0xff] %vm3642, %v3334
  %3646 = vst.msk [vmem:[%s3 + $0x18] sm:$0xff] %vm3642, %v3339
  %3647 = vst.msk [vmem:[%s3 + $0x20] sm:$0xff] %vm3642, %v3344
  %3648 = vst.msk [vmem:[%s3 + $0x28] sm:$0xff] %vm3642, %v3349
  %3649 = vst.msk [vmem:[%s3 + $0x30] sm:$0xff] %vm3642, %v3354
  %3650 = vst.msk [vmem:[%s3 + $0x38] sm:$0xff] %vm3642, %v3359
  %3651 = vst.msk [vmem:[%s3 + $0x40] sm:$0xff] %vm3642, %v3364
  %3652 = vst.msk [vmem:[%s3 + $0x48] sm:$0xff] %vm3642, %v3369
  %3653 = vst.msk [vmem:[%s3 + $0x50] sm:$0xff] %vm3642, %v3374
  %3654 = vst.msk [vmem:[%s3 + $0x58] sm:$0xff] %vm3642, %v3379
  %3655 = vst.msk [vmem:[%s3 + $0x60] sm:$0xff] %vm3642, %v3384
  %3656 = vst.msk [vmem:[%s3 + $0x68] sm:$0xff] %vm3642, %v3389
  %3657 = vst.msk [vmem:[%s3 + $0x70] sm:$0xff] %vm3642, %v3394
  %3658 = vst.msk [vmem:[%s3 + $0x78] sm:$0xff] %vm3642, %v3399
  %3659 = vst.msk [vmem:[%s3 + $0x80] sm:$0xff] %vm3642, %v3404
  %3660 = vst.msk [vmem:[%s3 + $0x88] sm:$0xff] %vm3642, %v3409
  %3661 = vst.msk [vmem:[%s3 + $0x90] sm:$0xff] %vm3642, %v3414
  %3662 = vst.msk [vmem:[%s3 + $0x98] sm:$0xff] %vm3642, %v3419
  %3663 = vst.msk [vmem:[%s3 + $0xa0] sm:$0xff] %vm3642, %v3424
  %3664 = vst.msk [vmem:[%s3 + $0xa8] sm:$0xff] %vm3642, %v3429
  %3665 = vst.msk [vmem:[%s3 + $0xb0] sm:$0xff] %vm3642, %v3434
  %3666 = vst.msk [vmem:[%s3 + $0xb8] sm:$0xff] %vm3642, %v3439
  %3667 = vst.msk [vmem:[%s3 + $0xc0] sm:$0xff] %vm3642, %v3444
  %3668 = vst.msk [vmem:[%s3 + $0xc8] sm:$0xff] %vm3642, %v3449
  %3669 = vst.msk [vmem:[%s3 + $0xd0] sm:$0xff] %vm3642, %v3454
  %3670 = vst.msk [vmem:[%s3 + $0xd8] sm:$0xff] %vm3642, %v3459
  %3671 = vst.msk [vmem:[%s3 + $0xe0] sm:$0xff] %vm3642, %v3464
  %3672 = vst.msk [vmem:[%s3 + $0xe8] sm:$0xff] %vm3642, %v3469
  %3673 = vst.msk [vmem:[%s3 + $0xf0] sm:$0xff] %vm3642, %v3474
  %3674 = vst.msk [vmem:[%s3 + $0xf8] sm:$0xff] %vm3642, %v3479
  %3675 = vst.msk [vmem:[%s3 + $0x100] sm:$0xff] %vm3642, %v3484
  %3676 = vst.msk [vmem:[%s3 + $0x108] sm:$0xff] %vm3642, %v3489
  %3677 = vst.msk [vmem:[%s3 + $0x110] sm:$0xff] %vm3642, %v3494
  %3678 = vst.msk [vmem:[%s3 + $0x118] sm:$0xff] %vm3642, %v3499
  %3679 = vst.msk [vmem:[%s3 + $0x120] sm:$0xff] %vm3642, %v3504
  %3680 = vst.msk [vmem:[%s3 + $0x128] sm:$0xff] %vm3642, %v3509
  %3681 = vst.msk [vmem:[%s3 + $0x130] sm:$0xff] %vm3642, %v3514
  %3682 = vst.msk [vmem:[%s3 + $0x138] sm:$0xff] %vm3642, %v3519
  %3683 = vst.msk [vmem:[%s3 + $0x140] sm:$0xff] %vm3642, %v3524
  %3684 = vst.msk [vmem:[%s3 + $0x148] sm:$0xff] %vm3642, %v3529
  %3685 = vst.msk [vmem:[%s3 + $0x150] sm:$0xff] %vm3642, %v3534
  %3686 = vst.msk [vmem:[%s3 + $0x158] sm:$0xff] %vm3642, %v3539
  %3687 = vst.msk [vmem:[%s3 + $0x160] sm:$0xff] %vm3642, %v3544
  %3688 = vst.msk [vmem:[%s3 + $0x168] sm:$0xff] %vm3642, %v3549
  %3689 = vst.msk [vmem:[%s3 + $0x170] sm:$0xff] %vm3642, %v3554
  %3690 = vst.msk [vmem:[%s3 + $0x178] sm:$0xff] %vm3642, %v3559
  %3691 = vst.msk [vmem:[%s3 + $0x180] sm:$0xff] %vm3642, %v3564
  %3692 = vst.msk [vmem:[%s3 + $0x188] sm:$0xff] %vm3642, %v3569
  %3693 = vst.msk [vmem:[%s3 + $0x190] sm:$0xff] %vm3642, %v3574
  %3694 = vst.msk [vmem:[%s3 + $0x198] sm:$0xff] %vm3642, %v3579
  %3695 = vst.msk [vmem:[%s3 + $0x1a0] sm:$0xff] %vm3642, %v3584
  %3696 = vst.msk [vmem:[%s3 + $0x1a8] sm:$0xff] %vm3642, %v3589
  %3697 = vst.msk [vmem:[%s3 + $0x1b0] sm:$0xff] %vm3642, %v3594
  %3698 = vst.msk [vmem:[%s3 + $0x1b8] sm:$0xff] %vm3642, %v3599
  %3699 = vst.msk [vmem:[%s3 + $0x1c0] sm:$0xff] %vm3642, %v3604
  %3700 = vst.msk [vmem:[%s3 + $0x1c8] sm:$0xff] %vm3642, %v3609
  %3701 = vst.msk [vmem:[%s3 + $0x1d0] sm:$0xff] %vm3642, %v3614
  %3702 = vst.msk [vmem:[%s3 + $0x1d8] sm:$0xff] %vm3642, %v3619
  %3703 = vst.msk [vmem:[%s3 + $0x1e0] sm:$0xff] %vm3642, %v3624
  %3704 = vst.msk [vmem:[%s3 + $0x1e8] sm:$0xff] %vm3642, %v3629
  %3705 = vst.msk [vmem:[%s3 + $0x1f0] sm:$0xff] %vm3642, %v3634
  %3706 = vst.msk [vmem:[%s3 + $0x1f8] sm:$0xff] %vm3642, %v3639
  // Predicated region
  $region14: #{nxblock_forward.1} parent=0 // pred_check
    _
  $region15: #{nxblock_forward.1} parent=0 // pred_check_branch
    %3708 = sbr.rel (0) target = $region17
  $region16: #{nxblock_forward.1} parent=0 // pred_region
    _
  $region17: #{nxblock_forward.1} parent=0 // pred_fallthru
    _
  // Predicated region
  $region18: #{nxblock_forward.1} parent=0 // pred_check
    _
  $region19: #{nxblock_forward.1} parent=0 // pred_check_branch
    %3710 = sbr.rel (0) target = $region21
  $region20: #{nxblock_forward.1} parent=0 // pred_region
    _
  $region21: #{nxblock_forward.1} parent=0 // pred_fallthru
    _

</llo_original>
